<compile_context>
chip_gen: v6e
topology: v6e:2x2x1
jax: 0.10.0
libtpu: 0.0.40
codegen_flags: <defaults>
</compile_context>

<pallas_src>
import jax
import jax.numpy as jnp
from jax import lax
from jax.experimental import pallas as pl
from jax.experimental.pallas import tpu as pltpu

C_IN1, C_OUT1, KH1, KW1 = 3, 6, 3, 5      # first conv (stride 2, dilation 2)
C2, KH2, KW2, D2 = 6, 5, 3, 3             # second conv (dilation 3)
N_SLABS = 4 * C_IN1 * 2 * 3               # (parity) x (ci) x (qh) x (qw) = 72


def _single_tensorcore_chip() -> bool:
    """True for chips with a single TensorCore per device (v5e / v6e)."""
    try:
        kind = jax.devices()[0].device_kind.lower()
    except Exception:
        return False
    return any(t in kind for t in ("v5e", "v5 lite", "v5lite", "v6e", "v6 lite", "v6lite"))


def _make_kernel(P, W2, OH3, OW3):
    L1 = C_OUT1 * W2          # conv1 lane width per packed batch item
    L2 = C2 * OW3             # conv2 lane width per packed batch item

    def fused_kernel(w1_ref, b1_ref, w2_ref, b2_ref, x_ref, o_ref):
        # ---- conv1 + MaxPool2d(2): four pooling-corner branches, lane-packed --------
        # acc_{a,b}[i, p*L1 + co*W2 + j] accumulates conv1 output at (2i+a, 2j+b).
        # Each tap: one broadcast weight row * one pre-shifted, pre-replicated slab.
        accs = {(a, b): None for a in (0, 1) for b in (0, 1)}
        for ci in range(C_IN1):
            for kh in range(KH1):
                for kw in range(KW1):
                    t = (ci * KH1 + kh) * KW1 + kw
                    wrow = w1_ref[pl.ds(t, 1), :]                       # (1, P*L1)
                    for a in (0, 1):
                        qh, rp = divmod(a + kh, 2)
                        for b in (0, 1):
                            qw, cp = divmod(b + kw, 2)
                            slab = (((2 * rp + cp) * C_IN1 + ci) * 2 + qh) * 3 + qw
                            term = wrow * x_ref[0, slab, :, :]          # (H2, P*L1)
                            accs[(a, b)] = term if accs[(a, b)] is None else accs[(a, b)] + term
        pooled = jnp.maximum(jnp.maximum(accs[(0, 0)], accs[(0, 1)]),
                             jnp.maximum(accs[(1, 0)], accs[(1, 1)]))
        pooled = pooled + b1_ref[...]             # max(x+c, y+c) == max(x, y) + c

        # ---- conv2 (dilation 3), output channels lane-packed -------------------------
        # pooled lane layout: p*L1 + ci*W2 + j.  Hoist the lane-slice + x6 replication
        # per (ci, kw); reuse it for all KH2 row taps.
        acc2 = None
        for ci in range(C2):
            for kw in range(KW2):
                reps = []
                for p in range(P):
                    base = p * L1 + ci * W2 + D2 * kw
                    sl = pooled[:, base:base + OW3]                     # (H2, OW3)
                    reps.extend([sl] * C2)                              # replicate over co
                s = jnp.concatenate(reps, axis=-1)                      # (H2, P*L2)
                for kh in range(KH2):
                    t2 = (ci * KH2 + kh) * KW2 + kw
                    w2row = w2_ref[pl.ds(t2, 1), :]                     # (1, P*L2)
                    term = w2row * s[D2 * kh:D2 * kh + OH3, :]          # (OH3, P*L2)
                    acc2 = term if acc2 is None else acc2 + term
        o_ref[0] = acc2 + b2_ref[...]             # single dense store per item

    return fused_kernel


def testmodel_forward(x, w1, b1, w2, b2):
    if x.dtype != jnp.float32:
        x = x.astype(jnp.float32)
    w1 = w1.astype(jnp.float32)
    b1 = b1.astype(jnp.float32)
    w2 = w2.astype(jnp.float32)
    b2 = b2.astype(jnp.float32)

    N, _, H, W = x.shape
    # Geometry (matches PyTorch floor-mode arithmetic).
    OH1 = (H - 2 * (KH1 - 1) - 1) // 2 + 1
    OW1 = (W - 2 * (KW1 - 1) - 1) // 2 + 1
    H2, W2 = OH1 // 2, OW1 // 2                              # after MaxPool2d(2)
    OH3, OW3 = H2 - D2 * (KH2 - 1), W2 - D2 * (KW2 - 1)      # conv2 output
    assert OH3 >= 1 and OW3 >= 1, "input too small for the receptive-field chain"
    # Static bound checks for the pre-shifted parity views (implied by model validity).
    assert 4 * H2 + 2 <= H - 1 and 4 * W2 + 6 <= W - 1
    L1, L2 = C_OUT1 * W2, C2 * OW3

    # Batch packing: single-TC chips pack 2 items along lanes (grid=(1,)); megacore
    # chips keep one item per grid step so the grid axis splits across TensorCores.
    P = 2 if (_single_tensorcore_chip() and N % 2 == 0
              and 2 * L1 <= 128 and 2 * L2 <= 128) else 1
    G = N // P

    # ---- wrapper-side layout plumbing (one pass over x) -----------------------------
    # conv1 tap (a,b,ci,kh,kw) reads x[ci, 4*(i+qh)+2*rp, 4*(j+qw)+2*cp] with
    # qh,rp = divmod(a+kh,2) and qw,cp = divmod(b+kw,2).  Pre-shift every
    # (parity, ci, qh, qw) view and replicate it x6 along lanes so every in-kernel
    # operand is a dense, offset-0 (H2, C_OUT1*W2) slab.
    slabs = []
    for rp in (0, 1):
        for cp in (0, 1):
            for ci in range(C_IN1):
                for qh in (0, 1):
                    for qw in (0, 1, 2):
                        v = x[:, ci, 4 * qh + 2 * rp::4, 4 * qw + 2 * cp::4][:, :H2, :W2]
                        slabs.append(jnp.tile(v, (1, 1, C_OUT1)))       # (N, H2, L1)
    xpk = jnp.stack(slabs, axis=1)                                      # (N, 72, H2, L1)
    if P > 1:
        xpk = (xpk.reshape(G, P, N_SLABS, H2, L1)
                  .transpose(0, 2, 3, 1, 4)
                  .reshape(G, N_SLABS, H2, P * L1))

    # Broadcast weight / bias rows: lane = p*L + co*width + col.
    w1t = jnp.tile(jnp.repeat(w1.transpose(1, 2, 3, 0).reshape(-1, C_OUT1), W2, axis=1), (1, P))
    b1t = jnp.tile(jnp.repeat(b1, W2), P)[None, :]
    w2t = jnp.tile(jnp.repeat(w2.transpose(1, 2, 3, 0).reshape(-1, C2), OW3, axis=1), (1, P))
    b2t = jnp.tile(jnp.repeat(b2, OW3), P)[None, :]

    out = pl.pallas_call(
        _make_kernel(P, W2, OH3, OW3),
        out_shape=jax.ShapeDtypeStruct((G, OH3, P * L2), jnp.float32),
        grid=(G,),
        in_specs=[
            pl.BlockSpec((C_IN1 * KH1 * KW1, P * L1), lambda g: (0, 0)),   # conv1 weight rows
            pl.BlockSpec((1, P * L1), lambda g: (0, 0)),                   # conv1 bias row
            pl.BlockSpec((C2 * KH2 * KW2, P * L2), lambda g: (0, 0)),      # conv2 weight rows
            pl.BlockSpec((1, P * L2), lambda g: (0, 0)),                   # conv2 bias row
            pl.BlockSpec((1, N_SLABS, H2, P * L1), lambda g: (g, 0, 0, 0)),
        ],
        out_specs=pl.BlockSpec((1, OH3, P * L2), lambda g: (g, 0, 0)),
        compiler_params=pltpu.CompilerParams(dimension_semantics=("parallel",)),
    )(w1t, b1t, w2t, b2t, xpk)

    # Unpack lanes back to NCHW: out[g, oi, p*L2 + co*OW3 + oj] -> (N, 6, OH3, OW3).
    out = (out.reshape(G, OH3, P, C2, OW3)
              .transpose(0, 2, 3, 1, 4)
              .reshape(N, C2, OH3, OW3))
    return out


if __name__ == "__main__":
    key = jax.random.PRNGKey(0)
    kx, kw1, kb1, kw2, kb2 = jax.random.split(key, 5)

    # Smallest convenient shape consistent with the receptive-field chain:
    # (2, 3, 64, 48) -> (2, 6, 3, 4).
    N, C, H, W = 2, 3, 64, 48
    x = jax.random.normal(kx, (N, C, H, W), dtype=jnp.float32)
    w1 = 0.1 * jax.random.normal(kw1, (6, 3, 3, 5), dtype=jnp.float32)
    b1 = 0.1 * jax.random.normal(kb1, (6,), dtype=jnp.float32)
    w2 = 0.1 * jax.random.normal(kw2, (6, 6, 5, 3), dtype=jnp.float32)
    b2 = 0.1 * jax.random.normal(kb2, (6,), dtype=jnp.float32)

    fwd = jax.jit(testmodel_forward)
    out = jax.block_until_ready(fwd(x, w1, b1, w2, b2))

    # Pure-JAX reference (same semantics as the PyTorch module).
    dn = ('NCHW', 'OIHW', 'NCHW')
    r1 = lax.conv_general_dilated(x, w1, (2, 2), 'VALID', rhs_dilation=(2, 2),
                                  dimension_numbers=dn,
                                  precision=lax.Precision.HIGHEST)
    r1 = r1 + b1[None, :, None, None]
    rp = lax.reduce_window(r1, -jnp.inf, lax.max, (1, 1, 2, 2), (1, 1, 2, 2), 'VALID')
    r2 = lax.conv_general_dilated(rp, w2, (1, 1), 'VALID', rhs_dilation=(3, 3),
                                  dimension_numbers=dn,
                                  precision=lax.Precision.HIGHEST)
    r2 = r2 + b2[None, :, None, None]

    assert out.shape == (2, 6, 3, 4), out.shape
    assert jnp.allclose(out, r2, atol=1e-3, rtol=1e-3), float(jnp.max(jnp.abs(out - r2)))
    print("KERNEL_OK")
</pallas_src>

<mosaic_0001>
module attributes {stable_mosaic.version = 11 : i64} {
  func.func @fused_kernel(%arg0: i32, %arg1: memref<45x60xf32, #tpu.memory_space<vmem>>, %arg2: memref<1x60xf32, #tpu.memory_space<vmem>>, %arg3: memref<90x24xf32, #tpu.memory_space<vmem>>, %arg4: memref<1x24xf32, #tpu.memory_space<vmem>>, %arg5: memref<1x72x15x60xf32, #tpu.memory_space<vmem>>, %arg6: memref<1x3x24xf32, #tpu.memory_space<vmem>>) attributes {dimension_semantics = [#tpu.dimension_semantics<parallel>], iteration_bounds = array<i64: 2>, scalar_prefetch = 0 : i64, scratch_operands = 0 : i64, tpu.core_type = #tpu.core_type<tc>, window_params = [{pipeline_mode = #tpu.pipeline_mode<synchronous>, transform_indices = @transform_0, window_bounds = array<i64: 45, 60>}, {pipeline_mode = #tpu.pipeline_mode<synchronous>, transform_indices = @transform_1, window_bounds = array<i64: 1, 60>}, {pipeline_mode = #tpu.pipeline_mode<synchronous>, transform_indices = @transform_2, window_bounds = array<i64: 90, 24>}, {pipeline_mode = #tpu.pipeline_mode<synchronous>, transform_indices = @transform_3, window_bounds = array<i64: 1, 24>}, {transform_indices = @transform_4, window_bounds = array<i64: 1, 72, 15, 60>}, {transform_indices = @transform_5, window_bounds = array<i64: 1, 3, 24>}]} {
    %c0 = arith.constant 0 : index
    %c0_0 = arith.constant 0 : index
    %0 = vector.load %arg1[%c0, %c0_0] : memref<45x60xf32, #tpu.memory_space<vmem>>, vector<1x60xf32>
    %c0_1 = arith.constant 0 : index
    %c0_2 = arith.constant 0 : index
    %c0_3 = arith.constant 0 : index
    %c0_4 = arith.constant 0 : index
    %1 = vector.load %arg5[%c0_1, %c0_2, %c0_3, %c0_4] : memref<1x72x15x60xf32, #tpu.memory_space<vmem>>, vector<1x1x15x60xf32>
    %2 = vector.shape_cast %1 : vector<1x1x15x60xf32> to vector<15x60xf32>
    %3 = vector.broadcast %0 : vector<1x60xf32> to vector<15x60xf32>
    %4 = arith.mulf %3, %2 : vector<15x60xf32>
    %c0_5 = arith.constant 0 : index
    %c18 = arith.constant 18 : index
    %c0_6 = arith.constant 0 : index
    %c0_7 = arith.constant 0 : index
    %5 = vector.load %arg5[%c0_5, %c18, %c0_6, %c0_7] : memref<1x72x15x60xf32, #tpu.memory_space<vmem>>, vector<1x1x15x60xf32>
    %6 = vector.shape_cast %5 : vector<1x1x15x60xf32> to vector<15x60xf32>
    %7 = vector.broadcast %0 : vector<1x60xf32> to vector<15x60xf32>
    %8 = arith.mulf %7, %6 : vector<15x60xf32>
    %c0_8 = arith.constant 0 : index
    %c36 = arith.constant 36 : index
    %c0_9 = arith.constant 0 : index
    %c0_10 = arith.constant 0 : index
    %9 = vector.load %arg5[%c0_8, %c36, %c0_9, %c0_10] : memref<1x72x15x60xf32, #tpu.memory_space<vmem>>, vector<1x1x15x60xf32>
    %10 = vector.shape_cast %9 : vector<1x1x15x60xf32> to vector<15x60xf32>
    %11 = vector.broadcast %0 : vector<1x60xf32> to vector<15x60xf32>
    %12 = arith.mulf %11, %10 : vector<15x60xf32>
    %c0_11 = arith.constant 0 : index
    %c54 = arith.constant 54 : index
    %c0_12 = arith.constant 0 : index
    %c0_13 = arith.constant 0 : index
    %13 = vector.load %arg5[%c0_11, %c54, %c0_12, %c0_13] : memref<1x72x15x60xf32, #tpu.memory_space<vmem>>, vector<1x1x15x60xf32>
    %14 = vector.shape_cast %13 : vector<1x1x15x60xf32> to vector<15x60xf32>
    %15 = vector.broadcast %0 : vector<1x60xf32> to vector<15x60xf32>
    %16 = arith.mulf %15, %14 : vector<15x60xf32>
    %c1 = arith.constant 1 : index
    %c0_14 = arith.constant 0 : index
    %17 = vector.load %arg1[%c1, %c0_14] : memref<45x60xf32, #tpu.memory_space<vmem>>, vector<1x60xf32>
    %c0_15 = arith.constant 0 : index
    %c18_16 = arith.constant 18 : index
    %c0_17 = arith.constant 0 : index
    %c0_18 = arith.constant 0 : index
    %18 = vector.load %arg5[%c0_15, %c18_16, %c0_17, %c0_18] : memref<1x72x15x60xf32, #tpu.memory_space<vmem>>, vector<1x1x15x60xf32>
    %19 = vector.shape_cast %18 : vector<1x1x15x60xf32> to vector<15x60xf32>
    %20 = vector.broadcast %17 : vector<1x60xf32> to vector<15x60xf32>
    %21 = arith.mulf %20, %19 : vector<15x60xf32>
    %22 = arith.addf %4, %21 : vector<15x60xf32>
    %c0_19 = arith.constant 0 : index
    %c1_20 = arith.constant 1 : index
    %c0_21 = arith.constant 0 : index
    %c0_22 = arith.constant 0 : index
    %23 = vector.load %arg5[%c0_19, %c1_20, %c0_21, %c0_22] : memref<1x72x15x60xf32, #tpu.memory_space<vmem>>, vector<1x1x15x60xf32>
    %24 = vector.shape_cast %23 : vector<1x1x15x60xf32> to vector<15x60xf32>
    %25 = vector.broadcast %17 : vector<1x60xf32> to vector<15x60xf32>
    %26 = arith.mulf %25, %24 : vector<15x60xf32>
    %27 = arith.addf %8, %26 : vector<15x60xf32>
    %c0_23 = arith.constant 0 : index
    %c54_24 = arith.constant 54 : index
    %c0_25 = arith.constant 0 : index
    %c0_26 = arith.constant 0 : index
    %28 = vector.load %arg5[%c0_23, %c54_24, %c0_25, %c0_26] : memref<1x72x15x60xf32, #tpu.memory_space<vmem>>, vector<1x1x15x60xf32>
    %29 = vector.shape_cast %28 : vector<1x1x15x60xf32> to vector<15x60xf32>
    %30 = vector.broadcast %17 : vector<1x60xf32> to vector<15x60xf32>
    %31 = arith.mulf %30, %29 : vector<15x60xf32>
    %32 = arith.addf %12, %31 : vector<15x60xf32>
    %c0_27 = arith.constant 0 : index
    %c37 = arith.constant 37 : index
    %c0_28 = arith.constant 0 : index
    %c0_29 = arith.constant 0 : index
    %33 = vector.load %arg5[%c0_27, %c37, %c0_28, %c0_29] : memref<1x72x15x60xf32, #tpu.memory_space<vmem>>, vector<1x1x15x60xf32>
    %34 = vector.shape_cast %33 : vector<1x1x15x60xf32> to vector<15x60xf32>
    %35 = vector.broadcast %17 : vector<1x60xf32> to vector<15x60xf32>
    %36 = arith.mulf %35, %34 : vector<15x60xf32>
    %37 = arith.addf %16, %36 : vector<15x60xf32>
    %c2 = arith.constant 2 : index
    %c0_30 = arith.constant 0 : index
    %38 = vector.load %arg1[%c2, %c0_30] : memref<45x60xf32, #tpu.memory_space<vmem>>, vector<1x60xf32>
    %c0_31 = arith.constant 0 : index
    %c1_32 = arith.constant 1 : index
    %c0_33 = arith.constant 0 : index
    %c0_34 = arith.constant 0 : index
    %39 = vector.load %arg5[%c0_31, %c1_32, %c0_33, %c0_34] : memref<1x72x15x60xf32, #tpu.memory_space<vmem>>, vector<1x1x15x60xf32>
    %40 = vector.shape_cast %39 : vector<1x1x15x60xf32> to vector<15x60xf32>
    %41 = vector.broadcast %38 : vector<1x60xf32> to vector<15x60xf32>
    %42 = arith.mulf %41, %40 : vector<15x60xf32>
    %43 = arith.addf %22, %42 : vector<15x60xf32>
    %c0_35 = arith.constant 0 : index
    %c19 = arith.constant 19 : index
    %c0_36 = arith.constant 0 : index
    %c0_37 = arith.constant 0 : index
    %44 = vector.load %arg5[%c0_35, %c19, %c0_36, %c0_37] : memref<1x72x15x60xf32, #tpu.memory_space<vmem>>, vector<1x1x15x60xf32>
    %45 = vector.shape_cast %44 : vector<1x1x15x60xf32> to vector<15x60xf32>
    %46 = vector.broadcast %38 : vector<1x60xf32> to vector<15x60xf32>
    %47 = arith.mulf %46, %45 : vector<15x60xf32>
    %48 = arith.addf %27, %47 : vector<15x60xf32>
    %c0_38 = arith.constant 0 : index
    %c37_39 = arith.constant 37 : index
    %c0_40 = arith.constant 0 : index
    %c0_41 = arith.constant 0 : index
    %49 = vector.load %arg5[%c0_38, %c37_39, %c0_40, %c0_41] : memref<1x72x15x60xf32, #tpu.memory_space<vmem>>, vector<1x1x15x60xf32>
    %50 = vector.shape_cast %49 : vector<1x1x15x60xf32> to vector<15x60xf32>
    %51 = vector.broadcast %38 : vector<1x60xf32> to vector<15x60xf32>
    %52 = arith.mulf %51, %50 : vector<15x60xf32>
    %53 = arith.addf %32, %52 : vector<15x60xf32>
    %c0_42 = arith.constant 0 : index
    %c55 = arith.constant 55 : index
    %c0_43 = arith.constant 0 : index
    %c0_44 = arith.constant 0 : index
    %54 = vector.load %arg5[%c0_42, %c55, %c0_43, %c0_44] : memref<1x72x15x60xf32, #tpu.memory_space<vmem>>, vector<1x1x15x60xf32>
    %55 = vector.shape_cast %54 : vector<1x1x15x60xf32> to vector<15x60xf32>
    %56 = vector.broadcast %38 : vector<1x60xf32> to vector<15x60xf32>
    %57 = arith.mulf %56, %55 : vector<15x60xf32>
    %58 = arith.addf %37, %57 : vector<15x60xf32>
    %c3 = arith.constant 3 : index
    %c0_45 = arith.constant 0 : index
    %59 = vector.load %arg1[%c3, %c0_45] : memref<45x60xf32, #tpu.memory_space<vmem>>, vector<1x60xf32>
    %c0_46 = arith.constant 0 : index
    %c19_47 = arith.constant 19 : index
    %c0_48 = arith.constant 0 : index
    %c0_49 = arith.constant 0 : index
    %60 = vector.load %arg5[%c0_46, %c19_47, %c0_48, %c0_49] : memref<1x72x15x60xf32, #tpu.memory_space<vmem>>, vector<1x1x15x60xf32>
    %61 = vector.shape_cast %60 : vector<1x1x15x60xf32> to vector<15x60xf32>
    %62 = vector.broadcast %59 : vector<1x60xf32> to vector<15x60xf32>
    %63 = arith.mulf %62, %61 : vector<15x60xf32>
    %64 = arith.addf %43, %63 : vector<15x60xf32>
    %c0_50 = arith.constant 0 : index
    %c2_51 = arith.constant 2 : index
    %c0_52 = arith.constant 0 : index
    %c0_53 = arith.constant 0 : index
    %65 = vector.load %arg5[%c0_50, %c2_51, %c0_52, %c0_53] : memref<1x72x15x60xf32, #tpu.memory_space<vmem>>, vector<1x1x15x60xf32>
    %66 = vector.shape_cast %65 : vector<1x1x15x60xf32> to vector<15x60xf32>
    %67 = vector.broadcast %59 : vector<1x60xf32> to vector<15x60xf32>
    %68 = arith.mulf %67, %66 : vector<15x60xf32>
    %69 = arith.addf %48, %68 : vector<15x60xf32>
    %c0_54 = arith.constant 0 : index
    %c55_55 = arith.constant 55 : index
    %c0_56 = arith.constant 0 : index
    %c0_57 = arith.constant 0 : index
    %70 = vector.load %arg5[%c0_54, %c55_55, %c0_56, %c0_57] : memref<1x72x15x60xf32, #tpu.memory_space<vmem>>, vector<1x1x15x60xf32>
    %71 = vector.shape_cast %70 : vector<1x1x15x60xf32> to vector<15x60xf32>
    %72 = vector.broadcast %59 : vector<1x60xf32> to vector<15x60xf32>
    %73 = arith.mulf %72, %71 : vector<15x60xf32>
    %74 = arith.addf %53, %73 : vector<15x60xf32>
    %c0_58 = arith.constant 0 : index
    %c38 = arith.constant 38 : index
    %c0_59 = arith.constant 0 : index
    %c0_60 = arith.constant 0 : index
    %75 = vector.load %arg5[%c0_58, %c38, %c0_59, %c0_60] : memref<1x72x15x60xf32, #tpu.memory_space<vmem>>, vector<1x1x15x60xf32>
    %76 = vector.shape_cast %75 : vector<1x1x15x60xf32> to vector<15x60xf32>
    %77 = vector.broadcast %59 : vector<1x60xf32> to vector<15x60xf32>
    %78 = arith.mulf %77, %76 : vector<15x60xf32>
    %79 = arith.addf %58, %78 : vector<15x60xf32>
    %c4 = arith.constant 4 : index
    %c0_61 = arith.constant 0 : index
    %80 = vector.load %arg1[%c4, %c0_61] : memref<45x60xf32, #tpu.memory_space<vmem>>, vector<1x60xf32>
    %c0_62 = arith.constant 0 : index
    %c2_63 = arith.constant 2 : index
    %c0_64 = arith.constant 0 : index
    %c0_65 = arith.constant 0 : index
    %81 = vector.load %arg5[%c0_62, %c2_63, %c0_64, %c0_65] : memref<1x72x15x60xf32, #tpu.memory_space<vmem>>, vector<1x1x15x60xf32>
    %82 = vector.shape_cast %81 : vector<1x1x15x60xf32> to vector<15x60xf32>
    %83 = vector.broadcast %80 : vector<1x60xf32> to vector<15x60xf32>
    %84 = arith.mulf %83, %82 : vector<15x60xf32>
    %85 = arith.addf %64, %84 : vector<15x60xf32>
    %c0_66 = arith.constant 0 : index
    %c20 = arith.constant 20 : index
    %c0_67 = arith.constant 0 : index
    %c0_68 = arith.constant 0 : index
    %86 = vector.load %arg5[%c0_66, %c20, %c0_67, %c0_68] : memref<1x72x15x60xf32, #tpu.memory_space<vmem>>, vector<1x1x15x60xf32>
    %87 = vector.shape_cast %86 : vector<1x1x15x60xf32> to vector<15x60xf32>
    %88 = vector.broadcast %80 : vector<1x60xf32> to vector<15x60xf32>
    %89 = arith.mulf %88, %87 : vector<15x60xf32>
    %90 = arith.addf %69, %89 : vector<15x60xf32>
    %c0_69 = arith.constant 0 : index
    %c38_70 = arith.constant 38 : index
    %c0_71 = arith.constant 0 : index
    %c0_72 = arith.constant 0 : index
    %91 = vector.load %arg5[%c0_69, %c38_70, %c0_71, %c0_72] : memref<1x72x15x60xf32, #tpu.memory_space<vmem>>, vector<1x1x15x60xf32>
    %92 = vector.shape_cast %91 : vector<1x1x15x60xf32> to vector<15x60xf32>
    %93 = vector.broadcast %80 : vector<1x60xf32> to vector<15x60xf32>
    %94 = arith.mulf %93, %92 : vector<15x60xf32>
    %95 = arith.addf %74, %94 : vector<15x60xf32>
    %c0_73 = arith.constant 0 : index
    %c56 = arith.constant 56 : index
    %c0_74 = arith.constant 0 : index
    %c0_75 = arith.constant 0 : index
    %96 = vector.load %arg5[%c0_73, %c56, %c0_74, %c0_75] : memref<1x72x15x60xf32, #tpu.memory_space<vmem>>, vector<1x1x15x60xf32>
    %97 = vector.shape_cast %96 : vector<1x1x15x60xf32> to vector<15x60xf32>
    %98 = vector.broadcast %80 : vector<1x60xf32> to vector<15x60xf32>
    %99 = arith.mulf %98, %97 : vector<15x60xf32>
    %100 = arith.addf %79, %99 : vector<15x60xf32>
    %c5 = arith.constant 5 : index
    %c0_76 = arith.constant 0 : index
    %101 = vector.load %arg1[%c5, %c0_76] : memref<45x60xf32, #tpu.memory_space<vmem>>, vector<1x60xf32>
    %c0_77 = arith.constant 0 : index
    %c36_78 = arith.constant 36 : index
    %c0_79 = arith.constant 0 : index
    %c0_80 = arith.constant 0 : index
    %102 = vector.load %arg5[%c0_77, %c36_78, %c0_79, %c0_80] : memref<1x72x15x60xf32, #tpu.memory_space<vmem>>, vector<1x1x15x60xf32>
    %103 = vector.shape_cast %102 : vector<1x1x15x60xf32> to vector<15x60xf32>
    %104 = vector.broadcast %101 : vector<1x60xf32> to vector<15x60xf32>
    %105 = arith.mulf %104, %103 : vector<15x60xf32>
    %106 = arith.addf %85, %105 : vector<15x60xf32>
    %c0_81 = arith.constant 0 : index
    %c54_82 = arith.constant 54 : index
    %c0_83 = arith.constant 0 : index
    %c0_84 = arith.constant 0 : index
    %107 = vector.load %arg5[%c0_81, %c54_82, %c0_83, %c0_84] : memref<1x72x15x60xf32, #tpu.memory_space<vmem>>, vector<1x1x15x60xf32>
    %108 = vector.shape_cast %107 : vector<1x1x15x60xf32> to vector<15x60xf32>
    %109 = vector.broadcast %101 : vector<1x60xf32> to vector<15x60xf32>
    %110 = arith.mulf %109, %108 : vector<15x60xf32>
    %111 = arith.addf %90, %110 : vector<15x60xf32>
    %c0_85 = arith.constant 0 : index
    %c3_86 = arith.constant 3 : index
    %c0_87 = arith.constant 0 : index
    %c0_88 = arith.constant 0 : index
    %112 = vector.load %arg5[%c0_85, %c3_86, %c0_87, %c0_88] : memref<1x72x15x60xf32, #tpu.memory_space<vmem>>, vector<1x1x15x60xf32>
    %113 = vector.shape_cast %112 : vector<1x1x15x60xf32> to vector<15x60xf32>
    %114 = vector.broadcast %101 : vector<1x60xf32> to vector<15x60xf32>
    %115 = arith.mulf %114, %113 : vector<15x60xf32>
    %116 = arith.addf %95, %115 : vector<15x60xf32>
    %c0_89 = arith.constant 0 : index
    %c21 = arith.constant 21 : index
    %c0_90 = arith.constant 0 : index
    %c0_91 = arith.constant 0 : index
    %117 = vector.load %arg5[%c0_89, %c21, %c0_90, %c0_91] : memref<1x72x15x60xf32, #tpu.memory_space<vmem>>, vector<1x1x15x60xf32>
    %118 = vector.shape_cast %117 : vector<1x1x15x60xf32> to vector<15x60xf32>
    %119 = vector.broadcast %101 : vector<1x60xf32> to vector<15x60xf32>
    %120 = arith.mulf %119, %118 : vector<15x60xf32>
    %121 = arith.addf %100, %120 : vector<15x60xf32>
    %c6 = arith.constant 6 : index
    %c0_92 = arith.constant 0 : index
    %122 = vector.load %arg1[%c6, %c0_92] : memref<45x60xf32, #tpu.memory_space<vmem>>, vector<1x60xf32>
    %c0_93 = arith.constant 0 : index
    %c54_94 = arith.constant 54 : index
    %c0_95 = arith.constant 0 : index
    %c0_96 = arith.constant 0 : index
    %123 = vector.load %arg5[%c0_93, %c54_94, %c0_95, %c0_96] : memref<1x72x15x60xf32, #tpu.memory_space<vmem>>, vector<1x1x15x60xf32>
    %124 = vector.shape_cast %123 : vector<1x1x15x60xf32> to vector<15x60xf32>
    %125 = vector.broadcast %122 : vector<1x60xf32> to vector<15x60xf32>
    %126 = arith.mulf %125, %124 : vector<15x60xf32>
    %127 = arith.addf %106, %126 : vector<15x60xf32>
    %c0_97 = arith.constant 0 : index
    %c37_98 = arith.constant 37 : index
    %c0_99 = arith.constant 0 : index
    %c0_100 = arith.constant 0 : index
    %128 = vector.load %arg5[%c0_97, %c37_98, %c0_99, %c0_100] : memref<1x72x15x60xf32, #tpu.memory_space<vmem>>, vector<1x1x15x60xf32>
    %129 = vector.shape_cast %128 : vector<1x1x15x60xf32> to vector<15x60xf32>
    %130 = vector.broadcast %122 : vector<1x60xf32> to vector<15x60xf32>
    %131 = arith.mulf %130, %129 : vector<15x60xf32>
    %132 = arith.addf %111, %131 : vector<15x60xf32>
    %c0_101 = arith.constant 0 : index
    %c21_102 = arith.constant 21 : index
    %c0_103 = arith.constant 0 : index
    %c0_104 = arith.constant 0 : index
    %133 = vector.load %arg5[%c0_101, %c21_102, %c0_103, %c0_104] : memref<1x72x15x60xf32, #tpu.memory_space<vmem>>, vector<1x1x15x60xf32>
    %134 = vector.shape_cast %133 : vector<1x1x15x60xf32> to vector<15x60xf32>
    %135 = vector.broadcast %122 : vector<1x60xf32> to vector<15x60xf32>
    %136 = arith.mulf %135, %134 : vector<15x60xf32>
    %137 = arith.addf %116, %136 : vector<15x60xf32>
    %c0_105 = arith.constant 0 : index
    %c4_106 = arith.constant 4 : index
    %c0_107 = arith.constant 0 : index
    %c0_108 = arith.constant 0 : index
    %138 = vector.load %arg5[%c0_105, %c4_106, %c0_107, %c0_108] : memref<1x72x15x60xf32, #tpu.memory_space<vmem>>, vector<1x1x15x60xf32>
    %139 = vector.shape_cast %138 : vector<1x1x15x60xf32> to vector<15x60xf32>
    %140 = vector.broadcast %122 : vector<1x60xf32> to vector<15x60xf32>
    %141 = arith.mulf %140, %139 : vector<15x60xf32>
    %142 = arith.addf %121, %141 : vector<15x60xf32>
    %c7 = arith.constant 7 : index
    %c0_109 = arith.constant 0 : index
    %143 = vector.load %arg1[%c7, %c0_109] : memref<45x60xf32, #tpu.memory_space<vmem>>, vector<1x60xf32>
    %c0_110 = arith.constant 0 : index
    %c37_111 = arith.constant 37 : index
    %c0_112 = arith.constant 0 : index
    %c0_113 = arith.constant 0 : index
    %144 = vector.load %arg5[%c0_110, %c37_111, %c0_112, %c0_113] : memref<1x72x15x60xf32, #tpu.memory_space<vmem>>, vector<1x1x15x60xf32>
    %145 = vector.shape_cast %144 : vector<1x1x15x60xf32> to vector<15x60xf32>
    %146 = vector.broadcast %143 : vector<1x60xf32> to vector<15x60xf32>
    %147 = arith.mulf %146, %145 : vector<15x60xf32>
    %148 = arith.addf %127, %147 : vector<15x60xf32>
    %c0_114 = arith.constant 0 : index
    %c55_115 = arith.constant 55 : index
    %c0_116 = arith.constant 0 : index
    %c0_117 = arith.constant 0 : index
    %149 = vector.load %arg5[%c0_114, %c55_115, %c0_116, %c0_117] : memref<1x72x15x60xf32, #tpu.memory_space<vmem>>, vector<1x1x15x60xf32>
    %150 = vector.shape_cast %149 : vector<1x1x15x60xf32> to vector<15x60xf32>
    %151 = vector.broadcast %143 : vector<1x60xf32> to vector<15x60xf32>
    %152 = arith.mulf %151, %150 : vector<15x60xf32>
    %153 = arith.addf %132, %152 : vector<15x60xf32>
    %c0_118 = arith.constant 0 : index
    %c4_119 = arith.constant 4 : index
    %c0_120 = arith.constant 0 : index
    %c0_121 = arith.constant 0 : index
    %154 = vector.load %arg5[%c0_118, %c4_119, %c0_120, %c0_121] : memref<1x72x15x60xf32, #tpu.memory_space<vmem>>, vector<1x1x15x60xf32>
    %155 = vector.shape_cast %154 : vector<1x1x15x60xf32> to vector<15x60xf32>
    %156 = vector.broadcast %143 : vector<1x60xf32> to vector<15x60xf32>
    %157 = arith.mulf %156, %155 : vector<15x60xf32>
    %158 = arith.addf %137, %157 : vector<15x60xf32>
    %c0_122 = arith.constant 0 : index
    %c22 = arith.constant 22 : index
    %c0_123 = arith.constant 0 : index
    %c0_124 = arith.constant 0 : index
    %159 = vector.load %arg5[%c0_122, %c22, %c0_123, %c0_124] : memref<1x72x15x60xf32, #tpu.memory_space<vmem>>, vector<1x1x15x60xf32>
    %160 = vector.shape_cast %159 : vector<1x1x15x60xf32> to vector<15x60xf32>
    %161 = vector.broadcast %143 : vector<1x60xf32> to vector<15x60xf32>
    %162 = arith.mulf %161, %160 : vector<15x60xf32>
    %163 = arith.addf %142, %162 : vector<15x60xf32>
    %c8 = arith.constant 8 : index
    %c0_125 = arith.constant 0 : index
    %164 = vector.load %arg1[%c8, %c0_125] : memref<45x60xf32, #tpu.memory_space<vmem>>, vector<1x60xf32>
    %c0_126 = arith.constant 0 : index
    %c55_127 = arith.constant 55 : index
    %c0_128 = arith.constant 0 : index
    %c0_129 = arith.constant 0 : index
    %165 = vector.load %arg5[%c0_126, %c55_127, %c0_128, %c0_129] : memref<1x72x15x60xf32, #tpu.memory_space<vmem>>, vector<1x1x15x60xf32>
    %166 = vector.shape_cast %165 : vector<1x1x15x60xf32> to vector<15x60xf32>
    %167 = vector.broadcast %164 : vector<1x60xf32> to vector<15x60xf32>
    %168 = arith.mulf %167, %166 : vector<15x60xf32>
    %169 = arith.addf %148, %168 : vector<15x60xf32>
    %c0_130 = arith.constant 0 : index
    %c38_131 = arith.constant 38 : index
    %c0_132 = arith.constant 0 : index
    %c0_133 = arith.constant 0 : index
    %170 = vector.load %arg5[%c0_130, %c38_131, %c0_132, %c0_133] : memref<1x72x15x60xf32, #tpu.memory_space<vmem>>, vector<1x1x15x60xf32>
    %171 = vector.shape_cast %170 : vector<1x1x15x60xf32> to vector<15x60xf32>
    %172 = vector.broadcast %164 : vector<1x60xf32> to vector<15x60xf32>
    %173 = arith.mulf %172, %171 : vector<15x60xf32>
    %174 = arith.addf %153, %173 : vector<15x60xf32>
    %c0_134 = arith.constant 0 : index
    %c22_135 = arith.constant 22 : index
    %c0_136 = arith.constant 0 : index
    %c0_137 = arith.constant 0 : index
    %175 = vector.load %arg5[%c0_134, %c22_135, %c0_136, %c0_137] : memref<1x72x15x60xf32, #tpu.memory_space<vmem>>, vector<1x1x15x60xf32>
    %176 = vector.shape_cast %175 : vector<1x1x15x60xf32> to vector<15x60xf32>
    %177 = vector.broadcast %164 : vector<1x60xf32> to vector<15x60xf32>
    %178 = arith.mulf %177, %176 : vector<15x60xf32>
    %179 = arith.addf %158, %178 : vector<15x60xf32>
    %c0_138 = arith.constant 0 : index
    %c5_139 = arith.constant 5 : index
    %c0_140 = arith.constant 0 : index
    %c0_141 = arith.constant 0 : index
    %180 = vector.load %arg5[%c0_138, %c5_139, %c0_140, %c0_141] : memref<1x72x15x60xf32, #tpu.memory_space<vmem>>, vector<1x1x15x60xf32>
    %181 = vector.shape_cast %180 : vector<1x1x15x60xf32> to vector<15x60xf32>
    %182 = vector.broadcast %164 : vector<1x60xf32> to vector<15x60xf32>
    %183 = arith.mulf %182, %181 : vector<15x60xf32>
    %184 = arith.addf %163, %183 : vector<15x60xf32>
    %c9 = arith.constant 9 : index
    %c0_142 = arith.constant 0 : index
    %185 = vector.load %arg1[%c9, %c0_142] : memref<45x60xf32, #tpu.memory_space<vmem>>, vector<1x60xf32>
    %c0_143 = arith.constant 0 : index
    %c38_144 = arith.constant 38 : index
    %c0_145 = arith.constant 0 : index
    %c0_146 = arith.constant 0 : index
    %186 = vector.load %arg5[%c0_143, %c38_144, %c0_145, %c0_146] : memref<1x72x15x60xf32, #tpu.memory_space<vmem>>, vector<1x1x15x60xf32>
    %187 = vector.shape_cast %186 : vector<1x1x15x60xf32> to vector<15x60xf32>
    %188 = vector.broadcast %185 : vector<1x60xf32> to vector<15x60xf32>
    %189 = arith.mulf %188, %187 : vector<15x60xf32>
    %190 = arith.addf %169, %189 : vector<15x60xf32>
    %c0_147 = arith.constant 0 : index
    %c56_148 = arith.constant 56 : index
    %c0_149 = arith.constant 0 : index
    %c0_150 = arith.constant 0 : index
    %191 = vector.load %arg5[%c0_147, %c56_148, %c0_149, %c0_150] : memref<1x72x15x60xf32, #tpu.memory_space<vmem>>, vector<1x1x15x60xf32>
    %192 = vector.shape_cast %191 : vector<1x1x15x60xf32> to vector<15x60xf32>
    %193 = vector.broadcast %185 : vector<1x60xf32> to vector<15x60xf32>
    %194 = arith.mulf %193, %192 : vector<15x60xf32>
    %195 = arith.addf %174, %194 : vector<15x60xf32>
    %c0_151 = arith.constant 0 : index
    %c5_152 = arith.constant 5 : index
    %c0_153 = arith.constant 0 : index
    %c0_154 = arith.constant 0 : index
    %196 = vector.load %arg5[%c0_151, %c5_152, %c0_153, %c0_154] : memref<1x72x15x60xf32, #tpu.memory_space<vmem>>, vector<1x1x15x60xf32>
    %197 = vector.shape_cast %196 : vector<1x1x15x60xf32> to vector<15x60xf32>
    %198 = vector.broadcast %185 : vector<1x60xf32> to vector<15x60xf32>
    %199 = arith.mulf %198, %197 : vector<15x60xf32>
    %200 = arith.addf %179, %199 : vector<15x60xf32>
    %c0_155 = arith.constant 0 : index
    %c23 = arith.constant 23 : index
    %c0_156 = arith.constant 0 : index
    %c0_157 = arith.constant 0 : index
    %201 = vector.load %arg5[%c0_155, %c23, %c0_156, %c0_157] : memref<1x72x15x60xf32, #tpu.memory_space<vmem>>, vector<1x1x15x60xf32>
    %202 = vector.shape_cast %201 : vector<1x1x15x60xf32> to vector<15x60xf32>
    %203 = vector.broadcast %185 : vector<1x60xf32> to vector<15x60xf32>
    %204 = arith.mulf %203, %202 : vector<15x60xf32>
    %205 = arith.addf %184, %204 : vector<15x60xf32>
    %c10 = arith.constant 10 : index
    %c0_158 = arith.constant 0 : index
    %206 = vector.load %arg1[%c10, %c0_158] : memref<45x60xf32, #tpu.memory_space<vmem>>, vector<1x60xf32>
    %c0_159 = arith.constant 0 : index
    %c3_160 = arith.constant 3 : index
    %c0_161 = arith.constant 0 : index
    %c0_162 = arith.constant 0 : index
    %207 = vector.load %arg5[%c0_159, %c3_160, %c0_161, %c0_162] : memref<1x72x15x60xf32, #tpu.memory_space<vmem>>, vector<1x1x15x60xf32>
    %208 = vector.shape_cast %207 : vector<1x1x15x60xf32> to vector<15x60xf32>
    %209 = vector.broadcast %206 : vector<1x60xf32> to vector<15x60xf32>
    %210 = arith.mulf %209, %208 : vector<15x60xf32>
    %211 = arith.addf %190, %210 : vector<15x60xf32>
    %c0_163 = arith.constant 0 : index
    %c21_164 = arith.constant 21 : index
    %c0_165 = arith.constant 0 : index
    %c0_166 = arith.constant 0 : index
    %212 = vector.load %arg5[%c0_163, %c21_164, %c0_165, %c0_166] : memref<1x72x15x60xf32, #tpu.memory_space<vmem>>, vector<1x1x15x60xf32>
    %213 = vector.shape_cast %212 : vector<1x1x15x60xf32> to vector<15x60xf32>
    %214 = vector.broadcast %206 : vector<1x60xf32> to vector<15x60xf32>
    %215 = arith.mulf %214, %213 : vector<15x60xf32>
    %216 = arith.addf %195, %215 : vector<15x60xf32>
    %c0_167 = arith.constant 0 : index
    %c39 = arith.constant 39 : index
    %c0_168 = arith.constant 0 : index
    %c0_169 = arith.constant 0 : index
    %217 = vector.load %arg5[%c0_167, %c39, %c0_168, %c0_169] : memref<1x72x15x60xf32, #tpu.memory_space<vmem>>, vector<1x1x15x60xf32>
    %218 = vector.shape_cast %217 : vector<1x1x15x60xf32> to vector<15x60xf32>
    %219 = vector.broadcast %206 : vector<1x60xf32> to vector<15x60xf32>
    %220 = arith.mulf %219, %218 : vector<15x60xf32>
    %221 = arith.addf %200, %220 : vector<15x60xf32>
    %c0_170 = arith.constant 0 : index
    %c57 = arith.constant 57 : index
    %c0_171 = arith.constant 0 : index
    %c0_172 = arith.constant 0 : index
    %222 = vector.load %arg5[%c0_170, %c57, %c0_171, %c0_172] : memref<1x72x15x60xf32, #tpu.memory_space<vmem>>, vector<1x1x15x60xf32>
    %223 = vector.shape_cast %222 : vector<1x1x15x60xf32> to vector<15x60xf32>
    %224 = vector.broadcast %206 : vector<1x60xf32> to vector<15x60xf32>
    %225 = arith.mulf %224, %223 : vector<15x60xf32>
    %226 = arith.addf %205, %225 : vector<15x60xf32>
    %c11 = arith.constant 11 : index
    %c0_173 = arith.constant 0 : index
    %227 = vector.load %arg1[%c11, %c0_173] : memref<45x60xf32, #tpu.memory_space<vmem>>, vector<1x60xf32>
    %c0_174 = arith.constant 0 : index
    %c21_175 = arith.constant 21 : index
    %c0_176 = arith.constant 0 : index
    %c0_177 = arith.constant 0 : index
    %228 = vector.load %arg5[%c0_174, %c21_175, %c0_176, %c0_177] : memref<1x72x15x60xf32, #tpu.memory_space<vmem>>, vector<1x1x15x60xf32>
    %229 = vector.shape_cast %228 : vector<1x1x15x60xf32> to vector<15x60xf32>
    %230 = vector.broadcast %227 : vector<1x60xf32> to vector<15x60xf32>
    %231 = arith.mulf %230, %229 : vector<15x60xf32>
    %232 = arith.addf %211, %231 : vector<15x60xf32>
    %c0_178 = arith.constant 0 : index
    %c4_179 = arith.constant 4 : index
    %c0_180 = arith.constant 0 : index
    %c0_181 = arith.constant 0 : index
    %233 = vector.load %arg5[%c0_178, %c4_179, %c0_180, %c0_181] : memref<1x72x15x60xf32, #tpu.memory_space<vmem>>, vector<1x1x15x60xf32>
    %234 = vector.shape_cast %233 : vector<1x1x15x60xf32> to vector<15x60xf32>
    %235 = vector.broadcast %227 : vector<1x60xf32> to vector<15x60xf32>
    %236 = arith.mulf %235, %234 : vector<15x60xf32>
    %237 = arith.addf %216, %236 : vector<15x60xf32>
    %c0_182 = arith.constant 0 : index
    %c57_183 = arith.constant 57 : index
    %c0_184 = arith.constant 0 : index
    %c0_185 = arith.constant 0 : index
    %238 = vector.load %arg5[%c0_182, %c57_183, %c0_184, %c0_185] : memref<1x72x15x60xf32, #tpu.memory_space<vmem>>, vector<1x1x15x60xf32>
    %239 = vector.shape_cast %238 : vector<1x1x15x60xf32> to vector<15x60xf32>
    %240 = vector.broadcast %227 : vector<1x60xf32> to vector<15x60xf32>
    %241 = arith.mulf %240, %239 : vector<15x60xf32>
    %242 = arith.addf %221, %241 : vector<15x60xf32>
    %c0_186 = arith.constant 0 : index
    %c40 = arith.constant 40 : index
    %c0_187 = arith.constant 0 : index
    %c0_188 = arith.constant 0 : index
    %243 = vector.load %arg5[%c0_186, %c40, %c0_187, %c0_188] : memref<1x72x15x60xf32, #tpu.memory_space<vmem>>, vector<1x1x15x60xf32>
    %244 = vector.shape_cast %243 : vector<1x1x15x60xf32> to vector<15x60xf32>
    %245 = vector.broadcast %227 : vector<1x60xf32> to vector<15x60xf32>
    %246 = arith.mulf %245, %244 : vector<15x60xf32>
    %247 = arith.addf %226, %246 : vector<15x60xf32>
    %c12 = arith.constant 12 : index
    %c0_189 = arith.constant 0 : index
    %248 = vector.load %arg1[%c12, %c0_189] : memref<45x60xf32, #tpu.memory_space<vmem>>, vector<1x60xf32>
    %c0_190 = arith.constant 0 : index
    %c4_191 = arith.constant 4 : index
    %c0_192 = arith.constant 0 : index
    %c0_193 = arith.constant 0 : index
    %249 = vector.load %arg5[%c0_190, %c4_191, %c0_192, %c0_193] : memref<1x72x15x60xf32, #tpu.memory_space<vmem>>, vector<1x1x15x60xf32>
    %250 = vector.shape_cast %249 : vector<1x1x15x60xf32> to vector<15x60xf32>
    %251 = vector.broadcast %248 : vector<1x60xf32> to vector<15x60xf32>
    %252 = arith.mulf %251, %250 : vector<15x60xf32>
    %253 = arith.addf %232, %252 : vector<15x60xf32>
    %c0_194 = arith.constant 0 : index
    %c22_195 = arith.constant 22 : index
    %c0_196 = arith.constant 0 : index
    %c0_197 = arith.constant 0 : index
    %254 = vector.load %arg5[%c0_194, %c22_195, %c0_196, %c0_197] : memref<1x72x15x60xf32, #tpu.memory_space<vmem>>, vector<1x1x15x60xf32>
    %255 = vector.shape_cast %254 : vector<1x1x15x60xf32> to vector<15x60xf32>
    %256 = vector.broadcast %248 : vector<1x60xf32> to vector<15x60xf32>
    %257 = arith.mulf %256, %255 : vector<15x60xf32>
    %258 = arith.addf %237, %257 : vector<15x60xf32>
    %c0_198 = arith.constant 0 : index
    %c40_199 = arith.constant 40 : index
    %c0_200 = arith.constant 0 : index
    %c0_201 = arith.constant 0 : index
    %259 = vector.load %arg5[%c0_198, %c40_199, %c0_200, %c0_201] : memref<1x72x15x60xf32, #tpu.memory_space<vmem>>, vector<1x1x15x60xf32>
    %260 = vector.shape_cast %259 : vector<1x1x15x60xf32> to vector<15x60xf32>
    %261 = vector.broadcast %248 : vector<1x60xf32> to vector<15x60xf32>
    %262 = arith.mulf %261, %260 : vector<15x60xf32>
    %263 = arith.addf %242, %262 : vector<15x60xf32>
    %c0_202 = arith.constant 0 : index
    %c58 = arith.constant 58 : index
    %c0_203 = arith.constant 0 : index
    %c0_204 = arith.constant 0 : index
    %264 = vector.load %arg5[%c0_202, %c58, %c0_203, %c0_204] : memref<1x72x15x60xf32, #tpu.memory_space<vmem>>, vector<1x1x15x60xf32>
    %265 = vector.shape_cast %264 : vector<1x1x15x60xf32> to vector<15x60xf32>
    %266 = vector.broadcast %248 : vector<1x60xf32> to vector<15x60xf32>
    %267 = arith.mulf %266, %265 : vector<15x60xf32>
    %268 = arith.addf %247, %267 : vector<15x60xf32>
    %c13 = arith.constant 13 : index
    %c0_205 = arith.constant 0 : index
    %269 = vector.load %arg1[%c13, %c0_205] : memref<45x60xf32, #tpu.memory_space<vmem>>, vector<1x60xf32>
    %c0_206 = arith.constant 0 : index
    %c22_207 = arith.constant 22 : index
    %c0_208 = arith.constant 0 : index
    %c0_209 = arith.constant 0 : index
    %270 = vector.load %arg5[%c0_206, %c22_207, %c0_208, %c0_209] : memref<1x72x15x60xf32, #tpu.memory_space<vmem>>, vector<1x1x15x60xf32>
    %271 = vector.shape_cast %270 : vector<1x1x15x60xf32> to vector<15x60xf32>
    %272 = vector.broadcast %269 : vector<1x60xf32> to vector<15x60xf32>
    %273 = arith.mulf %272, %271 : vector<15x60xf32>
    %274 = arith.addf %253, %273 : vector<15x60xf32>
    %c0_210 = arith.constant 0 : index
    %c5_211 = arith.constant 5 : index
    %c0_212 = arith.constant 0 : index
    %c0_213 = arith.constant 0 : index
    %275 = vector.load %arg5[%c0_210, %c5_211, %c0_212, %c0_213] : memref<1x72x15x60xf32, #tpu.memory_space<vmem>>, vector<1x1x15x60xf32>
    %276 = vector.shape_cast %275 : vector<1x1x15x60xf32> to vector<15x60xf32>
    %277 = vector.broadcast %269 : vector<1x60xf32> to vector<15x60xf32>
    %278 = arith.mulf %277, %276 : vector<15x60xf32>
    %279 = arith.addf %258, %278 : vector<15x60xf32>
    %c0_214 = arith.constant 0 : index
    %c58_215 = arith.constant 58 : index
    %c0_216 = arith.constant 0 : index
    %c0_217 = arith.constant 0 : index
    %280 = vector.load %arg5[%c0_214, %c58_215, %c0_216, %c0_217] : memref<1x72x15x60xf32, #tpu.memory_space<vmem>>, vector<1x1x15x60xf32>
    %281 = vector.shape_cast %280 : vector<1x1x15x60xf32> to vector<15x60xf32>
    %282 = vector.broadcast %269 : vector<1x60xf32> to vector<15x60xf32>
    %283 = arith.mulf %282, %281 : vector<15x60xf32>
    %284 = arith.addf %263, %283 : vector<15x60xf32>
    %c0_218 = arith.constant 0 : index
    %c41 = arith.constant 41 : index
    %c0_219 = arith.constant 0 : index
    %c0_220 = arith.constant 0 : index
    %285 = vector.load %arg5[%c0_218, %c41, %c0_219, %c0_220] : memref<1x72x15x60xf32, #tpu.memory_space<vmem>>, vector<1x1x15x60xf32>
    %286 = vector.shape_cast %285 : vector<1x1x15x60xf32> to vector<15x60xf32>
    %287 = vector.broadcast %269 : vector<1x60xf32> to vector<15x60xf32>
    %288 = arith.mulf %287, %286 : vector<15x60xf32>
    %289 = arith.addf %268, %288 : vector<15x60xf32>
    %c14 = arith.constant 14 : index
    %c0_221 = arith.constant 0 : index
    %290 = vector.load %arg1[%c14, %c0_221] : memref<45x60xf32, #tpu.memory_space<vmem>>, vector<1x60xf32>
    %c0_222 = arith.constant 0 : index
    %c5_223 = arith.constant 5 : index
    %c0_224 = arith.constant 0 : index
    %c0_225 = arith.constant 0 : index
    %291 = vector.load %arg5[%c0_222, %c5_223, %c0_224, %c0_225] : memref<1x72x15x60xf32, #tpu.memory_space<vmem>>, vector<1x1x15x60xf32>
    %292 = vector.shape_cast %291 : vector<1x1x15x60xf32> to vector<15x60xf32>
    %293 = vector.broadcast %290 : vector<1x60xf32> to vector<15x60xf32>
    %294 = arith.mulf %293, %292 : vector<15x60xf32>
    %295 = arith.addf %274, %294 : vector<15x60xf32>
    %c0_226 = arith.constant 0 : index
    %c23_227 = arith.constant 23 : index
    %c0_228 = arith.constant 0 : index
    %c0_229 = arith.constant 0 : index
    %296 = vector.load %arg5[%c0_226, %c23_227, %c0_228, %c0_229] : memref<1x72x15x60xf32, #tpu.memory_space<vmem>>, vector<1x1x15x60xf32>
    %297 = vector.shape_cast %296 : vector<1x1x15x60xf32> to vector<15x60xf32>
    %298 = vector.broadcast %290 : vector<1x60xf32> to vector<15x60xf32>
    %299 = arith.mulf %298, %297 : vector<15x60xf32>
    %300 = arith.addf %279, %299 : vector<15x60xf32>
    %c0_230 = arith.constant 0 : index
    %c41_231 = arith.constant 41 : index
    %c0_232 = arith.constant 0 : index
    %c0_233 = arith.constant 0 : index
    %301 = vector.load %arg5[%c0_230, %c41_231, %c0_232, %c0_233] : memref<1x72x15x60xf32, #tpu.memory_space<vmem>>, vector<1x1x15x60xf32>
    %302 = vector.shape_cast %301 : vector<1x1x15x60xf32> to vector<15x60xf32>
    %303 = vector.broadcast %290 : vector<1x60xf32> to vector<15x60xf32>
    %304 = arith.mulf %303, %302 : vector<15x60xf32>
    %305 = arith.addf %284, %304 : vector<15x60xf32>
    %c0_234 = arith.constant 0 : index
    %c59 = arith.constant 59 : index
    %c0_235 = arith.constant 0 : index
    %c0_236 = arith.constant 0 : index
    %306 = vector.load %arg5[%c0_234, %c59, %c0_235, %c0_236] : memref<1x72x15x60xf32, #tpu.memory_space<vmem>>, vector<1x1x15x60xf32>
    %307 = vector.shape_cast %306 : vector<1x1x15x60xf32> to vector<15x60xf32>
    %308 = vector.broadcast %290 : vector<1x60xf32> to vector<15x60xf32>
    %309 = arith.mulf %308, %307 : vector<15x60xf32>
    %310 = arith.addf %289, %309 : vector<15x60xf32>
    %c15 = arith.constant 15 : index
    %c0_237 = arith.constant 0 : index
    %311 = vector.load %arg1[%c15, %c0_237] : memref<45x60xf32, #tpu.memory_space<vmem>>, vector<1x60xf32>
    %c0_238 = arith.constant 0 : index
    %c6_239 = arith.constant 6 : index
    %c0_240 = arith.constant 0 : index
    %c0_241 = arith.constant 0 : index
    %312 = vector.load %arg5[%c0_238, %c6_239, %c0_240, %c0_241] : memref<1x72x15x60xf32, #tpu.memory_space<vmem>>, vector<1x1x15x60xf32>
    %313 = vector.shape_cast %312 : vector<1x1x15x60xf32> to vector<15x60xf32>
    %314 = vector.broadcast %311 : vector<1x60xf32> to vector<15x60xf32>
    %315 = arith.mulf %314, %313 : vector<15x60xf32>
    %316 = arith.addf %295, %315 : vector<15x60xf32>
    %c0_242 = arith.constant 0 : index
    %c24 = arith.constant 24 : index
    %c0_243 = arith.constant 0 : index
    %c0_244 = arith.constant 0 : index
    %317 = vector.load %arg5[%c0_242, %c24, %c0_243, %c0_244] : memref<1x72x15x60xf32, #tpu.memory_space<vmem>>, vector<1x1x15x60xf32>
    %318 = vector.shape_cast %317 : vector<1x1x15x60xf32> to vector<15x60xf32>
    %319 = vector.broadcast %311 : vector<1x60xf32> to vector<15x60xf32>
    %320 = arith.mulf %319, %318 : vector<15x60xf32>
    %321 = arith.addf %300, %320 : vector<15x60xf32>
    %c0_245 = arith.constant 0 : index
    %c42 = arith.constant 42 : index
    %c0_246 = arith.constant 0 : index
    %c0_247 = arith.constant 0 : index
    %322 = vector.load %arg5[%c0_245, %c42, %c0_246, %c0_247] : memref<1x72x15x60xf32, #tpu.memory_space<vmem>>, vector<1x1x15x60xf32>
    %323 = vector.shape_cast %322 : vector<1x1x15x60xf32> to vector<15x60xf32>
    %324 = vector.broadcast %311 : vector<1x60xf32> to vector<15x60xf32>
    %325 = arith.mulf %324, %323 : vector<15x60xf32>
    %326 = arith.addf %305, %325 : vector<15x60xf32>
    %c0_248 = arith.constant 0 : index
    %c60 = arith.constant 60 : index
    %c0_249 = arith.constant 0 : index
    %c0_250 = arith.constant 0 : index
    %327 = vector.load %arg5[%c0_248, %c60, %c0_249, %c0_250] : memref<1x72x15x60xf32, #tpu.memory_space<vmem>>, vector<1x1x15x60xf32>
    %328 = vector.shape_cast %327 : vector<1x1x15x60xf32> to vector<15x60xf32>
    %329 = vector.broadcast %311 : vector<1x60xf32> to vector<15x60xf32>
    %330 = arith.mulf %329, %328 : vector<15x60xf32>
    %331 = arith.addf %310, %330 : vector<15x60xf32>
    %c16 = arith.constant 16 : index
    %c0_251 = arith.constant 0 : index
    %332 = vector.load %arg1[%c16, %c0_251] : memref<45x60xf32, #tpu.memory_space<vmem>>, vector<1x60xf32>
    %c0_252 = arith.constant 0 : index
    %c24_253 = arith.constant 24 : index
    %c0_254 = arith.constant 0 : index
    %c0_255 = arith.constant 0 : index
    %333 = vector.load %arg5[%c0_252, %c24_253, %c0_254, %c0_255] : memref<1x72x15x60xf32, #tpu.memory_space<vmem>>, vector<1x1x15x60xf32>
    %334 = vector.shape_cast %333 : vector<1x1x15x60xf32> to vector<15x60xf32>
    %335 = vector.broadcast %332 : vector<1x60xf32> to vector<15x60xf32>
    %336 = arith.mulf %335, %334 : vector<15x60xf32>
    %337 = arith.addf %316, %336 : vector<15x60xf32>
    %c0_256 = arith.constant 0 : index
    %c7_257 = arith.constant 7 : index
    %c0_258 = arith.constant 0 : index
    %c0_259 = arith.constant 0 : index
    %338 = vector.load %arg5[%c0_256, %c7_257, %c0_258, %c0_259] : memref<1x72x15x60xf32, #tpu.memory_space<vmem>>, vector<1x1x15x60xf32>
    %339 = vector.shape_cast %338 : vector<1x1x15x60xf32> to vector<15x60xf32>
    %340 = vector.broadcast %332 : vector<1x60xf32> to vector<15x60xf32>
    %341 = arith.mulf %340, %339 : vector<15x60xf32>
    %342 = arith.addf %321, %341 : vector<15x60xf32>
    %c0_260 = arith.constant 0 : index
    %c60_261 = arith.constant 60 : index
    %c0_262 = arith.constant 0 : index
    %c0_263 = arith.constant 0 : index
    %343 = vector.load %arg5[%c0_260, %c60_261, %c0_262, %c0_263] : memref<1x72x15x60xf32, #tpu.memory_space<vmem>>, vector<1x1x15x60xf32>
    %344 = vector.shape_cast %343 : vector<1x1x15x60xf32> to vector<15x60xf32>
    %345 = vector.broadcast %332 : vector<1x60xf32> to vector<15x60xf32>
    %346 = arith.mulf %345, %344 : vector<15x60xf32>
    %347 = arith.addf %326, %346 : vector<15x60xf32>
    %c0_264 = arith.constant 0 : index
    %c43 = arith.constant 43 : index
    %c0_265 = arith.constant 0 : index
    %c0_266 = arith.constant 0 : index
    %348 = vector.load %arg5[%c0_264, %c43, %c0_265, %c0_266] : memref<1x72x15x60xf32, #tpu.memory_space<vmem>>, vector<1x1x15x60xf32>
    %349 = vector.shape_cast %348 : vector<1x1x15x60xf32> to vector<15x60xf32>
    %350 = vector.broadcast %332 : vector<1x60xf32> to vector<15x60xf32>
    %351 = arith.mulf %350, %349 : vector<15x60xf32>
    %352 = arith.addf %331, %351 : vector<15x60xf32>
    %c17 = arith.constant 17 : index
    %c0_267 = arith.constant 0 : index
    %353 = vector.load %arg1[%c17, %c0_267] : memref<45x60xf32, #tpu.memory_space<vmem>>, vector<1x60xf32>
    %c0_268 = arith.constant 0 : index
    %c7_269 = arith.constant 7 : index
    %c0_270 = arith.constant 0 : index
    %c0_271 = arith.constant 0 : index
    %354 = vector.load %arg5[%c0_268, %c7_269, %c0_270, %c0_271] : memref<1x72x15x60xf32, #tpu.memory_space<vmem>>, vector<1x1x15x60xf32>
    %355 = vector.shape_cast %354 : vector<1x1x15x60xf32> to vector<15x60xf32>
    %356 = vector.broadcast %353 : vector<1x60xf32> to vector<15x60xf32>
    %357 = arith.mulf %356, %355 : vector<15x60xf32>
    %358 = arith.addf %337, %357 : vector<15x60xf32>
    %c0_272 = arith.constant 0 : index
    %c25 = arith.constant 25 : index
    %c0_273 = arith.constant 0 : index
    %c0_274 = arith.constant 0 : index
    %359 = vector.load %arg5[%c0_272, %c25, %c0_273, %c0_274] : memref<1x72x15x60xf32, #tpu.memory_space<vmem>>, vector<1x1x15x60xf32>
    %360 = vector.shape_cast %359 : vector<1x1x15x60xf32> to vector<15x60xf32>
    %361 = vector.broadcast %353 : vector<1x60xf32> to vector<15x60xf32>
    %362 = arith.mulf %361, %360 : vector<15x60xf32>
    %363 = arith.addf %342, %362 : vector<15x60xf32>
    %c0_275 = arith.constant 0 : index
    %c43_276 = arith.constant 43 : index
    %c0_277 = arith.constant 0 : index
    %c0_278 = arith.constant 0 : index
    %364 = vector.load %arg5[%c0_275, %c43_276, %c0_277, %c0_278] : memref<1x72x15x60xf32, #tpu.memory_space<vmem>>, vector<1x1x15x60xf32>
    %365 = vector.shape_cast %364 : vector<1x1x15x60xf32> to vector<15x60xf32>
    %366 = vector.broadcast %353 : vector<1x60xf32> to vector<15x60xf32>
    %367 = arith.mulf %366, %365 : vector<15x60xf32>
    %368 = arith.addf %347, %367 : vector<15x60xf32>
    %c0_279 = arith.constant 0 : index
    %c61 = arith.constant 61 : index
    %c0_280 = arith.constant 0 : index
    %c0_281 = arith.constant 0 : index
    %369 = vector.load %arg5[%c0_279, %c61, %c0_280, %c0_281] : memref<1x72x15x60xf32, #tpu.memory_space<vmem>>, vector<1x1x15x60xf32>
    %370 = vector.shape_cast %369 : vector<1x1x15x60xf32> to vector<15x60xf32>
    %371 = vector.broadcast %353 : vector<1x60xf32> to vector<15x60xf32>
    %372 = arith.mulf %371, %370 : vector<15x60xf32>
    %373 = arith.addf %352, %372 : vector<15x60xf32>
    %c18_282 = arith.constant 18 : index
    %c0_283 = arith.constant 0 : index
    %374 = vector.load %arg1[%c18_282, %c0_283] : memref<45x60xf32, #tpu.memory_space<vmem>>, vector<1x60xf32>
    %c0_284 = arith.constant 0 : index
    %c25_285 = arith.constant 25 : index
    %c0_286 = arith.constant 0 : index
    %c0_287 = arith.constant 0 : index
    %375 = vector.load %arg5[%c0_284, %c25_285, %c0_286, %c0_287] : memref<1x72x15x60xf32, #tpu.memory_space<vmem>>, vector<1x1x15x60xf32>
    %376 = vector.shape_cast %375 : vector<1x1x15x60xf32> to vector<15x60xf32>
    %377 = vector.broadcast %374 : vector<1x60xf32> to vector<15x60xf32>
    %378 = arith.mulf %377, %376 : vector<15x60xf32>
    %379 = arith.addf %358, %378 : vector<15x60xf32>
    %c0_288 = arith.constant 0 : index
    %c8_289 = arith.constant 8 : index
    %c0_290 = arith.constant 0 : index
    %c0_291 = arith.constant 0 : index
    %380 = vector.load %arg5[%c0_288, %c8_289, %c0_290, %c0_291] : memref<1x72x15x60xf32, #tpu.memory_space<vmem>>, vector<1x1x15x60xf32>
    %381 = vector.shape_cast %380 : vector<1x1x15x60xf32> to vector<15x60xf32>
    %382 = vector.broadcast %374 : vector<1x60xf32> to vector<15x60xf32>
    %383 = arith.mulf %382, %381 : vector<15x60xf32>
    %384 = arith.addf %363, %383 : vector<15x60xf32>
    %c0_292 = arith.constant 0 : index
    %c61_293 = arith.constant 61 : index
    %c0_294 = arith.constant 0 : index
    %c0_295 = arith.constant 0 : index
    %385 = vector.load %arg5[%c0_292, %c61_293, %c0_294, %c0_295] : memref<1x72x15x60xf32, #tpu.memory_space<vmem>>, vector<1x1x15x60xf32>
    %386 = vector.shape_cast %385 : vector<1x1x15x60xf32> to vector<15x60xf32>
    %387 = vector.broadcast %374 : vector<1x60xf32> to vector<15x60xf32>
    %388 = arith.mulf %387, %386 : vector<15x60xf32>
    %389 = arith.addf %368, %388 : vector<15x60xf32>
    %c0_296 = arith.constant 0 : index
    %c44 = arith.constant 44 : index
    %c0_297 = arith.constant 0 : index
    %c0_298 = arith.constant 0 : index
    %390 = vector.load %arg5[%c0_296, %c44, %c0_297, %c0_298] : memref<1x72x15x60xf32, #tpu.memory_space<vmem>>, vector<1x1x15x60xf32>
    %391 = vector.shape_cast %390 : vector<1x1x15x60xf32> to vector<15x60xf32>
    %392 = vector.broadcast %374 : vector<1x60xf32> to vector<15x60xf32>
    %393 = arith.mulf %392, %391 : vector<15x60xf32>
    %394 = arith.addf %373, %393 : vector<15x60xf32>
    %c19_299 = arith.constant 19 : index
    %c0_300 = arith.constant 0 : index
    %395 = vector.load %arg1[%c19_299, %c0_300] : memref<45x60xf32, #tpu.memory_space<vmem>>, vector<1x60xf32>
    %c0_301 = arith.constant 0 : index
    %c8_302 = arith.constant 8 : index
    %c0_303 = arith.constant 0 : index
    %c0_304 = arith.constant 0 : index
    %396 = vector.load %arg5[%c0_301, %c8_302, %c0_303, %c0_304] : memref<1x72x15x60xf32, #tpu.memory_space<vmem>>, vector<1x1x15x60xf32>
    %397 = vector.shape_cast %396 : vector<1x1x15x60xf32> to vector<15x60xf32>
    %398 = vector.broadcast %395 : vector<1x60xf32> to vector<15x60xf32>
    %399 = arith.mulf %398, %397 : vector<15x60xf32>
    %400 = arith.addf %379, %399 : vector<15x60xf32>
    %c0_305 = arith.constant 0 : index
    %c26 = arith.constant 26 : index
    %c0_306 = arith.constant 0 : index
    %c0_307 = arith.constant 0 : index
    %401 = vector.load %arg5[%c0_305, %c26, %c0_306, %c0_307] : memref<1x72x15x60xf32, #tpu.memory_space<vmem>>, vector<1x1x15x60xf32>
    %402 = vector.shape_cast %401 : vector<1x1x15x60xf32> to vector<15x60xf32>
    %403 = vector.broadcast %395 : vector<1x60xf32> to vector<15x60xf32>
    %404 = arith.mulf %403, %402 : vector<15x60xf32>
    %405 = arith.addf %384, %404 : vector<15x60xf32>
    %c0_308 = arith.constant 0 : index
    %c44_309 = arith.constant 44 : index
    %c0_310 = arith.constant 0 : index
    %c0_311 = arith.constant 0 : index
    %406 = vector.load %arg5[%c0_308, %c44_309, %c0_310, %c0_311] : memref<1x72x15x60xf32, #tpu.memory_space<vmem>>, vector<1x1x15x60xf32>
    %407 = vector.shape_cast %406 : vector<1x1x15x60xf32> to vector<15x60xf32>
    %408 = vector.broadcast %395 : vector<1x60xf32> to vector<15x60xf32>
    %409 = arith.mulf %408, %407 : vector<15x60xf32>
    %410 = arith.addf %389, %409 : vector<15x60xf32>
    %c0_312 = arith.constant 0 : index
    %c62 = arith.constant 62 : index
    %c0_313 = arith.constant 0 : index
    %c0_314 = arith.constant 0 : index
    %411 = vector.load %arg5[%c0_312, %c62, %c0_313, %c0_314] : memref<1x72x15x60xf32, #tpu.memory_space<vmem>>, vector<1x1x15x60xf32>
    %412 = vector.shape_cast %411 : vector<1x1x15x60xf32> to vector<15x60xf32>
    %413 = vector.broadcast %395 : vector<1x60xf32> to vector<15x60xf32>
    %414 = arith.mulf %413, %412 : vector<15x60xf32>
    %415 = arith.addf %394, %414 : vector<15x60xf32>
    %c20_315 = arith.constant 20 : index
    %c0_316 = arith.constant 0 : index
    %416 = vector.load %arg1[%c20_315, %c0_316] : memref<45x60xf32, #tpu.memory_space<vmem>>, vector<1x60xf32>
    %c0_317 = arith.constant 0 : index
    %c42_318 = arith.constant 42 : index
    %c0_319 = arith.constant 0 : index
    %c0_320 = arith.constant 0 : index
    %417 = vector.load %arg5[%c0_317, %c42_318, %c0_319, %c0_320] : memref<1x72x15x60xf32, #tpu.memory_space<vmem>>, vector<1x1x15x60xf32>
    %418 = vector.shape_cast %417 : vector<1x1x15x60xf32> to vector<15x60xf32>
    %419 = vector.broadcast %416 : vector<1x60xf32> to vector<15x60xf32>
    %420 = arith.mulf %419, %418 : vector<15x60xf32>
    %421 = arith.addf %400, %420 : vector<15x60xf32>
    %c0_321 = arith.constant 0 : index
    %c60_322 = arith.constant 60 : index
    %c0_323 = arith.constant 0 : index
    %c0_324 = arith.constant 0 : index
    %422 = vector.load %arg5[%c0_321, %c60_322, %c0_323, %c0_324] : memref<1x72x15x60xf32, #tpu.memory_space<vmem>>, vector<1x1x15x60xf32>
    %423 = vector.shape_cast %422 : vector<1x1x15x60xf32> to vector<15x60xf32>
    %424 = vector.broadcast %416 : vector<1x60xf32> to vector<15x60xf32>
    %425 = arith.mulf %424, %423 : vector<15x60xf32>
    %426 = arith.addf %405, %425 : vector<15x60xf32>
    %c0_325 = arith.constant 0 : index
    %c9_326 = arith.constant 9 : index
    %c0_327 = arith.constant 0 : index
    %c0_328 = arith.constant 0 : index
    %427 = vector.load %arg5[%c0_325, %c9_326, %c0_327, %c0_328] : memref<1x72x15x60xf32, #tpu.memory_space<vmem>>, vector<1x1x15x60xf32>
    %428 = vector.shape_cast %427 : vector<1x1x15x60xf32> to vector<15x60xf32>
    %429 = vector.broadcast %416 : vector<1x60xf32> to vector<15x60xf32>
    %430 = arith.mulf %429, %428 : vector<15x60xf32>
    %431 = arith.addf %410, %430 : vector<15x60xf32>
    %c0_329 = arith.constant 0 : index
    %c27 = arith.constant 27 : index
    %c0_330 = arith.constant 0 : index
    %c0_331 = arith.constant 0 : index
    %432 = vector.load %arg5[%c0_329, %c27, %c0_330, %c0_331] : memref<1x72x15x60xf32, #tpu.memory_space<vmem>>, vector<1x1x15x60xf32>
    %433 = vector.shape_cast %432 : vector<1x1x15x60xf32> to vector<15x60xf32>
    %434 = vector.broadcast %416 : vector<1x60xf32> to vector<15x60xf32>
    %435 = arith.mulf %434, %433 : vector<15x60xf32>
    %436 = arith.addf %415, %435 : vector<15x60xf32>
    %c21_332 = arith.constant 21 : index
    %c0_333 = arith.constant 0 : index
    %437 = vector.load %arg1[%c21_332, %c0_333] : memref<45x60xf32, #tpu.memory_space<vmem>>, vector<1x60xf32>
    %c0_334 = arith.constant 0 : index
    %c60_335 = arith.constant 60 : index
    %c0_336 = arith.constant 0 : index
    %c0_337 = arith.constant 0 : index
    %438 = vector.load %arg5[%c0_334, %c60_335, %c0_336, %c0_337] : memref<1x72x15x60xf32, #tpu.memory_space<vmem>>, vector<1x1x15x60xf32>
    %439 = vector.shape_cast %438 : vector<1x1x15x60xf32> to vector<15x60xf32>
    %440 = vector.broadcast %437 : vector<1x60xf32> to vector<15x60xf32>
    %441 = arith.mulf %440, %439 : vector<15x60xf32>
    %442 = arith.addf %421, %441 : vector<15x60xf32>
    %c0_338 = arith.constant 0 : index
    %c43_339 = arith.constant 43 : index
    %c0_340 = arith.constant 0 : index
    %c0_341 = arith.constant 0 : index
    %443 = vector.load %arg5[%c0_338, %c43_339, %c0_340, %c0_341] : memref<1x72x15x60xf32, #tpu.memory_space<vmem>>, vector<1x1x15x60xf32>
    %444 = vector.shape_cast %443 : vector<1x1x15x60xf32> to vector<15x60xf32>
    %445 = vector.broadcast %437 : vector<1x60xf32> to vector<15x60xf32>
    %446 = arith.mulf %445, %444 : vector<15x60xf32>
    %447 = arith.addf %426, %446 : vector<15x60xf32>
    %c0_342 = arith.constant 0 : index
    %c27_343 = arith.constant 27 : index
    %c0_344 = arith.constant 0 : index
    %c0_345 = arith.constant 0 : index
    %448 = vector.load %arg5[%c0_342, %c27_343, %c0_344, %c0_345] : memref<1x72x15x60xf32, #tpu.memory_space<vmem>>, vector<1x1x15x60xf32>
    %449 = vector.shape_cast %448 : vector<1x1x15x60xf32> to vector<15x60xf32>
    %450 = vector.broadcast %437 : vector<1x60xf32> to vector<15x60xf32>
    %451 = arith.mulf %450, %449 : vector<15x60xf32>
    %452 = arith.addf %431, %451 : vector<15x60xf32>
    %c0_346 = arith.constant 0 : index
    %c10_347 = arith.constant 10 : index
    %c0_348 = arith.constant 0 : index
    %c0_349 = arith.constant 0 : index
    %453 = vector.load %arg5[%c0_346, %c10_347, %c0_348, %c0_349] : memref<1x72x15x60xf32, #tpu.memory_space<vmem>>, vector<1x1x15x60xf32>
    %454 = vector.shape_cast %453 : vector<1x1x15x60xf32> to vector<15x60xf32>
    %455 = vector.broadcast %437 : vector<1x60xf32> to vector<15x60xf32>
    %456 = arith.mulf %455, %454 : vector<15x60xf32>
    %457 = arith.addf %436, %456 : vector<15x60xf32>
    %c22_350 = arith.constant 22 : index
    %c0_351 = arith.constant 0 : index
    %458 = vector.load %arg1[%c22_350, %c0_351] : memref<45x60xf32, #tpu.memory_space<vmem>>, vector<1x60xf32>
    %c0_352 = arith.constant 0 : index
    %c43_353 = arith.constant 43 : index
    %c0_354 = arith.constant 0 : index
    %c0_355 = arith.constant 0 : index
    %459 = vector.load %arg5[%c0_352, %c43_353, %c0_354, %c0_355] : memref<1x72x15x60xf32, #tpu.memory_space<vmem>>, vector<1x1x15x60xf32>
    %460 = vector.shape_cast %459 : vector<1x1x15x60xf32> to vector<15x60xf32>
    %461 = vector.broadcast %458 : vector<1x60xf32> to vector<15x60xf32>
    %462 = arith.mulf %461, %460 : vector<15x60xf32>
    %463 = arith.addf %442, %462 : vector<15x60xf32>
    %c0_356 = arith.constant 0 : index
    %c61_357 = arith.constant 61 : index
    %c0_358 = arith.constant 0 : index
    %c0_359 = arith.constant 0 : index
    %464 = vector.load %arg5[%c0_356, %c61_357, %c0_358, %c0_359] : memref<1x72x15x60xf32, #tpu.memory_space<vmem>>, vector<1x1x15x60xf32>
    %465 = vector.shape_cast %464 : vector<1x1x15x60xf32> to vector<15x60xf32>
    %466 = vector.broadcast %458 : vector<1x60xf32> to vector<15x60xf32>
    %467 = arith.mulf %466, %465 : vector<15x60xf32>
    %468 = arith.addf %447, %467 : vector<15x60xf32>
    %c0_360 = arith.constant 0 : index
    %c10_361 = arith.constant 10 : index
    %c0_362 = arith.constant 0 : index
    %c0_363 = arith.constant 0 : index
    %469 = vector.load %arg5[%c0_360, %c10_361, %c0_362, %c0_363] : memref<1x72x15x60xf32, #tpu.memory_space<vmem>>, vector<1x1x15x60xf32>
    %470 = vector.shape_cast %469 : vector<1x1x15x60xf32> to vector<15x60xf32>
    %471 = vector.broadcast %458 : vector<1x60xf32> to vector<15x60xf32>
    %472 = arith.mulf %471, %470 : vector<15x60xf32>
    %473 = arith.addf %452, %472 : vector<15x60xf32>
    %c0_364 = arith.constant 0 : index
    %c28 = arith.constant 28 : index
    %c0_365 = arith.constant 0 : index
    %c0_366 = arith.constant 0 : index
    %474 = vector.load %arg5[%c0_364, %c28, %c0_365, %c0_366] : memref<1x72x15x60xf32, #tpu.memory_space<vmem>>, vector<1x1x15x60xf32>
    %475 = vector.shape_cast %474 : vector<1x1x15x60xf32> to vector<15x60xf32>
    %476 = vector.broadcast %458 : vector<1x60xf32> to vector<15x60xf32>
    %477 = arith.mulf %476, %475 : vector<15x60xf32>
    %478 = arith.addf %457, %477 : vector<15x60xf32>
    %c23_367 = arith.constant 23 : index
    %c0_368 = arith.constant 0 : index
    %479 = vector.load %arg1[%c23_367, %c0_368] : memref<45x60xf32, #tpu.memory_space<vmem>>, vector<1x60xf32>
    %c0_369 = arith.constant 0 : index
    %c61_370 = arith.constant 61 : index
    %c0_371 = arith.constant 0 : index
    %c0_372 = arith.constant 0 : index
    %480 = vector.load %arg5[%c0_369, %c61_370, %c0_371, %c0_372] : memref<1x72x15x60xf32, #tpu.memory_space<vmem>>, vector<1x1x15x60xf32>
    %481 = vector.shape_cast %480 : vector<1x1x15x60xf32> to vector<15x60xf32>
    %482 = vector.broadcast %479 : vector<1x60xf32> to vector<15x60xf32>
    %483 = arith.mulf %482, %481 : vector<15x60xf32>
    %484 = arith.addf %463, %483 : vector<15x60xf32>
    %c0_373 = arith.constant 0 : index
    %c44_374 = arith.constant 44 : index
    %c0_375 = arith.constant 0 : index
    %c0_376 = arith.constant 0 : index
    %485 = vector.load %arg5[%c0_373, %c44_374, %c0_375, %c0_376] : memref<1x72x15x60xf32, #tpu.memory_space<vmem>>, vector<1x1x15x60xf32>
    %486 = vector.shape_cast %485 : vector<1x1x15x60xf32> to vector<15x60xf32>
    %487 = vector.broadcast %479 : vector<1x60xf32> to vector<15x60xf32>
    %488 = arith.mulf %487, %486 : vector<15x60xf32>
    %489 = arith.addf %468, %488 : vector<15x60xf32>
    %c0_377 = arith.constant 0 : index
    %c28_378 = arith.constant 28 : index
    %c0_379 = arith.constant 0 : index
    %c0_380 = arith.constant 0 : index
    %490 = vector.load %arg5[%c0_377, %c28_378, %c0_379, %c0_380] : memref<1x72x15x60xf32, #tpu.memory_space<vmem>>, vector<1x1x15x60xf32>
    %491 = vector.shape_cast %490 : vector<1x1x15x60xf32> to vector<15x60xf32>
    %492 = vector.broadcast %479 : vector<1x60xf32> to vector<15x60xf32>
    %493 = arith.mulf %492, %491 : vector<15x60xf32>
    %494 = arith.addf %473, %493 : vector<15x60xf32>
    %c0_381 = arith.constant 0 : index
    %c11_382 = arith.constant 11 : index
    %c0_383 = arith.constant 0 : index
    %c0_384 = arith.constant 0 : index
    %495 = vector.load %arg5[%c0_381, %c11_382, %c0_383, %c0_384] : memref<1x72x15x60xf32, #tpu.memory_space<vmem>>, vector<1x1x15x60xf32>
    %496 = vector.shape_cast %495 : vector<1x1x15x60xf32> to vector<15x60xf32>
    %497 = vector.broadcast %479 : vector<1x60xf32> to vector<15x60xf32>
    %498 = arith.mulf %497, %496 : vector<15x60xf32>
    %499 = arith.addf %478, %498 : vector<15x60xf32>
    %c24_385 = arith.constant 24 : index
    %c0_386 = arith.constant 0 : index
    %500 = vector.load %arg1[%c24_385, %c0_386] : memref<45x60xf32, #tpu.memory_space<vmem>>, vector<1x60xf32>
    %c0_387 = arith.constant 0 : index
    %c44_388 = arith.constant 44 : index
    %c0_389 = arith.constant 0 : index
    %c0_390 = arith.constant 0 : index
    %501 = vector.load %arg5[%c0_387, %c44_388, %c0_389, %c0_390] : memref<1x72x15x60xf32, #tpu.memory_space<vmem>>, vector<1x1x15x60xf32>
    %502 = vector.shape_cast %501 : vector<1x1x15x60xf32> to vector<15x60xf32>
    %503 = vector.broadcast %500 : vector<1x60xf32> to vector<15x60xf32>
    %504 = arith.mulf %503, %502 : vector<15x60xf32>
    %505 = arith.addf %484, %504 : vector<15x60xf32>
    %c0_391 = arith.constant 0 : index
    %c62_392 = arith.constant 62 : index
    %c0_393 = arith.constant 0 : index
    %c0_394 = arith.constant 0 : index
    %506 = vector.load %arg5[%c0_391, %c62_392, %c0_393, %c0_394] : memref<1x72x15x60xf32, #tpu.memory_space<vmem>>, vector<1x1x15x60xf32>
    %507 = vector.shape_cast %506 : vector<1x1x15x60xf32> to vector<15x60xf32>
    %508 = vector.broadcast %500 : vector<1x60xf32> to vector<15x60xf32>
    %509 = arith.mulf %508, %507 : vector<15x60xf32>
    %510 = arith.addf %489, %509 : vector<15x60xf32>
    %c0_395 = arith.constant 0 : index
    %c11_396 = arith.constant 11 : index
    %c0_397 = arith.constant 0 : index
    %c0_398 = arith.constant 0 : index
    %511 = vector.load %arg5[%c0_395, %c11_396, %c0_397, %c0_398] : memref<1x72x15x60xf32, #tpu.memory_space<vmem>>, vector<1x1x15x60xf32>
    %512 = vector.shape_cast %511 : vector<1x1x15x60xf32> to vector<15x60xf32>
    %513 = vector.broadcast %500 : vector<1x60xf32> to vector<15x60xf32>
    %514 = arith.mulf %513, %512 : vector<15x60xf32>
    %515 = arith.addf %494, %514 : vector<15x60xf32>
    %c0_399 = arith.constant 0 : index
    %c29 = arith.constant 29 : index
    %c0_400 = arith.constant 0 : index
    %c0_401 = arith.constant 0 : index
    %516 = vector.load %arg5[%c0_399, %c29, %c0_400, %c0_401] : memref<1x72x15x60xf32, #tpu.memory_space<vmem>>, vector<1x1x15x60xf32>
    %517 = vector.shape_cast %516 : vector<1x1x15x60xf32> to vector<15x60xf32>
    %518 = vector.broadcast %500 : vector<1x60xf32> to vector<15x60xf32>
    %519 = arith.mulf %518, %517 : vector<15x60xf32>
    %520 = arith.addf %499, %519 : vector<15x60xf32>
    %c25_402 = arith.constant 25 : index
    %c0_403 = arith.constant 0 : index
    %521 = vector.load %arg1[%c25_402, %c0_403] : memref<45x60xf32, #tpu.memory_space<vmem>>, vector<1x60xf32>
    %c0_404 = arith.constant 0 : index
    %c9_405 = arith.constant 9 : index
    %c0_406 = arith.constant 0 : index
    %c0_407 = arith.constant 0 : index
    %522 = vector.load %arg5[%c0_404, %c9_405, %c0_406, %c0_407] : memref<1x72x15x60xf32, #tpu.memory_space<vmem>>, vector<1x1x15x60xf32>
    %523 = vector.shape_cast %522 : vector<1x1x15x60xf32> to vector<15x60xf32>
    %524 = vector.broadcast %521 : vector<1x60xf32> to vector<15x60xf32>
    %525 = arith.mulf %524, %523 : vector<15x60xf32>
    %526 = arith.addf %505, %525 : vector<15x60xf32>
    %c0_408 = arith.constant 0 : index
    %c27_409 = arith.constant 27 : index
    %c0_410 = arith.constant 0 : index
    %c0_411 = arith.constant 0 : index
    %527 = vector.load %arg5[%c0_408, %c27_409, %c0_410, %c0_411] : memref<1x72x15x60xf32, #tpu.memory_space<vmem>>, vector<1x1x15x60xf32>
    %528 = vector.shape_cast %527 : vector<1x1x15x60xf32> to vector<15x60xf32>
    %529 = vector.broadcast %521 : vector<1x60xf32> to vector<15x60xf32>
    %530 = arith.mulf %529, %528 : vector<15x60xf32>
    %531 = arith.addf %510, %530 : vector<15x60xf32>
    %c0_412 = arith.constant 0 : index
    %c45 = arith.constant 45 : index
    %c0_413 = arith.constant 0 : index
    %c0_414 = arith.constant 0 : index
    %532 = vector.load %arg5[%c0_412, %c45, %c0_413, %c0_414] : memref<1x72x15x60xf32, #tpu.memory_space<vmem>>, vector<1x1x15x60xf32>
    %533 = vector.shape_cast %532 : vector<1x1x15x60xf32> to vector<15x60xf32>
    %534 = vector.broadcast %521 : vector<1x60xf32> to vector<15x60xf32>
    %535 = arith.mulf %534, %533 : vector<15x60xf32>
    %536 = arith.addf %515, %535 : vector<15x60xf32>
    %c0_415 = arith.constant 0 : index
    %c63 = arith.constant 63 : index
    %c0_416 = arith.constant 0 : index
    %c0_417 = arith.constant 0 : index
    %537 = vector.load %arg5[%c0_415, %c63, %c0_416, %c0_417] : memref<1x72x15x60xf32, #tpu.memory_space<vmem>>, vector<1x1x15x60xf32>
    %538 = vector.shape_cast %537 : vector<1x1x15x60xf32> to vector<15x60xf32>
    %539 = vector.broadcast %521 : vector<1x60xf32> to vector<15x60xf32>
    %540 = arith.mulf %539, %538 : vector<15x60xf32>
    %541 = arith.addf %520, %540 : vector<15x60xf32>
    %c26_418 = arith.constant 26 : index
    %c0_419 = arith.constant 0 : index
    %542 = vector.load %arg1[%c26_418, %c0_419] : memref<45x60xf32, #tpu.memory_space<vmem>>, vector<1x60xf32>
    %c0_420 = arith.constant 0 : index
    %c27_421 = arith.constant 27 : index
    %c0_422 = arith.constant 0 : index
    %c0_423 = arith.constant 0 : index
    %543 = vector.load %arg5[%c0_420, %c27_421, %c0_422, %c0_423] : memref<1x72x15x60xf32, #tpu.memory_space<vmem>>, vector<1x1x15x60xf32>
    %544 = vector.shape_cast %543 : vector<1x1x15x60xf32> to vector<15x60xf32>
    %545 = vector.broadcast %542 : vector<1x60xf32> to vector<15x60xf32>
    %546 = arith.mulf %545, %544 : vector<15x60xf32>
    %547 = arith.addf %526, %546 : vector<15x60xf32>
    %c0_424 = arith.constant 0 : index
    %c10_425 = arith.constant 10 : index
    %c0_426 = arith.constant 0 : index
    %c0_427 = arith.constant 0 : index
    %548 = vector.load %arg5[%c0_424, %c10_425, %c0_426, %c0_427] : memref<1x72x15x60xf32, #tpu.memory_space<vmem>>, vector<1x1x15x60xf32>
    %549 = vector.shape_cast %548 : vector<1x1x15x60xf32> to vector<15x60xf32>
    %550 = vector.broadcast %542 : vector<1x60xf32> to vector<15x60xf32>
    %551 = arith.mulf %550, %549 : vector<15x60xf32>
    %552 = arith.addf %531, %551 : vector<15x60xf32>
    %c0_428 = arith.constant 0 : index
    %c63_429 = arith.constant 63 : index
    %c0_430 = arith.constant 0 : index
    %c0_431 = arith.constant 0 : index
    %553 = vector.load %arg5[%c0_428, %c63_429, %c0_430, %c0_431] : memref<1x72x15x60xf32, #tpu.memory_space<vmem>>, vector<1x1x15x60xf32>
    %554 = vector.shape_cast %553 : vector<1x1x15x60xf32> to vector<15x60xf32>
    %555 = vector.broadcast %542 : vector<1x60xf32> to vector<15x60xf32>
    %556 = arith.mulf %555, %554 : vector<15x60xf32>
    %557 = arith.addf %536, %556 : vector<15x60xf32>
    %c0_432 = arith.constant 0 : index
    %c46 = arith.constant 46 : index
    %c0_433 = arith.constant 0 : index
    %c0_434 = arith.constant 0 : index
    %558 = vector.load %arg5[%c0_432, %c46, %c0_433, %c0_434] : memref<1x72x15x60xf32, #tpu.memory_space<vmem>>, vector<1x1x15x60xf32>
    %559 = vector.shape_cast %558 : vector<1x1x15x60xf32> to vector<15x60xf32>
    %560 = vector.broadcast %542 : vector<1x60xf32> to vector<15x60xf32>
    %561 = arith.mulf %560, %559 : vector<15x60xf32>
    %562 = arith.addf %541, %561 : vector<15x60xf32>
    %c27_435 = arith.constant 27 : index
    %c0_436 = arith.constant 0 : index
    %563 = vector.load %arg1[%c27_435, %c0_436] : memref<45x60xf32, #tpu.memory_space<vmem>>, vector<1x60xf32>
    %c0_437 = arith.constant 0 : index
    %c10_438 = arith.constant 10 : index
    %c0_439 = arith.constant 0 : index
    %c0_440 = arith.constant 0 : index
    %564 = vector.load %arg5[%c0_437, %c10_438, %c0_439, %c0_440] : memref<1x72x15x60xf32, #tpu.memory_space<vmem>>, vector<1x1x15x60xf32>
    %565 = vector.shape_cast %564 : vector<1x1x15x60xf32> to vector<15x60xf32>
    %566 = vector.broadcast %563 : vector<1x60xf32> to vector<15x60xf32>
    %567 = arith.mulf %566, %565 : vector<15x60xf32>
    %568 = arith.addf %547, %567 : vector<15x60xf32>
    %c0_441 = arith.constant 0 : index
    %c28_442 = arith.constant 28 : index
    %c0_443 = arith.constant 0 : index
    %c0_444 = arith.constant 0 : index
    %569 = vector.load %arg5[%c0_441, %c28_442, %c0_443, %c0_444] : memref<1x72x15x60xf32, #tpu.memory_space<vmem>>, vector<1x1x15x60xf32>
    %570 = vector.shape_cast %569 : vector<1x1x15x60xf32> to vector<15x60xf32>
    %571 = vector.broadcast %563 : vector<1x60xf32> to vector<15x60xf32>
    %572 = arith.mulf %571, %570 : vector<15x60xf32>
    %573 = arith.addf %552, %572 : vector<15x60xf32>
    %c0_445 = arith.constant 0 : index
    %c46_446 = arith.constant 46 : index
    %c0_447 = arith.constant 0 : index
    %c0_448 = arith.constant 0 : index
    %574 = vector.load %arg5[%c0_445, %c46_446, %c0_447, %c0_448] : memref<1x72x15x60xf32, #tpu.memory_space<vmem>>, vector<1x1x15x60xf32>
    %575 = vector.shape_cast %574 : vector<1x1x15x60xf32> to vector<15x60xf32>
    %576 = vector.broadcast %563 : vector<1x60xf32> to vector<15x60xf32>
    %577 = arith.mulf %576, %575 : vector<15x60xf32>
    %578 = arith.addf %557, %577 : vector<15x60xf32>
    %c0_449 = arith.constant 0 : index
    %c64 = arith.constant 64 : index
    %c0_450 = arith.constant 0 : index
    %c0_451 = arith.constant 0 : index
    %579 = vector.load %arg5[%c0_449, %c64, %c0_450, %c0_451] : memref<1x72x15x60xf32, #tpu.memory_space<vmem>>, vector<1x1x15x60xf32>
    %580 = vector.shape_cast %579 : vector<1x1x15x60xf32> to vector<15x60xf32>
    %581 = vector.broadcast %563 : vector<1x60xf32> to vector<15x60xf32>
    %582 = arith.mulf %581, %580 : vector<15x60xf32>
    %583 = arith.addf %562, %582 : vector<15x60xf32>
    %c28_452 = arith.constant 28 : index
    %c0_453 = arith.constant 0 : index
    %584 = vector.load %arg1[%c28_452, %c0_453] : memref<45x60xf32, #tpu.memory_space<vmem>>, vector<1x60xf32>
    %c0_454 = arith.constant 0 : index
    %c28_455 = arith.constant 28 : index
    %c0_456 = arith.constant 0 : index
    %c0_457 = arith.constant 0 : index
    %585 = vector.load %arg5[%c0_454, %c28_455, %c0_456, %c0_457] : memref<1x72x15x60xf32, #tpu.memory_space<vmem>>, vector<1x1x15x60xf32>
    %586 = vector.shape_cast %585 : vector<1x1x15x60xf32> to vector<15x60xf32>
    %587 = vector.broadcast %584 : vector<1x60xf32> to vector<15x60xf32>
    %588 = arith.mulf %587, %586 : vector<15x60xf32>
    %589 = arith.addf %568, %588 : vector<15x60xf32>
    %c0_458 = arith.constant 0 : index
    %c11_459 = arith.constant 11 : index
    %c0_460 = arith.constant 0 : index
    %c0_461 = arith.constant 0 : index
    %590 = vector.load %arg5[%c0_458, %c11_459, %c0_460, %c0_461] : memref<1x72x15x60xf32, #tpu.memory_space<vmem>>, vector<1x1x15x60xf32>
    %591 = vector.shape_cast %590 : vector<1x1x15x60xf32> to vector<15x60xf32>
    %592 = vector.broadcast %584 : vector<1x60xf32> to vector<15x60xf32>
    %593 = arith.mulf %592, %591 : vector<15x60xf32>
    %594 = arith.addf %573, %593 : vector<15x60xf32>
    %c0_462 = arith.constant 0 : index
    %c64_463 = arith.constant 64 : index
    %c0_464 = arith.constant 0 : index
    %c0_465 = arith.constant 0 : index
    %595 = vector.load %arg5[%c0_462, %c64_463, %c0_464, %c0_465] : memref<1x72x15x60xf32, #tpu.memory_space<vmem>>, vector<1x1x15x60xf32>
    %596 = vector.shape_cast %595 : vector<1x1x15x60xf32> to vector<15x60xf32>
    %597 = vector.broadcast %584 : vector<1x60xf32> to vector<15x60xf32>
    %598 = arith.mulf %597, %596 : vector<15x60xf32>
    %599 = arith.addf %578, %598 : vector<15x60xf32>
    %c0_466 = arith.constant 0 : index
    %c47 = arith.constant 47 : index
    %c0_467 = arith.constant 0 : index
    %c0_468 = arith.constant 0 : index
    %600 = vector.load %arg5[%c0_466, %c47, %c0_467, %c0_468] : memref<1x72x15x60xf32, #tpu.memory_space<vmem>>, vector<1x1x15x60xf32>
    %601 = vector.shape_cast %600 : vector<1x1x15x60xf32> to vector<15x60xf32>
    %602 = vector.broadcast %584 : vector<1x60xf32> to vector<15x60xf32>
    %603 = arith.mulf %602, %601 : vector<15x60xf32>
    %604 = arith.addf %583, %603 : vector<15x60xf32>
    %c29_469 = arith.constant 29 : index
    %c0_470 = arith.constant 0 : index
    %605 = vector.load %arg1[%c29_469, %c0_470] : memref<45x60xf32, #tpu.memory_space<vmem>>, vector<1x60xf32>
    %c0_471 = arith.constant 0 : index
    %c11_472 = arith.constant 11 : index
    %c0_473 = arith.constant 0 : index
    %c0_474 = arith.constant 0 : index
    %606 = vector.load %arg5[%c0_471, %c11_472, %c0_473, %c0_474] : memref<1x72x15x60xf32, #tpu.memory_space<vmem>>, vector<1x1x15x60xf32>
    %607 = vector.shape_cast %606 : vector<1x1x15x60xf32> to vector<15x60xf32>
    %608 = vector.broadcast %605 : vector<1x60xf32> to vector<15x60xf32>
    %609 = arith.mulf %608, %607 : vector<15x60xf32>
    %610 = arith.addf %589, %609 : vector<15x60xf32>
    %c0_475 = arith.constant 0 : index
    %c29_476 = arith.constant 29 : index
    %c0_477 = arith.constant 0 : index
    %c0_478 = arith.constant 0 : index
    %611 = vector.load %arg5[%c0_475, %c29_476, %c0_477, %c0_478] : memref<1x72x15x60xf32, #tpu.memory_space<vmem>>, vector<1x1x15x60xf32>
    %612 = vector.shape_cast %611 : vector<1x1x15x60xf32> to vector<15x60xf32>
    %613 = vector.broadcast %605 : vector<1x60xf32> to vector<15x60xf32>
    %614 = arith.mulf %613, %612 : vector<15x60xf32>
    %615 = arith.addf %594, %614 : vector<15x60xf32>
    %c0_479 = arith.constant 0 : index
    %c47_480 = arith.constant 47 : index
    %c0_481 = arith.constant 0 : index
    %c0_482 = arith.constant 0 : index
    %616 = vector.load %arg5[%c0_479, %c47_480, %c0_481, %c0_482] : memref<1x72x15x60xf32, #tpu.memory_space<vmem>>, vector<1x1x15x60xf32>
    %617 = vector.shape_cast %616 : vector<1x1x15x60xf32> to vector<15x60xf32>
    %618 = vector.broadcast %605 : vector<1x60xf32> to vector<15x60xf32>
    %619 = arith.mulf %618, %617 : vector<15x60xf32>
    %620 = arith.addf %599, %619 : vector<15x60xf32>
    %c0_483 = arith.constant 0 : index
    %c65 = arith.constant 65 : index
    %c0_484 = arith.constant 0 : index
    %c0_485 = arith.constant 0 : index
    %621 = vector.load %arg5[%c0_483, %c65, %c0_484, %c0_485] : memref<1x72x15x60xf32, #tpu.memory_space<vmem>>, vector<1x1x15x60xf32>
    %622 = vector.shape_cast %621 : vector<1x1x15x60xf32> to vector<15x60xf32>
    %623 = vector.broadcast %605 : vector<1x60xf32> to vector<15x60xf32>
    %624 = arith.mulf %623, %622 : vector<15x60xf32>
    %625 = arith.addf %604, %624 : vector<15x60xf32>
    %c30 = arith.constant 30 : index
    %c0_486 = arith.constant 0 : index
    %626 = vector.load %arg1[%c30, %c0_486] : memref<45x60xf32, #tpu.memory_space<vmem>>, vector<1x60xf32>
    %c0_487 = arith.constant 0 : index
    %c12_488 = arith.constant 12 : index
    %c0_489 = arith.constant 0 : index
    %c0_490 = arith.constant 0 : index
    %627 = vector.load %arg5[%c0_487, %c12_488, %c0_489, %c0_490] : memref<1x72x15x60xf32, #tpu.memory_space<vmem>>, vector<1x1x15x60xf32>
    %628 = vector.shape_cast %627 : vector<1x1x15x60xf32> to vector<15x60xf32>
    %629 = vector.broadcast %626 : vector<1x60xf32> to vector<15x60xf32>
    %630 = arith.mulf %629, %628 : vector<15x60xf32>
    %631 = arith.addf %610, %630 : vector<15x60xf32>
    %c0_491 = arith.constant 0 : index
    %c30_492 = arith.constant 30 : index
    %c0_493 = arith.constant 0 : index
    %c0_494 = arith.constant 0 : index
    %632 = vector.load %arg5[%c0_491, %c30_492, %c0_493, %c0_494] : memref<1x72x15x60xf32, #tpu.memory_space<vmem>>, vector<1x1x15x60xf32>
    %633 = vector.shape_cast %632 : vector<1x1x15x60xf32> to vector<15x60xf32>
    %634 = vector.broadcast %626 : vector<1x60xf32> to vector<15x60xf32>
    %635 = arith.mulf %634, %633 : vector<15x60xf32>
    %636 = arith.addf %615, %635 : vector<15x60xf32>
    %c0_495 = arith.constant 0 : index
    %c48 = arith.constant 48 : index
    %c0_496 = arith.constant 0 : index
    %c0_497 = arith.constant 0 : index
    %637 = vector.load %arg5[%c0_495, %c48, %c0_496, %c0_497] : memref<1x72x15x60xf32, #tpu.memory_space<vmem>>, vector<1x1x15x60xf32>
    %638 = vector.shape_cast %637 : vector<1x1x15x60xf32> to vector<15x60xf32>
    %639 = vector.broadcast %626 : vector<1x60xf32> to vector<15x60xf32>
    %640 = arith.mulf %639, %638 : vector<15x60xf32>
    %641 = arith.addf %620, %640 : vector<15x60xf32>
    %c0_498 = arith.constant 0 : index
    %c66 = arith.constant 66 : index
    %c0_499 = arith.constant 0 : index
    %c0_500 = arith.constant 0 : index
    %642 = vector.load %arg5[%c0_498, %c66, %c0_499, %c0_500] : memref<1x72x15x60xf32, #tpu.memory_space<vmem>>, vector<1x1x15x60xf32>
    %643 = vector.shape_cast %642 : vector<1x1x15x60xf32> to vector<15x60xf32>
    %644 = vector.broadcast %626 : vector<1x60xf32> to vector<15x60xf32>
    %645 = arith.mulf %644, %643 : vector<15x60xf32>
    %646 = arith.addf %625, %645 : vector<15x60xf32>
    %c31 = arith.constant 31 : index
    %c0_501 = arith.constant 0 : index
    %647 = vector.load %arg1[%c31, %c0_501] : memref<45x60xf32, #tpu.memory_space<vmem>>, vector<1x60xf32>
    %c0_502 = arith.constant 0 : index
    %c30_503 = arith.constant 30 : index
    %c0_504 = arith.constant 0 : index
    %c0_505 = arith.constant 0 : index
    %648 = vector.load %arg5[%c0_502, %c30_503, %c0_504, %c0_505] : memref<1x72x15x60xf32, #tpu.memory_space<vmem>>, vector<1x1x15x60xf32>
    %649 = vector.shape_cast %648 : vector<1x1x15x60xf32> to vector<15x60xf32>
    %650 = vector.broadcast %647 : vector<1x60xf32> to vector<15x60xf32>
    %651 = arith.mulf %650, %649 : vector<15x60xf32>
    %652 = arith.addf %631, %651 : vector<15x60xf32>
    %c0_506 = arith.constant 0 : index
    %c13_507 = arith.constant 13 : index
    %c0_508 = arith.constant 0 : index
    %c0_509 = arith.constant 0 : index
    %653 = vector.load %arg5[%c0_506, %c13_507, %c0_508, %c0_509] : memref<1x72x15x60xf32, #tpu.memory_space<vmem>>, vector<1x1x15x60xf32>
    %654 = vector.shape_cast %653 : vector<1x1x15x60xf32> to vector<15x60xf32>
    %655 = vector.broadcast %647 : vector<1x60xf32> to vector<15x60xf32>
    %656 = arith.mulf %655, %654 : vector<15x60xf32>
    %657 = arith.addf %636, %656 : vector<15x60xf32>
    %c0_510 = arith.constant 0 : index
    %c66_511 = arith.constant 66 : index
    %c0_512 = arith.constant 0 : index
    %c0_513 = arith.constant 0 : index
    %658 = vector.load %arg5[%c0_510, %c66_511, %c0_512, %c0_513] : memref<1x72x15x60xf32, #tpu.memory_space<vmem>>, vector<1x1x15x60xf32>
    %659 = vector.shape_cast %658 : vector<1x1x15x60xf32> to vector<15x60xf32>
    %660 = vector.broadcast %647 : vector<1x60xf32> to vector<15x60xf32>
    %661 = arith.mulf %660, %659 : vector<15x60xf32>
    %662 = arith.addf %641, %661 : vector<15x60xf32>
    %c0_514 = arith.constant 0 : index
    %c49 = arith.constant 49 : index
    %c0_515 = arith.constant 0 : index
    %c0_516 = arith.constant 0 : index
    %663 = vector.load %arg5[%c0_514, %c49, %c0_515, %c0_516] : memref<1x72x15x60xf32, #tpu.memory_space<vmem>>, vector<1x1x15x60xf32>
    %664 = vector.shape_cast %663 : vector<1x1x15x60xf32> to vector<15x60xf32>
    %665 = vector.broadcast %647 : vector<1x60xf32> to vector<15x60xf32>
    %666 = arith.mulf %665, %664 : vector<15x60xf32>
    %667 = arith.addf %646, %666 : vector<15x60xf32>
    %c32 = arith.constant 32 : index
    %c0_517 = arith.constant 0 : index
    %668 = vector.load %arg1[%c32, %c0_517] : memref<45x60xf32, #tpu.memory_space<vmem>>, vector<1x60xf32>
    %c0_518 = arith.constant 0 : index
    %c13_519 = arith.constant 13 : index
    %c0_520 = arith.constant 0 : index
    %c0_521 = arith.constant 0 : index
    %669 = vector.load %arg5[%c0_518, %c13_519, %c0_520, %c0_521] : memref<1x72x15x60xf32, #tpu.memory_space<vmem>>, vector<1x1x15x60xf32>
    %670 = vector.shape_cast %669 : vector<1x1x15x60xf32> to vector<15x60xf32>
    %671 = vector.broadcast %668 : vector<1x60xf32> to vector<15x60xf32>
    %672 = arith.mulf %671, %670 : vector<15x60xf32>
    %673 = arith.addf %652, %672 : vector<15x60xf32>
    %c0_522 = arith.constant 0 : index
    %c31_523 = arith.constant 31 : index
    %c0_524 = arith.constant 0 : index
    %c0_525 = arith.constant 0 : index
    %674 = vector.load %arg5[%c0_522, %c31_523, %c0_524, %c0_525] : memref<1x72x15x60xf32, #tpu.memory_space<vmem>>, vector<1x1x15x60xf32>
    %675 = vector.shape_cast %674 : vector<1x1x15x60xf32> to vector<15x60xf32>
    %676 = vector.broadcast %668 : vector<1x60xf32> to vector<15x60xf32>
    %677 = arith.mulf %676, %675 : vector<15x60xf32>
    %678 = arith.addf %657, %677 : vector<15x60xf32>
    %c0_526 = arith.constant 0 : index
    %c49_527 = arith.constant 49 : index
    %c0_528 = arith.constant 0 : index
    %c0_529 = arith.constant 0 : index
    %679 = vector.load %arg5[%c0_526, %c49_527, %c0_528, %c0_529] : memref<1x72x15x60xf32, #tpu.memory_space<vmem>>, vector<1x1x15x60xf32>
    %680 = vector.shape_cast %679 : vector<1x1x15x60xf32> to vector<15x60xf32>
    %681 = vector.broadcast %668 : vector<1x60xf32> to vector<15x60xf32>
    %682 = arith.mulf %681, %680 : vector<15x60xf32>
    %683 = arith.addf %662, %682 : vector<15x60xf32>
    %c0_530 = arith.constant 0 : index
    %c67 = arith.constant 67 : index
    %c0_531 = arith.constant 0 : index
    %c0_532 = arith.constant 0 : index
    %684 = vector.load %arg5[%c0_530, %c67, %c0_531, %c0_532] : memref<1x72x15x60xf32, #tpu.memory_space<vmem>>, vector<1x1x15x60xf32>
    %685 = vector.shape_cast %684 : vector<1x1x15x60xf32> to vector<15x60xf32>
    %686 = vector.broadcast %668 : vector<1x60xf32> to vector<15x60xf32>
    %687 = arith.mulf %686, %685 : vector<15x60xf32>
    %688 = arith.addf %667, %687 : vector<15x60xf32>
    %c33 = arith.constant 33 : index
    %c0_533 = arith.constant 0 : index
    %689 = vector.load %arg1[%c33, %c0_533] : memref<45x60xf32, #tpu.memory_space<vmem>>, vector<1x60xf32>
    %c0_534 = arith.constant 0 : index
    %c31_535 = arith.constant 31 : index
    %c0_536 = arith.constant 0 : index
    %c0_537 = arith.constant 0 : index
    %690 = vector.load %arg5[%c0_534, %c31_535, %c0_536, %c0_537] : memref<1x72x15x60xf32, #tpu.memory_space<vmem>>, vector<1x1x15x60xf32>
    %691 = vector.shape_cast %690 : vector<1x1x15x60xf32> to vector<15x60xf32>
    %692 = vector.broadcast %689 : vector<1x60xf32> to vector<15x60xf32>
    %693 = arith.mulf %692, %691 : vector<15x60xf32>
    %694 = arith.addf %673, %693 : vector<15x60xf32>
    %c0_538 = arith.constant 0 : index
    %c14_539 = arith.constant 14 : index
    %c0_540 = arith.constant 0 : index
    %c0_541 = arith.constant 0 : index
    %695 = vector.load %arg5[%c0_538, %c14_539, %c0_540, %c0_541] : memref<1x72x15x60xf32, #tpu.memory_space<vmem>>, vector<1x1x15x60xf32>
    %696 = vector.shape_cast %695 : vector<1x1x15x60xf32> to vector<15x60xf32>
    %697 = vector.broadcast %689 : vector<1x60xf32> to vector<15x60xf32>
    %698 = arith.mulf %697, %696 : vector<15x60xf32>
    %699 = arith.addf %678, %698 : vector<15x60xf32>
    %c0_542 = arith.constant 0 : index
    %c67_543 = arith.constant 67 : index
    %c0_544 = arith.constant 0 : index
    %c0_545 = arith.constant 0 : index
    %700 = vector.load %arg5[%c0_542, %c67_543, %c0_544, %c0_545] : memref<1x72x15x60xf32, #tpu.memory_space<vmem>>, vector<1x1x15x60xf32>
    %701 = vector.shape_cast %700 : vector<1x1x15x60xf32> to vector<15x60xf32>
    %702 = vector.broadcast %689 : vector<1x60xf32> to vector<15x60xf32>
    %703 = arith.mulf %702, %701 : vector<15x60xf32>
    %704 = arith.addf %683, %703 : vector<15x60xf32>
    %c0_546 = arith.constant 0 : index
    %c50 = arith.constant 50 : index
    %c0_547 = arith.constant 0 : index
    %c0_548 = arith.constant 0 : index
    %705 = vector.load %arg5[%c0_546, %c50, %c0_547, %c0_548] : memref<1x72x15x60xf32, #tpu.memory_space<vmem>>, vector<1x1x15x60xf32>
    %706 = vector.shape_cast %705 : vector<1x1x15x60xf32> to vector<15x60xf32>
    %707 = vector.broadcast %689 : vector<1x60xf32> to vector<15x60xf32>
    %708 = arith.mulf %707, %706 : vector<15x60xf32>
    %709 = arith.addf %688, %708 : vector<15x60xf32>
    %c34 = arith.constant 34 : index
    %c0_549 = arith.constant 0 : index
    %710 = vector.load %arg1[%c34, %c0_549] : memref<45x60xf32, #tpu.memory_space<vmem>>, vector<1x60xf32>
    %c0_550 = arith.constant 0 : index
    %c14_551 = arith.constant 14 : index
    %c0_552 = arith.constant 0 : index
    %c0_553 = arith.constant 0 : index
    %711 = vector.load %arg5[%c0_550, %c14_551, %c0_552, %c0_553] : memref<1x72x15x60xf32, #tpu.memory_space<vmem>>, vector<1x1x15x60xf32>
    %712 = vector.shape_cast %711 : vector<1x1x15x60xf32> to vector<15x60xf32>
    %713 = vector.broadcast %710 : vector<1x60xf32> to vector<15x60xf32>
    %714 = arith.mulf %713, %712 : vector<15x60xf32>
    %715 = arith.addf %694, %714 : vector<15x60xf32>
    %c0_554 = arith.constant 0 : index
    %c32_555 = arith.constant 32 : index
    %c0_556 = arith.constant 0 : index
    %c0_557 = arith.constant 0 : index
    %716 = vector.load %arg5[%c0_554, %c32_555, %c0_556, %c0_557] : memref<1x72x15x60xf32, #tpu.memory_space<vmem>>, vector<1x1x15x60xf32>
    %717 = vector.shape_cast %716 : vector<1x1x15x60xf32> to vector<15x60xf32>
    %718 = vector.broadcast %710 : vector<1x60xf32> to vector<15x60xf32>
    %719 = arith.mulf %718, %717 : vector<15x60xf32>
    %720 = arith.addf %699, %719 : vector<15x60xf32>
    %c0_558 = arith.constant 0 : index
    %c50_559 = arith.constant 50 : index
    %c0_560 = arith.constant 0 : index
    %c0_561 = arith.constant 0 : index
    %721 = vector.load %arg5[%c0_558, %c50_559, %c0_560, %c0_561] : memref<1x72x15x60xf32, #tpu.memory_space<vmem>>, vector<1x1x15x60xf32>
    %722 = vector.shape_cast %721 : vector<1x1x15x60xf32> to vector<15x60xf32>
    %723 = vector.broadcast %710 : vector<1x60xf32> to vector<15x60xf32>
    %724 = arith.mulf %723, %722 : vector<15x60xf32>
    %725 = arith.addf %704, %724 : vector<15x60xf32>
    %c0_562 = arith.constant 0 : index
    %c68 = arith.constant 68 : index
    %c0_563 = arith.constant 0 : index
    %c0_564 = arith.constant 0 : index
    %726 = vector.load %arg5[%c0_562, %c68, %c0_563, %c0_564] : memref<1x72x15x60xf32, #tpu.memory_space<vmem>>, vector<1x1x15x60xf32>
    %727 = vector.shape_cast %726 : vector<1x1x15x60xf32> to vector<15x60xf32>
    %728 = vector.broadcast %710 : vector<1x60xf32> to vector<15x60xf32>
    %729 = arith.mulf %728, %727 : vector<15x60xf32>
    %730 = arith.addf %709, %729 : vector<15x60xf32>
    %c35 = arith.constant 35 : index
    %c0_565 = arith.constant 0 : index
    %731 = vector.load %arg1[%c35, %c0_565] : memref<45x60xf32, #tpu.memory_space<vmem>>, vector<1x60xf32>
    %c0_566 = arith.constant 0 : index
    %c48_567 = arith.constant 48 : index
    %c0_568 = arith.constant 0 : index
    %c0_569 = arith.constant 0 : index
    %732 = vector.load %arg5[%c0_566, %c48_567, %c0_568, %c0_569] : memref<1x72x15x60xf32, #tpu.memory_space<vmem>>, vector<1x1x15x60xf32>
    %733 = vector.shape_cast %732 : vector<1x1x15x60xf32> to vector<15x60xf32>
    %734 = vector.broadcast %731 : vector<1x60xf32> to vector<15x60xf32>
    %735 = arith.mulf %734, %733 : vector<15x60xf32>
    %736 = arith.addf %715, %735 : vector<15x60xf32>
    %c0_570 = arith.constant 0 : index
    %c66_571 = arith.constant 66 : index
    %c0_572 = arith.constant 0 : index
    %c0_573 = arith.constant 0 : index
    %737 = vector.load %arg5[%c0_570, %c66_571, %c0_572, %c0_573] : memref<1x72x15x60xf32, #tpu.memory_space<vmem>>, vector<1x1x15x60xf32>
    %738 = vector.shape_cast %737 : vector<1x1x15x60xf32> to vector<15x60xf32>
    %739 = vector.broadcast %731 : vector<1x60xf32> to vector<15x60xf32>
    %740 = arith.mulf %739, %738 : vector<15x60xf32>
    %741 = arith.addf %720, %740 : vector<15x60xf32>
    %c0_574 = arith.constant 0 : index
    %c15_575 = arith.constant 15 : index
    %c0_576 = arith.constant 0 : index
    %c0_577 = arith.constant 0 : index
    %742 = vector.load %arg5[%c0_574, %c15_575, %c0_576, %c0_577] : memref<1x72x15x60xf32, #tpu.memory_space<vmem>>, vector<1x1x15x60xf32>
    %743 = vector.shape_cast %742 : vector<1x1x15x60xf32> to vector<15x60xf32>
    %744 = vector.broadcast %731 : vector<1x60xf32> to vector<15x60xf32>
    %745 = arith.mulf %744, %743 : vector<15x60xf32>
    %746 = arith.addf %725, %745 : vector<15x60xf32>
    %c0_578 = arith.constant 0 : index
    %c33_579 = arith.constant 33 : index
    %c0_580 = arith.constant 0 : index
    %c0_581 = arith.constant 0 : index
    %747 = vector.load %arg5[%c0_578, %c33_579, %c0_580, %c0_581] : memref<1x72x15x60xf32, #tpu.memory_space<vmem>>, vector<1x1x15x60xf32>
    %748 = vector.shape_cast %747 : vector<1x1x15x60xf32> to vector<15x60xf32>
    %749 = vector.broadcast %731 : vector<1x60xf32> to vector<15x60xf32>
    %750 = arith.mulf %749, %748 : vector<15x60xf32>
    %751 = arith.addf %730, %750 : vector<15x60xf32>
    %c36_582 = arith.constant 36 : index
    %c0_583 = arith.constant 0 : index
    %752 = vector.load %arg1[%c36_582, %c0_583] : memref<45x60xf32, #tpu.memory_space<vmem>>, vector<1x60xf32>
    %c0_584 = arith.constant 0 : index
    %c66_585 = arith.constant 66 : index
    %c0_586 = arith.constant 0 : index
    %c0_587 = arith.constant 0 : index
    %753 = vector.load %arg5[%c0_584, %c66_585, %c0_586, %c0_587] : memref<1x72x15x60xf32, #tpu.memory_space<vmem>>, vector<1x1x15x60xf32>
    %754 = vector.shape_cast %753 : vector<1x1x15x60xf32> to vector<15x60xf32>
    %755 = vector.broadcast %752 : vector<1x60xf32> to vector<15x60xf32>
    %756 = arith.mulf %755, %754 : vector<15x60xf32>
    %757 = arith.addf %736, %756 : vector<15x60xf32>
    %c0_588 = arith.constant 0 : index
    %c49_589 = arith.constant 49 : index
    %c0_590 = arith.constant 0 : index
    %c0_591 = arith.constant 0 : index
    %758 = vector.load %arg5[%c0_588, %c49_589, %c0_590, %c0_591] : memref<1x72x15x60xf32, #tpu.memory_space<vmem>>, vector<1x1x15x60xf32>
    %759 = vector.shape_cast %758 : vector<1x1x15x60xf32> to vector<15x60xf32>
    %760 = vector.broadcast %752 : vector<1x60xf32> to vector<15x60xf32>
    %761 = arith.mulf %760, %759 : vector<15x60xf32>
    %762 = arith.addf %741, %761 : vector<15x60xf32>
    %c0_592 = arith.constant 0 : index
    %c33_593 = arith.constant 33 : index
    %c0_594 = arith.constant 0 : index
    %c0_595 = arith.constant 0 : index
    %763 = vector.load %arg5[%c0_592, %c33_593, %c0_594, %c0_595] : memref<1x72x15x60xf32, #tpu.memory_space<vmem>>, vector<1x1x15x60xf32>
    %764 = vector.shape_cast %763 : vector<1x1x15x60xf32> to vector<15x60xf32>
    %765 = vector.broadcast %752 : vector<1x60xf32> to vector<15x60xf32>
    %766 = arith.mulf %765, %764 : vector<15x60xf32>
    %767 = arith.addf %746, %766 : vector<15x60xf32>
    %c0_596 = arith.constant 0 : index
    %c16_597 = arith.constant 16 : index
    %c0_598 = arith.constant 0 : index
    %c0_599 = arith.constant 0 : index
    %768 = vector.load %arg5[%c0_596, %c16_597, %c0_598, %c0_599] : memref<1x72x15x60xf32, #tpu.memory_space<vmem>>, vector<1x1x15x60xf32>
    %769 = vector.shape_cast %768 : vector<1x1x15x60xf32> to vector<15x60xf32>
    %770 = vector.broadcast %752 : vector<1x60xf32> to vector<15x60xf32>
    %771 = arith.mulf %770, %769 : vector<15x60xf32>
    %772 = arith.addf %751, %771 : vector<15x60xf32>
    %c37_600 = arith.constant 37 : index
    %c0_601 = arith.constant 0 : index
    %773 = vector.load %arg1[%c37_600, %c0_601] : memref<45x60xf32, #tpu.memory_space<vmem>>, vector<1x60xf32>
    %c0_602 = arith.constant 0 : index
    %c49_603 = arith.constant 49 : index
    %c0_604 = arith.constant 0 : index
    %c0_605 = arith.constant 0 : index
    %774 = vector.load %arg5[%c0_602, %c49_603, %c0_604, %c0_605] : memref<1x72x15x60xf32, #tpu.memory_space<vmem>>, vector<1x1x15x60xf32>
    %775 = vector.shape_cast %774 : vector<1x1x15x60xf32> to vector<15x60xf32>
    %776 = vector.broadcast %773 : vector<1x60xf32> to vector<15x60xf32>
    %777 = arith.mulf %776, %775 : vector<15x60xf32>
    %778 = arith.addf %757, %777 : vector<15x60xf32>
    %c0_606 = arith.constant 0 : index
    %c67_607 = arith.constant 67 : index
    %c0_608 = arith.constant 0 : index
    %c0_609 = arith.constant 0 : index
    %779 = vector.load %arg5[%c0_606, %c67_607, %c0_608, %c0_609] : memref<1x72x15x60xf32, #tpu.memory_space<vmem>>, vector<1x1x15x60xf32>
    %780 = vector.shape_cast %779 : vector<1x1x15x60xf32> to vector<15x60xf32>
    %781 = vector.broadcast %773 : vector<1x60xf32> to vector<15x60xf32>
    %782 = arith.mulf %781, %780 : vector<15x60xf32>
    %783 = arith.addf %762, %782 : vector<15x60xf32>
    %c0_610 = arith.constant 0 : index
    %c16_611 = arith.constant 16 : index
    %c0_612 = arith.constant 0 : index
    %c0_613 = arith.constant 0 : index
    %784 = vector.load %arg5[%c0_610, %c16_611, %c0_612, %c0_613] : memref<1x72x15x60xf32, #tpu.memory_space<vmem>>, vector<1x1x15x60xf32>
    %785 = vector.shape_cast %784 : vector<1x1x15x60xf32> to vector<15x60xf32>
    %786 = vector.broadcast %773 : vector<1x60xf32> to vector<15x60xf32>
    %787 = arith.mulf %786, %785 : vector<15x60xf32>
    %788 = arith.addf %767, %787 : vector<15x60xf32>
    %c0_614 = arith.constant 0 : index
    %c34_615 = arith.constant 34 : index
    %c0_616 = arith.constant 0 : index
    %c0_617 = arith.constant 0 : index
    %789 = vector.load %arg5[%c0_614, %c34_615, %c0_616, %c0_617] : memref<1x72x15x60xf32, #tpu.memory_space<vmem>>, vector<1x1x15x60xf32>
    %790 = vector.shape_cast %789 : vector<1x1x15x60xf32> to vector<15x60xf32>
    %791 = vector.broadcast %773 : vector<1x60xf32> to vector<15x60xf32>
    %792 = arith.mulf %791, %790 : vector<15x60xf32>
    %793 = arith.addf %772, %792 : vector<15x60xf32>
    %c38_618 = arith.constant 38 : index
    %c0_619 = arith.constant 0 : index
    %794 = vector.load %arg1[%c38_618, %c0_619] : memref<45x60xf32, #tpu.memory_space<vmem>>, vector<1x60xf32>
    %c0_620 = arith.constant 0 : index
    %c67_621 = arith.constant 67 : index
    %c0_622 = arith.constant 0 : index
    %c0_623 = arith.constant 0 : index
    %795 = vector.load %arg5[%c0_620, %c67_621, %c0_622, %c0_623] : memref<1x72x15x60xf32, #tpu.memory_space<vmem>>, vector<1x1x15x60xf32>
    %796 = vector.shape_cast %795 : vector<1x1x15x60xf32> to vector<15x60xf32>
    %797 = vector.broadcast %794 : vector<1x60xf32> to vector<15x60xf32>
    %798 = arith.mulf %797, %796 : vector<15x60xf32>
    %799 = arith.addf %778, %798 : vector<15x60xf32>
    %c0_624 = arith.constant 0 : index
    %c50_625 = arith.constant 50 : index
    %c0_626 = arith.constant 0 : index
    %c0_627 = arith.constant 0 : index
    %800 = vector.load %arg5[%c0_624, %c50_625, %c0_626, %c0_627] : memref<1x72x15x60xf32, #tpu.memory_space<vmem>>, vector<1x1x15x60xf32>
    %801 = vector.shape_cast %800 : vector<1x1x15x60xf32> to vector<15x60xf32>
    %802 = vector.broadcast %794 : vector<1x60xf32> to vector<15x60xf32>
    %803 = arith.mulf %802, %801 : vector<15x60xf32>
    %804 = arith.addf %783, %803 : vector<15x60xf32>
    %c0_628 = arith.constant 0 : index
    %c34_629 = arith.constant 34 : index
    %c0_630 = arith.constant 0 : index
    %c0_631 = arith.constant 0 : index
    %805 = vector.load %arg5[%c0_628, %c34_629, %c0_630, %c0_631] : memref<1x72x15x60xf32, #tpu.memory_space<vmem>>, vector<1x1x15x60xf32>
    %806 = vector.shape_cast %805 : vector<1x1x15x60xf32> to vector<15x60xf32>
    %807 = vector.broadcast %794 : vector<1x60xf32> to vector<15x60xf32>
    %808 = arith.mulf %807, %806 : vector<15x60xf32>
    %809 = arith.addf %788, %808 : vector<15x60xf32>
    %c0_632 = arith.constant 0 : index
    %c17_633 = arith.constant 17 : index
    %c0_634 = arith.constant 0 : index
    %c0_635 = arith.constant 0 : index
    %810 = vector.load %arg5[%c0_632, %c17_633, %c0_634, %c0_635] : memref<1x72x15x60xf32, #tpu.memory_space<vmem>>, vector<1x1x15x60xf32>
    %811 = vector.shape_cast %810 : vector<1x1x15x60xf32> to vector<15x60xf32>
    %812 = vector.broadcast %794 : vector<1x60xf32> to vector<15x60xf32>
    %813 = arith.mulf %812, %811 : vector<15x60xf32>
    %814 = arith.addf %793, %813 : vector<15x60xf32>
    %c39_636 = arith.constant 39 : index
    %c0_637 = arith.constant 0 : index
    %815 = vector.load %arg1[%c39_636, %c0_637] : memref<45x60xf32, #tpu.memory_space<vmem>>, vector<1x60xf32>
    %c0_638 = arith.constant 0 : index
    %c50_639 = arith.constant 50 : index
    %c0_640 = arith.constant 0 : index
    %c0_641 = arith.constant 0 : index
    %816 = vector.load %arg5[%c0_638, %c50_639, %c0_640, %c0_641] : memref<1x72x15x60xf32, #tpu.memory_space<vmem>>, vector<1x1x15x60xf32>
    %817 = vector.shape_cast %816 : vector<1x1x15x60xf32> to vector<15x60xf32>
    %818 = vector.broadcast %815 : vector<1x60xf32> to vector<15x60xf32>
    %819 = arith.mulf %818, %817 : vector<15x60xf32>
    %820 = arith.addf %799, %819 : vector<15x60xf32>
    %c0_642 = arith.constant 0 : index
    %c68_643 = arith.constant 68 : index
    %c0_644 = arith.constant 0 : index
    %c0_645 = arith.constant 0 : index
    %821 = vector.load %arg5[%c0_642, %c68_643, %c0_644, %c0_645] : memref<1x72x15x60xf32, #tpu.memory_space<vmem>>, vector<1x1x15x60xf32>
    %822 = vector.shape_cast %821 : vector<1x1x15x60xf32> to vector<15x60xf32>
    %823 = vector.broadcast %815 : vector<1x60xf32> to vector<15x60xf32>
    %824 = arith.mulf %823, %822 : vector<15x60xf32>
    %825 = arith.addf %804, %824 : vector<15x60xf32>
    %c0_646 = arith.constant 0 : index
    %c17_647 = arith.constant 17 : index
    %c0_648 = arith.constant 0 : index
    %c0_649 = arith.constant 0 : index
    %826 = vector.load %arg5[%c0_646, %c17_647, %c0_648, %c0_649] : memref<1x72x15x60xf32, #tpu.memory_space<vmem>>, vector<1x1x15x60xf32>
    %827 = vector.shape_cast %826 : vector<1x1x15x60xf32> to vector<15x60xf32>
    %828 = vector.broadcast %815 : vector<1x60xf32> to vector<15x60xf32>
    %829 = arith.mulf %828, %827 : vector<15x60xf32>
    %830 = arith.addf %809, %829 : vector<15x60xf32>
    %c0_650 = arith.constant 0 : index
    %c35_651 = arith.constant 35 : index
    %c0_652 = arith.constant 0 : index
    %c0_653 = arith.constant 0 : index
    %831 = vector.load %arg5[%c0_650, %c35_651, %c0_652, %c0_653] : memref<1x72x15x60xf32, #tpu.memory_space<vmem>>, vector<1x1x15x60xf32>
    %832 = vector.shape_cast %831 : vector<1x1x15x60xf32> to vector<15x60xf32>
    %833 = vector.broadcast %815 : vector<1x60xf32> to vector<15x60xf32>
    %834 = arith.mulf %833, %832 : vector<15x60xf32>
    %835 = arith.addf %814, %834 : vector<15x60xf32>
    %c40_654 = arith.constant 40 : index
    %c0_655 = arith.constant 0 : index
    %836 = vector.load %arg1[%c40_654, %c0_655] : memref<45x60xf32, #tpu.memory_space<vmem>>, vector<1x60xf32>
    %c0_656 = arith.constant 0 : index
    %c15_657 = arith.constant 15 : index
    %c0_658 = arith.constant 0 : index
    %c0_659 = arith.constant 0 : index
    %837 = vector.load %arg5[%c0_656, %c15_657, %c0_658, %c0_659] : memref<1x72x15x60xf32, #tpu.memory_space<vmem>>, vector<1x1x15x60xf32>
    %838 = vector.shape_cast %837 : vector<1x1x15x60xf32> to vector<15x60xf32>
    %839 = vector.broadcast %836 : vector<1x60xf32> to vector<15x60xf32>
    %840 = arith.mulf %839, %838 : vector<15x60xf32>
    %841 = arith.addf %820, %840 : vector<15x60xf32>
    %c0_660 = arith.constant 0 : index
    %c33_661 = arith.constant 33 : index
    %c0_662 = arith.constant 0 : index
    %c0_663 = arith.constant 0 : index
    %842 = vector.load %arg5[%c0_660, %c33_661, %c0_662, %c0_663] : memref<1x72x15x60xf32, #tpu.memory_space<vmem>>, vector<1x1x15x60xf32>
    %843 = vector.shape_cast %842 : vector<1x1x15x60xf32> to vector<15x60xf32>
    %844 = vector.broadcast %836 : vector<1x60xf32> to vector<15x60xf32>
    %845 = arith.mulf %844, %843 : vector<15x60xf32>
    %846 = arith.addf %825, %845 : vector<15x60xf32>
    %c0_664 = arith.constant 0 : index
    %c51 = arith.constant 51 : index
    %c0_665 = arith.constant 0 : index
    %c0_666 = arith.constant 0 : index
    %847 = vector.load %arg5[%c0_664, %c51, %c0_665, %c0_666] : memref<1x72x15x60xf32, #tpu.memory_space<vmem>>, vector<1x1x15x60xf32>
    %848 = vector.shape_cast %847 : vector<1x1x15x60xf32> to vector<15x60xf32>
    %849 = vector.broadcast %836 : vector<1x60xf32> to vector<15x60xf32>
    %850 = arith.mulf %849, %848 : vector<15x60xf32>
    %851 = arith.addf %830, %850 : vector<15x60xf32>
    %c0_667 = arith.constant 0 : index
    %c69 = arith.constant 69 : index
    %c0_668 = arith.constant 0 : index
    %c0_669 = arith.constant 0 : index
    %852 = vector.load %arg5[%c0_667, %c69, %c0_668, %c0_669] : memref<1x72x15x60xf32, #tpu.memory_space<vmem>>, vector<1x1x15x60xf32>
    %853 = vector.shape_cast %852 : vector<1x1x15x60xf32> to vector<15x60xf32>
    %854 = vector.broadcast %836 : vector<1x60xf32> to vector<15x60xf32>
    %855 = arith.mulf %854, %853 : vector<15x60xf32>
    %856 = arith.addf %835, %855 : vector<15x60xf32>
    %c41_670 = arith.constant 41 : index
    %c0_671 = arith.constant 0 : index
    %857 = vector.load %arg1[%c41_670, %c0_671] : memref<45x60xf32, #tpu.memory_space<vmem>>, vector<1x60xf32>
    %c0_672 = arith.constant 0 : index
    %c33_673 = arith.constant 33 : index
    %c0_674 = arith.constant 0 : index
    %c0_675 = arith.constant 0 : index
    %858 = vector.load %arg5[%c0_672, %c33_673, %c0_674, %c0_675] : memref<1x72x15x60xf32, #tpu.memory_space<vmem>>, vector<1x1x15x60xf32>
    %859 = vector.shape_cast %858 : vector<1x1x15x60xf32> to vector<15x60xf32>
    %860 = vector.broadcast %857 : vector<1x60xf32> to vector<15x60xf32>
    %861 = arith.mulf %860, %859 : vector<15x60xf32>
    %862 = arith.addf %841, %861 : vector<15x60xf32>
    %c0_676 = arith.constant 0 : index
    %c16_677 = arith.constant 16 : index
    %c0_678 = arith.constant 0 : index
    %c0_679 = arith.constant 0 : index
    %863 = vector.load %arg5[%c0_676, %c16_677, %c0_678, %c0_679] : memref<1x72x15x60xf32, #tpu.memory_space<vmem>>, vector<1x1x15x60xf32>
    %864 = vector.shape_cast %863 : vector<1x1x15x60xf32> to vector<15x60xf32>
    %865 = vector.broadcast %857 : vector<1x60xf32> to vector<15x60xf32>
    %866 = arith.mulf %865, %864 : vector<15x60xf32>
    %867 = arith.addf %846, %866 : vector<15x60xf32>
    %c0_680 = arith.constant 0 : index
    %c69_681 = arith.constant 69 : index
    %c0_682 = arith.constant 0 : index
    %c0_683 = arith.constant 0 : index
    %868 = vector.load %arg5[%c0_680, %c69_681, %c0_682, %c0_683] : memref<1x72x15x60xf32, #tpu.memory_space<vmem>>, vector<1x1x15x60xf32>
    %869 = vector.shape_cast %868 : vector<1x1x15x60xf32> to vector<15x60xf32>
    %870 = vector.broadcast %857 : vector<1x60xf32> to vector<15x60xf32>
    %871 = arith.mulf %870, %869 : vector<15x60xf32>
    %872 = arith.addf %851, %871 : vector<15x60xf32>
    %c0_684 = arith.constant 0 : index
    %c52 = arith.constant 52 : index
    %c0_685 = arith.constant 0 : index
    %c0_686 = arith.constant 0 : index
    %873 = vector.load %arg5[%c0_684, %c52, %c0_685, %c0_686] : memref<1x72x15x60xf32, #tpu.memory_space<vmem>>, vector<1x1x15x60xf32>
    %874 = vector.shape_cast %873 : vector<1x1x15x60xf32> to vector<15x60xf32>
    %875 = vector.broadcast %857 : vector<1x60xf32> to vector<15x60xf32>
    %876 = arith.mulf %875, %874 : vector<15x60xf32>
    %877 = arith.addf %856, %876 : vector<15x60xf32>
    %c42_687 = arith.constant 42 : index
    %c0_688 = arith.constant 0 : index
    %878 = vector.load %arg1[%c42_687, %c0_688] : memref<45x60xf32, #tpu.memory_space<vmem>>, vector<1x60xf32>
    %c0_689 = arith.constant 0 : index
    %c16_690 = arith.constant 16 : index
    %c0_691 = arith.constant 0 : index
    %c0_692 = arith.constant 0 : index
    %879 = vector.load %arg5[%c0_689, %c16_690, %c0_691, %c0_692] : memref<1x72x15x60xf32, #tpu.memory_space<vmem>>, vector<1x1x15x60xf32>
    %880 = vector.shape_cast %879 : vector<1x1x15x60xf32> to vector<15x60xf32>
    %881 = vector.broadcast %878 : vector<1x60xf32> to vector<15x60xf32>
    %882 = arith.mulf %881, %880 : vector<15x60xf32>
    %883 = arith.addf %862, %882 : vector<15x60xf32>
    %c0_693 = arith.constant 0 : index
    %c34_694 = arith.constant 34 : index
    %c0_695 = arith.constant 0 : index
    %c0_696 = arith.constant 0 : index
    %884 = vector.load %arg5[%c0_693, %c34_694, %c0_695, %c0_696] : memref<1x72x15x60xf32, #tpu.memory_space<vmem>>, vector<1x1x15x60xf32>
    %885 = vector.shape_cast %884 : vector<1x1x15x60xf32> to vector<15x60xf32>
    %886 = vector.broadcast %878 : vector<1x60xf32> to vector<15x60xf32>
    %887 = arith.mulf %886, %885 : vector<15x60xf32>
    %888 = arith.addf %867, %887 : vector<15x60xf32>
    %c0_697 = arith.constant 0 : index
    %c52_698 = arith.constant 52 : index
    %c0_699 = arith.constant 0 : index
    %c0_700 = arith.constant 0 : index
    %889 = vector.load %arg5[%c0_697, %c52_698, %c0_699, %c0_700] : memref<1x72x15x60xf32, #tpu.memory_space<vmem>>, vector<1x1x15x60xf32>
    %890 = vector.shape_cast %889 : vector<1x1x15x60xf32> to vector<15x60xf32>
    %891 = vector.broadcast %878 : vector<1x60xf32> to vector<15x60xf32>
    %892 = arith.mulf %891, %890 : vector<15x60xf32>
    %893 = arith.addf %872, %892 : vector<15x60xf32>
    %c0_701 = arith.constant 0 : index
    %c70 = arith.constant 70 : index
    %c0_702 = arith.constant 0 : index
    %c0_703 = arith.constant 0 : index
    %894 = vector.load %arg5[%c0_701, %c70, %c0_702, %c0_703] : memref<1x72x15x60xf32, #tpu.memory_space<vmem>>, vector<1x1x15x60xf32>
    %895 = vector.shape_cast %894 : vector<1x1x15x60xf32> to vector<15x60xf32>
    %896 = vector.broadcast %878 : vector<1x60xf32> to vector<15x60xf32>
    %897 = arith.mulf %896, %895 : vector<15x60xf32>
    %898 = arith.addf %877, %897 : vector<15x60xf32>
    %c43_704 = arith.constant 43 : index
    %c0_705 = arith.constant 0 : index
    %899 = vector.load %arg1[%c43_704, %c0_705] : memref<45x60xf32, #tpu.memory_space<vmem>>, vector<1x60xf32>
    %c0_706 = arith.constant 0 : index
    %c34_707 = arith.constant 34 : index
    %c0_708 = arith.constant 0 : index
    %c0_709 = arith.constant 0 : index
    %900 = vector.load %arg5[%c0_706, %c34_707, %c0_708, %c0_709] : memref<1x72x15x60xf32, #tpu.memory_space<vmem>>, vector<1x1x15x60xf32>
    %901 = vector.shape_cast %900 : vector<1x1x15x60xf32> to vector<15x60xf32>
    %902 = vector.broadcast %899 : vector<1x60xf32> to vector<15x60xf32>
    %903 = arith.mulf %902, %901 : vector<15x60xf32>
    %904 = arith.addf %883, %903 : vector<15x60xf32>
    %c0_710 = arith.constant 0 : index
    %c17_711 = arith.constant 17 : index
    %c0_712 = arith.constant 0 : index
    %c0_713 = arith.constant 0 : index
    %905 = vector.load %arg5[%c0_710, %c17_711, %c0_712, %c0_713] : memref<1x72x15x60xf32, #tpu.memory_space<vmem>>, vector<1x1x15x60xf32>
    %906 = vector.shape_cast %905 : vector<1x1x15x60xf32> to vector<15x60xf32>
    %907 = vector.broadcast %899 : vector<1x60xf32> to vector<15x60xf32>
    %908 = arith.mulf %907, %906 : vector<15x60xf32>
    %909 = arith.addf %888, %908 : vector<15x60xf32>
    %c0_714 = arith.constant 0 : index
    %c70_715 = arith.constant 70 : index
    %c0_716 = arith.constant 0 : index
    %c0_717 = arith.constant 0 : index
    %910 = vector.load %arg5[%c0_714, %c70_715, %c0_716, %c0_717] : memref<1x72x15x60xf32, #tpu.memory_space<vmem>>, vector<1x1x15x60xf32>
    %911 = vector.shape_cast %910 : vector<1x1x15x60xf32> to vector<15x60xf32>
    %912 = vector.broadcast %899 : vector<1x60xf32> to vector<15x60xf32>
    %913 = arith.mulf %912, %911 : vector<15x60xf32>
    %914 = arith.addf %893, %913 : vector<15x60xf32>
    %c0_718 = arith.constant 0 : index
    %c53 = arith.constant 53 : index
    %c0_719 = arith.constant 0 : index
    %c0_720 = arith.constant 0 : index
    %915 = vector.load %arg5[%c0_718, %c53, %c0_719, %c0_720] : memref<1x72x15x60xf32, #tpu.memory_space<vmem>>, vector<1x1x15x60xf32>
    %916 = vector.shape_cast %915 : vector<1x1x15x60xf32> to vector<15x60xf32>
    %917 = vector.broadcast %899 : vector<1x60xf32> to vector<15x60xf32>
    %918 = arith.mulf %917, %916 : vector<15x60xf32>
    %919 = arith.addf %898, %918 : vector<15x60xf32>
    %c44_721 = arith.constant 44 : index
    %c0_722 = arith.constant 0 : index
    %920 = vector.load %arg1[%c44_721, %c0_722] : memref<45x60xf32, #tpu.memory_space<vmem>>, vector<1x60xf32>
    %c0_723 = arith.constant 0 : index
    %c17_724 = arith.constant 17 : index
    %c0_725 = arith.constant 0 : index
    %c0_726 = arith.constant 0 : index
    %921 = vector.load %arg5[%c0_723, %c17_724, %c0_725, %c0_726] : memref<1x72x15x60xf32, #tpu.memory_space<vmem>>, vector<1x1x15x60xf32>
    %922 = vector.shape_cast %921 : vector<1x1x15x60xf32> to vector<15x60xf32>
    %923 = vector.broadcast %920 : vector<1x60xf32> to vector<15x60xf32>
    %924 = arith.mulf %923, %922 : vector<15x60xf32>
    %925 = arith.addf %904, %924 : vector<15x60xf32>
    %c0_727 = arith.constant 0 : index
    %c35_728 = arith.constant 35 : index
    %c0_729 = arith.constant 0 : index
    %c0_730 = arith.constant 0 : index
    %926 = vector.load %arg5[%c0_727, %c35_728, %c0_729, %c0_730] : memref<1x72x15x60xf32, #tpu.memory_space<vmem>>, vector<1x1x15x60xf32>
    %927 = vector.shape_cast %926 : vector<1x1x15x60xf32> to vector<15x60xf32>
    %928 = vector.broadcast %920 : vector<1x60xf32> to vector<15x60xf32>
    %929 = arith.mulf %928, %927 : vector<15x60xf32>
    %930 = arith.addf %909, %929 : vector<15x60xf32>
    %c0_731 = arith.constant 0 : index
    %c53_732 = arith.constant 53 : index
    %c0_733 = arith.constant 0 : index
    %c0_734 = arith.constant 0 : index
    %931 = vector.load %arg5[%c0_731, %c53_732, %c0_733, %c0_734] : memref<1x72x15x60xf32, #tpu.memory_space<vmem>>, vector<1x1x15x60xf32>
    %932 = vector.shape_cast %931 : vector<1x1x15x60xf32> to vector<15x60xf32>
    %933 = vector.broadcast %920 : vector<1x60xf32> to vector<15x60xf32>
    %934 = arith.mulf %933, %932 : vector<15x60xf32>
    %935 = arith.addf %914, %934 : vector<15x60xf32>
    %c0_735 = arith.constant 0 : index
    %c71 = arith.constant 71 : index
    %c0_736 = arith.constant 0 : index
    %c0_737 = arith.constant 0 : index
    %936 = vector.load %arg5[%c0_735, %c71, %c0_736, %c0_737] : memref<1x72x15x60xf32, #tpu.memory_space<vmem>>, vector<1x1x15x60xf32>
    %937 = vector.shape_cast %936 : vector<1x1x15x60xf32> to vector<15x60xf32>
    %938 = vector.broadcast %920 : vector<1x60xf32> to vector<15x60xf32>
    %939 = arith.mulf %938, %937 : vector<15x60xf32>
    %940 = arith.addf %919, %939 : vector<15x60xf32>
    %941 = arith.maximumf %925, %930 : vector<15x60xf32>
    %942 = arith.maximumf %935, %940 : vector<15x60xf32>
    %943 = arith.maximumf %941, %942 : vector<15x60xf32>
    %c0_738 = arith.constant 0 : index
    %c0_739 = arith.constant 0 : index
    %944 = vector.load %arg2[%c0_738, %c0_739] : memref<1x60xf32, #tpu.memory_space<vmem>>, vector<1x60xf32>
    %945 = vector.broadcast %944 : vector<1x60xf32> to vector<15x60xf32>
    %946 = arith.addf %943, %945 : vector<15x60xf32>
    %947 = vector.extract_strided_slice %946 {offsets = [0, 0], sizes = [15, 4], strides = [1, 1]} : vector<15x60xf32> to vector<15x4xf32>
    %948 = tpu.concatenate %947, %947, %947, %947, %947, %947 in 1 : vector<15x4xf32>, vector<15x4xf32>, vector<15x4xf32>, vector<15x4xf32>, vector<15x4xf32>, vector<15x4xf32> -> vector<15x24xf32>
    %c0_740 = arith.constant 0 : index
    %c0_741 = arith.constant 0 : index
    %949 = vector.load %arg3[%c0_740, %c0_741] : memref<90x24xf32, #tpu.memory_space<vmem>>, vector<1x24xf32>
    %950 = vector.extract_strided_slice %948 {offsets = [0, 0], sizes = [3, 24], strides = [1, 1]} : vector<15x24xf32> to vector<3x24xf32>
    %951 = vector.broadcast %949 : vector<1x24xf32> to vector<3x24xf32>
    %952 = arith.mulf %951, %950 : vector<3x24xf32>
    %c3_742 = arith.constant 3 : index
    %c0_743 = arith.constant 0 : index
    %953 = vector.load %arg3[%c3_742, %c0_743] : memref<90x24xf32, #tpu.memory_space<vmem>>, vector<1x24xf32>
    %954 = vector.extract_strided_slice %948 {offsets = [3, 0], sizes = [3, 24], strides = [1, 1]} : vector<15x24xf32> to vector<3x24xf32>
    %955 = vector.broadcast %953 : vector<1x24xf32> to vector<3x24xf32>
    %956 = arith.mulf %955, %954 : vector<3x24xf32>
    %957 = arith.addf %952, %956 : vector<3x24xf32>
    %c6_744 = arith.constant 6 : index
    %c0_745 = arith.constant 0 : index
    %958 = vector.load %arg3[%c6_744, %c0_745] : memref<90x24xf32, #tpu.memory_space<vmem>>, vector<1x24xf32>
    %959 = vector.extract_strided_slice %948 {offsets = [6, 0], sizes = [3, 24], strides = [1, 1]} : vector<15x24xf32> to vector<3x24xf32>
    %960 = vector.broadcast %958 : vector<1x24xf32> to vector<3x24xf32>
    %961 = arith.mulf %960, %959 : vector<3x24xf32>
    %962 = arith.addf %957, %961 : vector<3x24xf32>
    %c9_746 = arith.constant 9 : index
    %c0_747 = arith.constant 0 : index
    %963 = vector.load %arg3[%c9_746, %c0_747] : memref<90x24xf32, #tpu.memory_space<vmem>>, vector<1x24xf32>
    %964 = vector.extract_strided_slice %948 {offsets = [9, 0], sizes = [3, 24], strides = [1, 1]} : vector<15x24xf32> to vector<3x24xf32>
    %965 = vector.broadcast %963 : vector<1x24xf32> to vector<3x24xf32>
    %966 = arith.mulf %965, %964 : vector<3x24xf32>
    %967 = arith.addf %962, %966 : vector<3x24xf32>
    %c12_748 = arith.constant 12 : index
    %c0_749 = arith.constant 0 : index
    %968 = vector.load %arg3[%c12_748, %c0_749] : memref<90x24xf32, #tpu.memory_space<vmem>>, vector<1x24xf32>
    %969 = vector.extract_strided_slice %948 {offsets = [12, 0], sizes = [3, 24], strides = [1, 1]} : vector<15x24xf32> to vector<3x24xf32>
    %970 = vector.broadcast %968 : vector<1x24xf32> to vector<3x24xf32>
    %971 = arith.mulf %970, %969 : vector<3x24xf32>
    %972 = arith.addf %967, %971 : vector<3x24xf32>
    %973 = vector.extract_strided_slice %946 {offsets = [0, 3], sizes = [15, 4], strides = [1, 1]} : vector<15x60xf32> to vector<15x4xf32>
    %974 = tpu.concatenate %973, %973, %973, %973, %973, %973 in 1 : vector<15x4xf32>, vector<15x4xf32>, vector<15x4xf32>, vector<15x4xf32>, vector<15x4xf32>, vector<15x4xf32> -> vector<15x24xf32>
    %c1_750 = arith.constant 1 : index
    %c0_751 = arith.constant 0 : index
    %975 = vector.load %arg3[%c1_750, %c0_751] : memref<90x24xf32, #tpu.memory_space<vmem>>, vector<1x24xf32>
    %976 = vector.extract_strided_slice %974 {offsets = [0, 0], sizes = [3, 24], strides = [1, 1]} : vector<15x24xf32> to vector<3x24xf32>
    %977 = vector.broadcast %975 : vector<1x24xf32> to vector<3x24xf32>
    %978 = arith.mulf %977, %976 : vector<3x24xf32>
    %979 = arith.addf %972, %978 : vector<3x24xf32>
    %c4_752 = arith.constant 4 : index
    %c0_753 = arith.constant 0 : index
    %980 = vector.load %arg3[%c4_752, %c0_753] : memref<90x24xf32, #tpu.memory_space<vmem>>, vector<1x24xf32>
    %981 = vector.extract_strided_slice %974 {offsets = [3, 0], sizes = [3, 24], strides = [1, 1]} : vector<15x24xf32> to vector<3x24xf32>
    %982 = vector.broadcast %980 : vector<1x24xf32> to vector<3x24xf32>
    %983 = arith.mulf %982, %981 : vector<3x24xf32>
    %984 = arith.addf %979, %983 : vector<3x24xf32>
    %c7_754 = arith.constant 7 : index
    %c0_755 = arith.constant 0 : index
    %985 = vector.load %arg3[%c7_754, %c0_755] : memref<90x24xf32, #tpu.memory_space<vmem>>, vector<1x24xf32>
    %986 = vector.extract_strided_slice %974 {offsets = [6, 0], sizes = [3, 24], strides = [1, 1]} : vector<15x24xf32> to vector<3x24xf32>
    %987 = vector.broadcast %985 : vector<1x24xf32> to vector<3x24xf32>
    %988 = arith.mulf %987, %986 : vector<3x24xf32>
    %989 = arith.addf %984, %988 : vector<3x24xf32>
    %c10_756 = arith.constant 10 : index
    %c0_757 = arith.constant 0 : index
    %990 = vector.load %arg3[%c10_756, %c0_757] : memref<90x24xf32, #tpu.memory_space<vmem>>, vector<1x24xf32>
    %991 = vector.extract_strided_slice %974 {offsets = [9, 0], sizes = [3, 24], strides = [1, 1]} : vector<15x24xf32> to vector<3x24xf32>
    %992 = vector.broadcast %990 : vector<1x24xf32> to vector<3x24xf32>
    %993 = arith.mulf %992, %991 : vector<3x24xf32>
    %994 = arith.addf %989, %993 : vector<3x24xf32>
    %c13_758 = arith.constant 13 : index
    %c0_759 = arith.constant 0 : index
    %995 = vector.load %arg3[%c13_758, %c0_759] : memref<90x24xf32, #tpu.memory_space<vmem>>, vector<1x24xf32>
    %996 = vector.extract_strided_slice %974 {offsets = [12, 0], sizes = [3, 24], strides = [1, 1]} : vector<15x24xf32> to vector<3x24xf32>
    %997 = vector.broadcast %995 : vector<1x24xf32> to vector<3x24xf32>
    %998 = arith.mulf %997, %996 : vector<3x24xf32>
    %999 = arith.addf %994, %998 : vector<3x24xf32>
    %1000 = vector.extract_strided_slice %946 {offsets = [0, 6], sizes = [15, 4], strides = [1, 1]} : vector<15x60xf32> to vector<15x4xf32>
    %1001 = tpu.concatenate %1000, %1000, %1000, %1000, %1000, %1000 in 1 : vector<15x4xf32>, vector<15x4xf32>, vector<15x4xf32>, vector<15x4xf32>, vector<15x4xf32>, vector<15x4xf32> -> vector<15x24xf32>
    %c2_760 = arith.constant 2 : index
    %c0_761 = arith.constant 0 : index
    %1002 = vector.load %arg3[%c2_760, %c0_761] : memref<90x24xf32, #tpu.memory_space<vmem>>, vector<1x24xf32>
    %1003 = vector.extract_strided_slice %1001 {offsets = [0, 0], sizes = [3, 24], strides = [1, 1]} : vector<15x24xf32> to vector<3x24xf32>
    %1004 = vector.broadcast %1002 : vector<1x24xf32> to vector<3x24xf32>
    %1005 = arith.mulf %1004, %1003 : vector<3x24xf32>
    %1006 = arith.addf %999, %1005 : vector<3x24xf32>
    %c5_762 = arith.constant 5 : index
    %c0_763 = arith.constant 0 : index
    %1007 = vector.load %arg3[%c5_762, %c0_763] : memref<90x24xf32, #tpu.memory_space<vmem>>, vector<1x24xf32>
    %1008 = vector.extract_strided_slice %1001 {offsets = [3, 0], sizes = [3, 24], strides = [1, 1]} : vector<15x24xf32> to vector<3x24xf32>
    %1009 = vector.broadcast %1007 : vector<1x24xf32> to vector<3x24xf32>
    %1010 = arith.mulf %1009, %1008 : vector<3x24xf32>
    %1011 = arith.addf %1006, %1010 : vector<3x24xf32>
    %c8_764 = arith.constant 8 : index
    %c0_765 = arith.constant 0 : index
    %1012 = vector.load %arg3[%c8_764, %c0_765] : memref<90x24xf32, #tpu.memory_space<vmem>>, vector<1x24xf32>
    %1013 = vector.extract_strided_slice %1001 {offsets = [6, 0], sizes = [3, 24], strides = [1, 1]} : vector<15x24xf32> to vector<3x24xf32>
    %1014 = vector.broadcast %1012 : vector<1x24xf32> to vector<3x24xf32>
    %1015 = arith.mulf %1014, %1013 : vector<3x24xf32>
    %1016 = arith.addf %1011, %1015 : vector<3x24xf32>
    %c11_766 = arith.constant 11 : index
    %c0_767 = arith.constant 0 : index
    %1017 = vector.load %arg3[%c11_766, %c0_767] : memref<90x24xf32, #tpu.memory_space<vmem>>, vector<1x24xf32>
    %1018 = vector.extract_strided_slice %1001 {offsets = [9, 0], sizes = [3, 24], strides = [1, 1]} : vector<15x24xf32> to vector<3x24xf32>
    %1019 = vector.broadcast %1017 : vector<1x24xf32> to vector<3x24xf32>
    %1020 = arith.mulf %1019, %1018 : vector<3x24xf32>
    %1021 = arith.addf %1016, %1020 : vector<3x24xf32>
    %c14_768 = arith.constant 14 : index
    %c0_769 = arith.constant 0 : index
    %1022 = vector.load %arg3[%c14_768, %c0_769] : memref<90x24xf32, #tpu.memory_space<vmem>>, vector<1x24xf32>
    %1023 = vector.extract_strided_slice %1001 {offsets = [12, 0], sizes = [3, 24], strides = [1, 1]} : vector<15x24xf32> to vector<3x24xf32>
    %1024 = vector.broadcast %1022 : vector<1x24xf32> to vector<3x24xf32>
    %1025 = arith.mulf %1024, %1023 : vector<3x24xf32>
    %1026 = arith.addf %1021, %1025 : vector<3x24xf32>
    %1027 = vector.extract_strided_slice %946 {offsets = [0, 10], sizes = [15, 4], strides = [1, 1]} : vector<15x60xf32> to vector<15x4xf32>
    %1028 = tpu.concatenate %1027, %1027, %1027, %1027, %1027, %1027 in 1 : vector<15x4xf32>, vector<15x4xf32>, vector<15x4xf32>, vector<15x4xf32>, vector<15x4xf32>, vector<15x4xf32> -> vector<15x24xf32>
    %c15_770 = arith.constant 15 : index
    %c0_771 = arith.constant 0 : index
    %1029 = vector.load %arg3[%c15_770, %c0_771] : memref<90x24xf32, #tpu.memory_space<vmem>>, vector<1x24xf32>
    %1030 = vector.extract_strided_slice %1028 {offsets = [0, 0], sizes = [3, 24], strides = [1, 1]} : vector<15x24xf32> to vector<3x24xf32>
    %1031 = vector.broadcast %1029 : vector<1x24xf32> to vector<3x24xf32>
    %1032 = arith.mulf %1031, %1030 : vector<3x24xf32>
    %1033 = arith.addf %1026, %1032 : vector<3x24xf32>
    %c18_772 = arith.constant 18 : index
    %c0_773 = arith.constant 0 : index
    %1034 = vector.load %arg3[%c18_772, %c0_773] : memref<90x24xf32, #tpu.memory_space<vmem>>, vector<1x24xf32>
    %1035 = vector.extract_strided_slice %1028 {offsets = [3, 0], sizes = [3, 24], strides = [1, 1]} : vector<15x24xf32> to vector<3x24xf32>
    %1036 = vector.broadcast %1034 : vector<1x24xf32> to vector<3x24xf32>
    %1037 = arith.mulf %1036, %1035 : vector<3x24xf32>
    %1038 = arith.addf %1033, %1037 : vector<3x24xf32>
    %c21_774 = arith.constant 21 : index
    %c0_775 = arith.constant 0 : index
    %1039 = vector.load %arg3[%c21_774, %c0_775] : memref<90x24xf32, #tpu.memory_space<vmem>>, vector<1x24xf32>
    %1040 = vector.extract_strided_slice %1028 {offsets = [6, 0], sizes = [3, 24], strides = [1, 1]} : vector<15x24xf32> to vector<3x24xf32>
    %1041 = vector.broadcast %1039 : vector<1x24xf32> to vector<3x24xf32>
    %1042 = arith.mulf %1041, %1040 : vector<3x24xf32>
    %1043 = arith.addf %1038, %1042 : vector<3x24xf32>
    %c24_776 = arith.constant 24 : index
    %c0_777 = arith.constant 0 : index
    %1044 = vector.load %arg3[%c24_776, %c0_777] : memref<90x24xf32, #tpu.memory_space<vmem>>, vector<1x24xf32>
    %1045 = vector.extract_strided_slice %1028 {offsets = [9, 0], sizes = [3, 24], strides = [1, 1]} : vector<15x24xf32> to vector<3x24xf32>
    %1046 = vector.broadcast %1044 : vector<1x24xf32> to vector<3x24xf32>
    %1047 = arith.mulf %1046, %1045 : vector<3x24xf32>
    %1048 = arith.addf %1043, %1047 : vector<3x24xf32>
    %c27_778 = arith.constant 27 : index
    %c0_779 = arith.constant 0 : index
    %1049 = vector.load %arg3[%c27_778, %c0_779] : memref<90x24xf32, #tpu.memory_space<vmem>>, vector<1x24xf32>
    %1050 = vector.extract_strided_slice %1028 {offsets = [12, 0], sizes = [3, 24], strides = [1, 1]} : vector<15x24xf32> to vector<3x24xf32>
    %1051 = vector.broadcast %1049 : vector<1x24xf32> to vector<3x24xf32>
    %1052 = arith.mulf %1051, %1050 : vector<3x24xf32>
    %1053 = arith.addf %1048, %1052 : vector<3x24xf32>
    %1054 = vector.extract_strided_slice %946 {offsets = [0, 13], sizes = [15, 4], strides = [1, 1]} : vector<15x60xf32> to vector<15x4xf32>
    %1055 = tpu.concatenate %1054, %1054, %1054, %1054, %1054, %1054 in 1 : vector<15x4xf32>, vector<15x4xf32>, vector<15x4xf32>, vector<15x4xf32>, vector<15x4xf32>, vector<15x4xf32> -> vector<15x24xf32>
    %c16_780 = arith.constant 16 : index
    %c0_781 = arith.constant 0 : index
    %1056 = vector.load %arg3[%c16_780, %c0_781] : memref<90x24xf32, #tpu.memory_space<vmem>>, vector<1x24xf32>
    %1057 = vector.extract_strided_slice %1055 {offsets = [0, 0], sizes = [3, 24], strides = [1, 1]} : vector<15x24xf32> to vector<3x24xf32>
    %1058 = vector.broadcast %1056 : vector<1x24xf32> to vector<3x24xf32>
    %1059 = arith.mulf %1058, %1057 : vector<3x24xf32>
    %1060 = arith.addf %1053, %1059 : vector<3x24xf32>
    %c19_782 = arith.constant 19 : index
    %c0_783 = arith.constant 0 : index
    %1061 = vector.load %arg3[%c19_782, %c0_783] : memref<90x24xf32, #tpu.memory_space<vmem>>, vector<1x24xf32>
    %1062 = vector.extract_strided_slice %1055 {offsets = [3, 0], sizes = [3, 24], strides = [1, 1]} : vector<15x24xf32> to vector<3x24xf32>
    %1063 = vector.broadcast %1061 : vector<1x24xf32> to vector<3x24xf32>
    %1064 = arith.mulf %1063, %1062 : vector<3x24xf32>
    %1065 = arith.addf %1060, %1064 : vector<3x24xf32>
    %c22_784 = arith.constant 22 : index
    %c0_785 = arith.constant 0 : index
    %1066 = vector.load %arg3[%c22_784, %c0_785] : memref<90x24xf32, #tpu.memory_space<vmem>>, vector<1x24xf32>
    %1067 = vector.extract_strided_slice %1055 {offsets = [6, 0], sizes = [3, 24], strides = [1, 1]} : vector<15x24xf32> to vector<3x24xf32>
    %1068 = vector.broadcast %1066 : vector<1x24xf32> to vector<3x24xf32>
    %1069 = arith.mulf %1068, %1067 : vector<3x24xf32>
    %1070 = arith.addf %1065, %1069 : vector<3x24xf32>
    %c25_786 = arith.constant 25 : index
    %c0_787 = arith.constant 0 : index
    %1071 = vector.load %arg3[%c25_786, %c0_787] : memref<90x24xf32, #tpu.memory_space<vmem>>, vector<1x24xf32>
    %1072 = vector.extract_strided_slice %1055 {offsets = [9, 0], sizes = [3, 24], strides = [1, 1]} : vector<15x24xf32> to vector<3x24xf32>
    %1073 = vector.broadcast %1071 : vector<1x24xf32> to vector<3x24xf32>
    %1074 = arith.mulf %1073, %1072 : vector<3x24xf32>
    %1075 = arith.addf %1070, %1074 : vector<3x24xf32>
    %c28_788 = arith.constant 28 : index
    %c0_789 = arith.constant 0 : index
    %1076 = vector.load %arg3[%c28_788, %c0_789] : memref<90x24xf32, #tpu.memory_space<vmem>>, vector<1x24xf32>
    %1077 = vector.extract_strided_slice %1055 {offsets = [12, 0], sizes = [3, 24], strides = [1, 1]} : vector<15x24xf32> to vector<3x24xf32>
    %1078 = vector.broadcast %1076 : vector<1x24xf32> to vector<3x24xf32>
    %1079 = arith.mulf %1078, %1077 : vector<3x24xf32>
    %1080 = arith.addf %1075, %1079 : vector<3x24xf32>
    %1081 = vector.extract_strided_slice %946 {offsets = [0, 16], sizes = [15, 4], strides = [1, 1]} : vector<15x60xf32> to vector<15x4xf32>
    %1082 = tpu.concatenate %1081, %1081, %1081, %1081, %1081, %1081 in 1 : vector<15x4xf32>, vector<15x4xf32>, vector<15x4xf32>, vector<15x4xf32>, vector<15x4xf32>, vector<15x4xf32> -> vector<15x24xf32>
    %c17_790 = arith.constant 17 : index
    %c0_791 = arith.constant 0 : index
    %1083 = vector.load %arg3[%c17_790, %c0_791] : memref<90x24xf32, #tpu.memory_space<vmem>>, vector<1x24xf32>
    %1084 = vector.extract_strided_slice %1082 {offsets = [0, 0], sizes = [3, 24], strides = [1, 1]} : vector<15x24xf32> to vector<3x24xf32>
    %1085 = vector.broadcast %1083 : vector<1x24xf32> to vector<3x24xf32>
    %1086 = arith.mulf %1085, %1084 : vector<3x24xf32>
    %1087 = arith.addf %1080, %1086 : vector<3x24xf32>
    %c20_792 = arith.constant 20 : index
    %c0_793 = arith.constant 0 : index
    %1088 = vector.load %arg3[%c20_792, %c0_793] : memref<90x24xf32, #tpu.memory_space<vmem>>, vector<1x24xf32>
    %1089 = vector.extract_strided_slice %1082 {offsets = [3, 0], sizes = [3, 24], strides = [1, 1]} : vector<15x24xf32> to vector<3x24xf32>
    %1090 = vector.broadcast %1088 : vector<1x24xf32> to vector<3x24xf32>
    %1091 = arith.mulf %1090, %1089 : vector<3x24xf32>
    %1092 = arith.addf %1087, %1091 : vector<3x24xf32>
    %c23_794 = arith.constant 23 : index
    %c0_795 = arith.constant 0 : index
    %1093 = vector.load %arg3[%c23_794, %c0_795] : memref<90x24xf32, #tpu.memory_space<vmem>>, vector<1x24xf32>
    %1094 = vector.extract_strided_slice %1082 {offsets = [6, 0], sizes = [3, 24], strides = [1, 1]} : vector<15x24xf32> to vector<3x24xf32>
    %1095 = vector.broadcast %1093 : vector<1x24xf32> to vector<3x24xf32>
    %1096 = arith.mulf %1095, %1094 : vector<3x24xf32>
    %1097 = arith.addf %1092, %1096 : vector<3x24xf32>
    %c26_796 = arith.constant 26 : index
    %c0_797 = arith.constant 0 : index
    %1098 = vector.load %arg3[%c26_796, %c0_797] : memref<90x24xf32, #tpu.memory_space<vmem>>, vector<1x24xf32>
    %1099 = vector.extract_strided_slice %1082 {offsets = [9, 0], sizes = [3, 24], strides = [1, 1]} : vector<15x24xf32> to vector<3x24xf32>
    %1100 = vector.broadcast %1098 : vector<1x24xf32> to vector<3x24xf32>
    %1101 = arith.mulf %1100, %1099 : vector<3x24xf32>
    %1102 = arith.addf %1097, %1101 : vector<3x24xf32>
    %c29_798 = arith.constant 29 : index
    %c0_799 = arith.constant 0 : index
    %1103 = vector.load %arg3[%c29_798, %c0_799] : memref<90x24xf32, #tpu.memory_space<vmem>>, vector<1x24xf32>
    %1104 = vector.extract_strided_slice %1082 {offsets = [12, 0], sizes = [3, 24], strides = [1, 1]} : vector<15x24xf32> to vector<3x24xf32>
    %1105 = vector.broadcast %1103 : vector<1x24xf32> to vector<3x24xf32>
    %1106 = arith.mulf %1105, %1104 : vector<3x24xf32>
    %1107 = arith.addf %1102, %1106 : vector<3x24xf32>
    %1108 = vector.extract_strided_slice %946 {offsets = [0, 20], sizes = [15, 4], strides = [1, 1]} : vector<15x60xf32> to vector<15x4xf32>
    %1109 = tpu.concatenate %1108, %1108, %1108, %1108, %1108, %1108 in 1 : vector<15x4xf32>, vector<15x4xf32>, vector<15x4xf32>, vector<15x4xf32>, vector<15x4xf32>, vector<15x4xf32> -> vector<15x24xf32>
    %c30_800 = arith.constant 30 : index
    %c0_801 = arith.constant 0 : index
    %1110 = vector.load %arg3[%c30_800, %c0_801] : memref<90x24xf32, #tpu.memory_space<vmem>>, vector<1x24xf32>
    %1111 = vector.extract_strided_slice %1109 {offsets = [0, 0], sizes = [3, 24], strides = [1, 1]} : vector<15x24xf32> to vector<3x24xf32>
    %1112 = vector.broadcast %1110 : vector<1x24xf32> to vector<3x24xf32>
    %1113 = arith.mulf %1112, %1111 : vector<3x24xf32>
    %1114 = arith.addf %1107, %1113 : vector<3x24xf32>
    %c33_802 = arith.constant 33 : index
    %c0_803 = arith.constant 0 : index
    %1115 = vector.load %arg3[%c33_802, %c0_803] : memref<90x24xf32, #tpu.memory_space<vmem>>, vector<1x24xf32>
    %1116 = vector.extract_strided_slice %1109 {offsets = [3, 0], sizes = [3, 24], strides = [1, 1]} : vector<15x24xf32> to vector<3x24xf32>
    %1117 = vector.broadcast %1115 : vector<1x24xf32> to vector<3x24xf32>
    %1118 = arith.mulf %1117, %1116 : vector<3x24xf32>
    %1119 = arith.addf %1114, %1118 : vector<3x24xf32>
    %c36_804 = arith.constant 36 : index
    %c0_805 = arith.constant 0 : index
    %1120 = vector.load %arg3[%c36_804, %c0_805] : memref<90x24xf32, #tpu.memory_space<vmem>>, vector<1x24xf32>
    %1121 = vector.extract_strided_slice %1109 {offsets = [6, 0], sizes = [3, 24], strides = [1, 1]} : vector<15x24xf32> to vector<3x24xf32>
    %1122 = vector.broadcast %1120 : vector<1x24xf32> to vector<3x24xf32>
    %1123 = arith.mulf %1122, %1121 : vector<3x24xf32>
    %1124 = arith.addf %1119, %1123 : vector<3x24xf32>
    %c39_806 = arith.constant 39 : index
    %c0_807 = arith.constant 0 : index
    %1125 = vector.load %arg3[%c39_806, %c0_807] : memref<90x24xf32, #tpu.memory_space<vmem>>, vector<1x24xf32>
    %1126 = vector.extract_strided_slice %1109 {offsets = [9, 0], sizes = [3, 24], strides = [1, 1]} : vector<15x24xf32> to vector<3x24xf32>
    %1127 = vector.broadcast %1125 : vector<1x24xf32> to vector<3x24xf32>
    %1128 = arith.mulf %1127, %1126 : vector<3x24xf32>
    %1129 = arith.addf %1124, %1128 : vector<3x24xf32>
    %c42_808 = arith.constant 42 : index
    %c0_809 = arith.constant 0 : index
    %1130 = vector.load %arg3[%c42_808, %c0_809] : memref<90x24xf32, #tpu.memory_space<vmem>>, vector<1x24xf32>
    %1131 = vector.extract_strided_slice %1109 {offsets = [12, 0], sizes = [3, 24], strides = [1, 1]} : vector<15x24xf32> to vector<3x24xf32>
    %1132 = vector.broadcast %1130 : vector<1x24xf32> to vector<3x24xf32>
    %1133 = arith.mulf %1132, %1131 : vector<3x24xf32>
    %1134 = arith.addf %1129, %1133 : vector<3x24xf32>
    %1135 = vector.extract_strided_slice %946 {offsets = [0, 23], sizes = [15, 4], strides = [1, 1]} : vector<15x60xf32> to vector<15x4xf32>
    %1136 = tpu.concatenate %1135, %1135, %1135, %1135, %1135, %1135 in 1 : vector<15x4xf32>, vector<15x4xf32>, vector<15x4xf32>, vector<15x4xf32>, vector<15x4xf32>, vector<15x4xf32> -> vector<15x24xf32>
    %c31_810 = arith.constant 31 : index
    %c0_811 = arith.constant 0 : index
    %1137 = vector.load %arg3[%c31_810, %c0_811] : memref<90x24xf32, #tpu.memory_space<vmem>>, vector<1x24xf32>
    %1138 = vector.extract_strided_slice %1136 {offsets = [0, 0], sizes = [3, 24], strides = [1, 1]} : vector<15x24xf32> to vector<3x24xf32>
    %1139 = vector.broadcast %1137 : vector<1x24xf32> to vector<3x24xf32>
    %1140 = arith.mulf %1139, %1138 : vector<3x24xf32>
    %1141 = arith.addf %1134, %1140 : vector<3x24xf32>
    %c34_812 = arith.constant 34 : index
    %c0_813 = arith.constant 0 : index
    %1142 = vector.load %arg3[%c34_812, %c0_813] : memref<90x24xf32, #tpu.memory_space<vmem>>, vector<1x24xf32>
    %1143 = vector.extract_strided_slice %1136 {offsets = [3, 0], sizes = [3, 24], strides = [1, 1]} : vector<15x24xf32> to vector<3x24xf32>
    %1144 = vector.broadcast %1142 : vector<1x24xf32> to vector<3x24xf32>
    %1145 = arith.mulf %1144, %1143 : vector<3x24xf32>
    %1146 = arith.addf %1141, %1145 : vector<3x24xf32>
    %c37_814 = arith.constant 37 : index
    %c0_815 = arith.constant 0 : index
    %1147 = vector.load %arg3[%c37_814, %c0_815] : memref<90x24xf32, #tpu.memory_space<vmem>>, vector<1x24xf32>
    %1148 = vector.extract_strided_slice %1136 {offsets = [6, 0], sizes = [3, 24], strides = [1, 1]} : vector<15x24xf32> to vector<3x24xf32>
    %1149 = vector.broadcast %1147 : vector<1x24xf32> to vector<3x24xf32>
    %1150 = arith.mulf %1149, %1148 : vector<3x24xf32>
    %1151 = arith.addf %1146, %1150 : vector<3x24xf32>
    %c40_816 = arith.constant 40 : index
    %c0_817 = arith.constant 0 : index
    %1152 = vector.load %arg3[%c40_816, %c0_817] : memref<90x24xf32, #tpu.memory_space<vmem>>, vector<1x24xf32>
    %1153 = vector.extract_strided_slice %1136 {offsets = [9, 0], sizes = [3, 24], strides = [1, 1]} : vector<15x24xf32> to vector<3x24xf32>
    %1154 = vector.broadcast %1152 : vector<1x24xf32> to vector<3x24xf32>
    %1155 = arith.mulf %1154, %1153 : vector<3x24xf32>
    %1156 = arith.addf %1151, %1155 : vector<3x24xf32>
    %c43_818 = arith.constant 43 : index
    %c0_819 = arith.constant 0 : index
    %1157 = vector.load %arg3[%c43_818, %c0_819] : memref<90x24xf32, #tpu.memory_space<vmem>>, vector<1x24xf32>
    %1158 = vector.extract_strided_slice %1136 {offsets = [12, 0], sizes = [3, 24], strides = [1, 1]} : vector<15x24xf32> to vector<3x24xf32>
    %1159 = vector.broadcast %1157 : vector<1x24xf32> to vector<3x24xf32>
    %1160 = arith.mulf %1159, %1158 : vector<3x24xf32>
    %1161 = arith.addf %1156, %1160 : vector<3x24xf32>
    %1162 = vector.extract_strided_slice %946 {offsets = [0, 26], sizes = [15, 4], strides = [1, 1]} : vector<15x60xf32> to vector<15x4xf32>
    %1163 = tpu.concatenate %1162, %1162, %1162, %1162, %1162, %1162 in 1 : vector<15x4xf32>, vector<15x4xf32>, vector<15x4xf32>, vector<15x4xf32>, vector<15x4xf32>, vector<15x4xf32> -> vector<15x24xf32>
    %c32_820 = arith.constant 32 : index
    %c0_821 = arith.constant 0 : index
    %1164 = vector.load %arg3[%c32_820, %c0_821] : memref<90x24xf32, #tpu.memory_space<vmem>>, vector<1x24xf32>
    %1165 = vector.extract_strided_slice %1163 {offsets = [0, 0], sizes = [3, 24], strides = [1, 1]} : vector<15x24xf32> to vector<3x24xf32>
    %1166 = vector.broadcast %1164 : vector<1x24xf32> to vector<3x24xf32>
    %1167 = arith.mulf %1166, %1165 : vector<3x24xf32>
    %1168 = arith.addf %1161, %1167 : vector<3x24xf32>
    %c35_822 = arith.constant 35 : index
    %c0_823 = arith.constant 0 : index
    %1169 = vector.load %arg3[%c35_822, %c0_823] : memref<90x24xf32, #tpu.memory_space<vmem>>, vector<1x24xf32>
    %1170 = vector.extract_strided_slice %1163 {offsets = [3, 0], sizes = [3, 24], strides = [1, 1]} : vector<15x24xf32> to vector<3x24xf32>
    %1171 = vector.broadcast %1169 : vector<1x24xf32> to vector<3x24xf32>
    %1172 = arith.mulf %1171, %1170 : vector<3x24xf32>
    %1173 = arith.addf %1168, %1172 : vector<3x24xf32>
    %c38_824 = arith.constant 38 : index
    %c0_825 = arith.constant 0 : index
    %1174 = vector.load %arg3[%c38_824, %c0_825] : memref<90x24xf32, #tpu.memory_space<vmem>>, vector<1x24xf32>
    %1175 = vector.extract_strided_slice %1163 {offsets = [6, 0], sizes = [3, 24], strides = [1, 1]} : vector<15x24xf32> to vector<3x24xf32>
    %1176 = vector.broadcast %1174 : vector<1x24xf32> to vector<3x24xf32>
    %1177 = arith.mulf %1176, %1175 : vector<3x24xf32>
    %1178 = arith.addf %1173, %1177 : vector<3x24xf32>
    %c41_826 = arith.constant 41 : index
    %c0_827 = arith.constant 0 : index
    %1179 = vector.load %arg3[%c41_826, %c0_827] : memref<90x24xf32, #tpu.memory_space<vmem>>, vector<1x24xf32>
    %1180 = vector.extract_strided_slice %1163 {offsets = [9, 0], sizes = [3, 24], strides = [1, 1]} : vector<15x24xf32> to vector<3x24xf32>
    %1181 = vector.broadcast %1179 : vector<1x24xf32> to vector<3x24xf32>
    %1182 = arith.mulf %1181, %1180 : vector<3x24xf32>
    %1183 = arith.addf %1178, %1182 : vector<3x24xf32>
    %c44_828 = arith.constant 44 : index
    %c0_829 = arith.constant 0 : index
    %1184 = vector.load %arg3[%c44_828, %c0_829] : memref<90x24xf32, #tpu.memory_space<vmem>>, vector<1x24xf32>
    %1185 = vector.extract_strided_slice %1163 {offsets = [12, 0], sizes = [3, 24], strides = [1, 1]} : vector<15x24xf32> to vector<3x24xf32>
    %1186 = vector.broadcast %1184 : vector<1x24xf32> to vector<3x24xf32>
    %1187 = arith.mulf %1186, %1185 : vector<3x24xf32>
    %1188 = arith.addf %1183, %1187 : vector<3x24xf32>
    %1189 = vector.extract_strided_slice %946 {offsets = [0, 30], sizes = [15, 4], strides = [1, 1]} : vector<15x60xf32> to vector<15x4xf32>
    %1190 = tpu.concatenate %1189, %1189, %1189, %1189, %1189, %1189 in 1 : vector<15x4xf32>, vector<15x4xf32>, vector<15x4xf32>, vector<15x4xf32>, vector<15x4xf32>, vector<15x4xf32> -> vector<15x24xf32>
    %c45_830 = arith.constant 45 : index
    %c0_831 = arith.constant 0 : index
    %1191 = vector.load %arg3[%c45_830, %c0_831] : memref<90x24xf32, #tpu.memory_space<vmem>>, vector<1x24xf32>
    %1192 = vector.extract_strided_slice %1190 {offsets = [0, 0], sizes = [3, 24], strides = [1, 1]} : vector<15x24xf32> to vector<3x24xf32>
    %1193 = vector.broadcast %1191 : vector<1x24xf32> to vector<3x24xf32>
    %1194 = arith.mulf %1193, %1192 : vector<3x24xf32>
    %1195 = arith.addf %1188, %1194 : vector<3x24xf32>
    %c48_832 = arith.constant 48 : index
    %c0_833 = arith.constant 0 : index
    %1196 = vector.load %arg3[%c48_832, %c0_833] : memref<90x24xf32, #tpu.memory_space<vmem>>, vector<1x24xf32>
    %1197 = vector.extract_strided_slice %1190 {offsets = [3, 0], sizes = [3, 24], strides = [1, 1]} : vector<15x24xf32> to vector<3x24xf32>
    %1198 = vector.broadcast %1196 : vector<1x24xf32> to vector<3x24xf32>
    %1199 = arith.mulf %1198, %1197 : vector<3x24xf32>
    %1200 = arith.addf %1195, %1199 : vector<3x24xf32>
    %c51_834 = arith.constant 51 : index
    %c0_835 = arith.constant 0 : index
    %1201 = vector.load %arg3[%c51_834, %c0_835] : memref<90x24xf32, #tpu.memory_space<vmem>>, vector<1x24xf32>
    %1202 = vector.extract_strided_slice %1190 {offsets = [6, 0], sizes = [3, 24], strides = [1, 1]} : vector<15x24xf32> to vector<3x24xf32>
    %1203 = vector.broadcast %1201 : vector<1x24xf32> to vector<3x24xf32>
    %1204 = arith.mulf %1203, %1202 : vector<3x24xf32>
    %1205 = arith.addf %1200, %1204 : vector<3x24xf32>
    %c54_836 = arith.constant 54 : index
    %c0_837 = arith.constant 0 : index
    %1206 = vector.load %arg3[%c54_836, %c0_837] : memref<90x24xf32, #tpu.memory_space<vmem>>, vector<1x24xf32>
    %1207 = vector.extract_strided_slice %1190 {offsets = [9, 0], sizes = [3, 24], strides = [1, 1]} : vector<15x24xf32> to vector<3x24xf32>
    %1208 = vector.broadcast %1206 : vector<1x24xf32> to vector<3x24xf32>
    %1209 = arith.mulf %1208, %1207 : vector<3x24xf32>
    %1210 = arith.addf %1205, %1209 : vector<3x24xf32>
    %c57_838 = arith.constant 57 : index
    %c0_839 = arith.constant 0 : index
    %1211 = vector.load %arg3[%c57_838, %c0_839] : memref<90x24xf32, #tpu.memory_space<vmem>>, vector<1x24xf32>
    %1212 = vector.extract_strided_slice %1190 {offsets = [12, 0], sizes = [3, 24], strides = [1, 1]} : vector<15x24xf32> to vector<3x24xf32>
    %1213 = vector.broadcast %1211 : vector<1x24xf32> to vector<3x24xf32>
    %1214 = arith.mulf %1213, %1212 : vector<3x24xf32>
    %1215 = arith.addf %1210, %1214 : vector<3x24xf32>
    %1216 = vector.extract_strided_slice %946 {offsets = [0, 33], sizes = [15, 4], strides = [1, 1]} : vector<15x60xf32> to vector<15x4xf32>
    %1217 = tpu.concatenate %1216, %1216, %1216, %1216, %1216, %1216 in 1 : vector<15x4xf32>, vector<15x4xf32>, vector<15x4xf32>, vector<15x4xf32>, vector<15x4xf32>, vector<15x4xf32> -> vector<15x24xf32>
    %c46_840 = arith.constant 46 : index
    %c0_841 = arith.constant 0 : index
    %1218 = vector.load %arg3[%c46_840, %c0_841] : memref<90x24xf32, #tpu.memory_space<vmem>>, vector<1x24xf32>
    %1219 = vector.extract_strided_slice %1217 {offsets = [0, 0], sizes = [3, 24], strides = [1, 1]} : vector<15x24xf32> to vector<3x24xf32>
    %1220 = vector.broadcast %1218 : vector<1x24xf32> to vector<3x24xf32>
    %1221 = arith.mulf %1220, %1219 : vector<3x24xf32>
    %1222 = arith.addf %1215, %1221 : vector<3x24xf32>
    %c49_842 = arith.constant 49 : index
    %c0_843 = arith.constant 0 : index
    %1223 = vector.load %arg3[%c49_842, %c0_843] : memref<90x24xf32, #tpu.memory_space<vmem>>, vector<1x24xf32>
    %1224 = vector.extract_strided_slice %1217 {offsets = [3, 0], sizes = [3, 24], strides = [1, 1]} : vector<15x24xf32> to vector<3x24xf32>
    %1225 = vector.broadcast %1223 : vector<1x24xf32> to vector<3x24xf32>
    %1226 = arith.mulf %1225, %1224 : vector<3x24xf32>
    %1227 = arith.addf %1222, %1226 : vector<3x24xf32>
    %c52_844 = arith.constant 52 : index
    %c0_845 = arith.constant 0 : index
    %1228 = vector.load %arg3[%c52_844, %c0_845] : memref<90x24xf32, #tpu.memory_space<vmem>>, vector<1x24xf32>
    %1229 = vector.extract_strided_slice %1217 {offsets = [6, 0], sizes = [3, 24], strides = [1, 1]} : vector<15x24xf32> to vector<3x24xf32>
    %1230 = vector.broadcast %1228 : vector<1x24xf32> to vector<3x24xf32>
    %1231 = arith.mulf %1230, %1229 : vector<3x24xf32>
    %1232 = arith.addf %1227, %1231 : vector<3x24xf32>
    %c55_846 = arith.constant 55 : index
    %c0_847 = arith.constant 0 : index
    %1233 = vector.load %arg3[%c55_846, %c0_847] : memref<90x24xf32, #tpu.memory_space<vmem>>, vector<1x24xf32>
    %1234 = vector.extract_strided_slice %1217 {offsets = [9, 0], sizes = [3, 24], strides = [1, 1]} : vector<15x24xf32> to vector<3x24xf32>
    %1235 = vector.broadcast %1233 : vector<1x24xf32> to vector<3x24xf32>
    %1236 = arith.mulf %1235, %1234 : vector<3x24xf32>
    %1237 = arith.addf %1232, %1236 : vector<3x24xf32>
    %c58_848 = arith.constant 58 : index
    %c0_849 = arith.constant 0 : index
    %1238 = vector.load %arg3[%c58_848, %c0_849] : memref<90x24xf32, #tpu.memory_space<vmem>>, vector<1x24xf32>
    %1239 = vector.extract_strided_slice %1217 {offsets = [12, 0], sizes = [3, 24], strides = [1, 1]} : vector<15x24xf32> to vector<3x24xf32>
    %1240 = vector.broadcast %1238 : vector<1x24xf32> to vector<3x24xf32>
    %1241 = arith.mulf %1240, %1239 : vector<3x24xf32>
    %1242 = arith.addf %1237, %1241 : vector<3x24xf32>
    %1243 = vector.extract_strided_slice %946 {offsets = [0, 36], sizes = [15, 4], strides = [1, 1]} : vector<15x60xf32> to vector<15x4xf32>
    %1244 = tpu.concatenate %1243, %1243, %1243, %1243, %1243, %1243 in 1 : vector<15x4xf32>, vector<15x4xf32>, vector<15x4xf32>, vector<15x4xf32>, vector<15x4xf32>, vector<15x4xf32> -> vector<15x24xf32>
    %c47_850 = arith.constant 47 : index
    %c0_851 = arith.constant 0 : index
    %1245 = vector.load %arg3[%c47_850, %c0_851] : memref<90x24xf32, #tpu.memory_space<vmem>>, vector<1x24xf32>
    %1246 = vector.extract_strided_slice %1244 {offsets = [0, 0], sizes = [3, 24], strides = [1, 1]} : vector<15x24xf32> to vector<3x24xf32>
    %1247 = vector.broadcast %1245 : vector<1x24xf32> to vector<3x24xf32>
    %1248 = arith.mulf %1247, %1246 : vector<3x24xf32>
    %1249 = arith.addf %1242, %1248 : vector<3x24xf32>
    %c50_852 = arith.constant 50 : index
    %c0_853 = arith.constant 0 : index
    %1250 = vector.load %arg3[%c50_852, %c0_853] : memref<90x24xf32, #tpu.memory_space<vmem>>, vector<1x24xf32>
    %1251 = vector.extract_strided_slice %1244 {offsets = [3, 0], sizes = [3, 24], strides = [1, 1]} : vector<15x24xf32> to vector<3x24xf32>
    %1252 = vector.broadcast %1250 : vector<1x24xf32> to vector<3x24xf32>
    %1253 = arith.mulf %1252, %1251 : vector<3x24xf32>
    %1254 = arith.addf %1249, %1253 : vector<3x24xf32>
    %c53_854 = arith.constant 53 : index
    %c0_855 = arith.constant 0 : index
    %1255 = vector.load %arg3[%c53_854, %c0_855] : memref<90x24xf32, #tpu.memory_space<vmem>>, vector<1x24xf32>
    %1256 = vector.extract_strided_slice %1244 {offsets = [6, 0], sizes = [3, 24], strides = [1, 1]} : vector<15x24xf32> to vector<3x24xf32>
    %1257 = vector.broadcast %1255 : vector<1x24xf32> to vector<3x24xf32>
    %1258 = arith.mulf %1257, %1256 : vector<3x24xf32>
    %1259 = arith.addf %1254, %1258 : vector<3x24xf32>
    %c56_856 = arith.constant 56 : index
    %c0_857 = arith.constant 0 : index
    %1260 = vector.load %arg3[%c56_856, %c0_857] : memref<90x24xf32, #tpu.memory_space<vmem>>, vector<1x24xf32>
    %1261 = vector.extract_strided_slice %1244 {offsets = [9, 0], sizes = [3, 24], strides = [1, 1]} : vector<15x24xf32> to vector<3x24xf32>
    %1262 = vector.broadcast %1260 : vector<1x24xf32> to vector<3x24xf32>
    %1263 = arith.mulf %1262, %1261 : vector<3x24xf32>
    %1264 = arith.addf %1259, %1263 : vector<3x24xf32>
    %c59_858 = arith.constant 59 : index
    %c0_859 = arith.constant 0 : index
    %1265 = vector.load %arg3[%c59_858, %c0_859] : memref<90x24xf32, #tpu.memory_space<vmem>>, vector<1x24xf32>
    %1266 = vector.extract_strided_slice %1244 {offsets = [12, 0], sizes = [3, 24], strides = [1, 1]} : vector<15x24xf32> to vector<3x24xf32>
    %1267 = vector.broadcast %1265 : vector<1x24xf32> to vector<3x24xf32>
    %1268 = arith.mulf %1267, %1266 : vector<3x24xf32>
    %1269 = arith.addf %1264, %1268 : vector<3x24xf32>
    %1270 = vector.extract_strided_slice %946 {offsets = [0, 40], sizes = [15, 4], strides = [1, 1]} : vector<15x60xf32> to vector<15x4xf32>
    %1271 = tpu.concatenate %1270, %1270, %1270, %1270, %1270, %1270 in 1 : vector<15x4xf32>, vector<15x4xf32>, vector<15x4xf32>, vector<15x4xf32>, vector<15x4xf32>, vector<15x4xf32> -> vector<15x24xf32>
    %c60_860 = arith.constant 60 : index
    %c0_861 = arith.constant 0 : index
    %1272 = vector.load %arg3[%c60_860, %c0_861] : memref<90x24xf32, #tpu.memory_space<vmem>>, vector<1x24xf32>
    %1273 = vector.extract_strided_slice %1271 {offsets = [0, 0], sizes = [3, 24], strides = [1, 1]} : vector<15x24xf32> to vector<3x24xf32>
    %1274 = vector.broadcast %1272 : vector<1x24xf32> to vector<3x24xf32>
    %1275 = arith.mulf %1274, %1273 : vector<3x24xf32>
    %1276 = arith.addf %1269, %1275 : vector<3x24xf32>
    %c63_862 = arith.constant 63 : index
    %c0_863 = arith.constant 0 : index
    %1277 = vector.load %arg3[%c63_862, %c0_863] : memref<90x24xf32, #tpu.memory_space<vmem>>, vector<1x24xf32>
    %1278 = vector.extract_strided_slice %1271 {offsets = [3, 0], sizes = [3, 24], strides = [1, 1]} : vector<15x24xf32> to vector<3x24xf32>
    %1279 = vector.broadcast %1277 : vector<1x24xf32> to vector<3x24xf32>
    %1280 = arith.mulf %1279, %1278 : vector<3x24xf32>
    %1281 = arith.addf %1276, %1280 : vector<3x24xf32>
    %c66_864 = arith.constant 66 : index
    %c0_865 = arith.constant 0 : index
    %1282 = vector.load %arg3[%c66_864, %c0_865] : memref<90x24xf32, #tpu.memory_space<vmem>>, vector<1x24xf32>
    %1283 = vector.extract_strided_slice %1271 {offsets = [6, 0], sizes = [3, 24], strides = [1, 1]} : vector<15x24xf32> to vector<3x24xf32>
    %1284 = vector.broadcast %1282 : vector<1x24xf32> to vector<3x24xf32>
    %1285 = arith.mulf %1284, %1283 : vector<3x24xf32>
    %1286 = arith.addf %1281, %1285 : vector<3x24xf32>
    %c69_866 = arith.constant 69 : index
    %c0_867 = arith.constant 0 : index
    %1287 = vector.load %arg3[%c69_866, %c0_867] : memref<90x24xf32, #tpu.memory_space<vmem>>, vector<1x24xf32>
    %1288 = vector.extract_strided_slice %1271 {offsets = [9, 0], sizes = [3, 24], strides = [1, 1]} : vector<15x24xf32> to vector<3x24xf32>
    %1289 = vector.broadcast %1287 : vector<1x24xf32> to vector<3x24xf32>
    %1290 = arith.mulf %1289, %1288 : vector<3x24xf32>
    %1291 = arith.addf %1286, %1290 : vector<3x24xf32>
    %c72 = arith.constant 72 : index
    %c0_868 = arith.constant 0 : index
    %1292 = vector.load %arg3[%c72, %c0_868] : memref<90x24xf32, #tpu.memory_space<vmem>>, vector<1x24xf32>
    %1293 = vector.extract_strided_slice %1271 {offsets = [12, 0], sizes = [3, 24], strides = [1, 1]} : vector<15x24xf32> to vector<3x24xf32>
    %1294 = vector.broadcast %1292 : vector<1x24xf32> to vector<3x24xf32>
    %1295 = arith.mulf %1294, %1293 : vector<3x24xf32>
    %1296 = arith.addf %1291, %1295 : vector<3x24xf32>
    %1297 = vector.extract_strided_slice %946 {offsets = [0, 43], sizes = [15, 4], strides = [1, 1]} : vector<15x60xf32> to vector<15x4xf32>
    %1298 = tpu.concatenate %1297, %1297, %1297, %1297, %1297, %1297 in 1 : vector<15x4xf32>, vector<15x4xf32>, vector<15x4xf32>, vector<15x4xf32>, vector<15x4xf32>, vector<15x4xf32> -> vector<15x24xf32>
    %c61_869 = arith.constant 61 : index
    %c0_870 = arith.constant 0 : index
    %1299 = vector.load %arg3[%c61_869, %c0_870] : memref<90x24xf32, #tpu.memory_space<vmem>>, vector<1x24xf32>
    %1300 = vector.extract_strided_slice %1298 {offsets = [0, 0], sizes = [3, 24], strides = [1, 1]} : vector<15x24xf32> to vector<3x24xf32>
    %1301 = vector.broadcast %1299 : vector<1x24xf32> to vector<3x24xf32>
    %1302 = arith.mulf %1301, %1300 : vector<3x24xf32>
    %1303 = arith.addf %1296, %1302 : vector<3x24xf32>
    %c64_871 = arith.constant 64 : index
    %c0_872 = arith.constant 0 : index
    %1304 = vector.load %arg3[%c64_871, %c0_872] : memref<90x24xf32, #tpu.memory_space<vmem>>, vector<1x24xf32>
    %1305 = vector.extract_strided_slice %1298 {offsets = [3, 0], sizes = [3, 24], strides = [1, 1]} : vector<15x24xf32> to vector<3x24xf32>
    %1306 = vector.broadcast %1304 : vector<1x24xf32> to vector<3x24xf32>
    %1307 = arith.mulf %1306, %1305 : vector<3x24xf32>
    %1308 = arith.addf %1303, %1307 : vector<3x24xf32>
    %c67_873 = arith.constant 67 : index
    %c0_874 = arith.constant 0 : index
    %1309 = vector.load %arg3[%c67_873, %c0_874] : memref<90x24xf32, #tpu.memory_space<vmem>>, vector<1x24xf32>
    %1310 = vector.extract_strided_slice %1298 {offsets = [6, 0], sizes = [3, 24], strides = [1, 1]} : vector<15x24xf32> to vector<3x24xf32>
    %1311 = vector.broadcast %1309 : vector<1x24xf32> to vector<3x24xf32>
    %1312 = arith.mulf %1311, %1310 : vector<3x24xf32>
    %1313 = arith.addf %1308, %1312 : vector<3x24xf32>
    %c70_875 = arith.constant 70 : index
    %c0_876 = arith.constant 0 : index
    %1314 = vector.load %arg3[%c70_875, %c0_876] : memref<90x24xf32, #tpu.memory_space<vmem>>, vector<1x24xf32>
    %1315 = vector.extract_strided_slice %1298 {offsets = [9, 0], sizes = [3, 24], strides = [1, 1]} : vector<15x24xf32> to vector<3x24xf32>
    %1316 = vector.broadcast %1314 : vector<1x24xf32> to vector<3x24xf32>
    %1317 = arith.mulf %1316, %1315 : vector<3x24xf32>
    %1318 = arith.addf %1313, %1317 : vector<3x24xf32>
    %c73 = arith.constant 73 : index
    %c0_877 = arith.constant 0 : index
    %1319 = vector.load %arg3[%c73, %c0_877] : memref<90x24xf32, #tpu.memory_space<vmem>>, vector<1x24xf32>
    %1320 = vector.extract_strided_slice %1298 {offsets = [12, 0], sizes = [3, 24], strides = [1, 1]} : vector<15x24xf32> to vector<3x24xf32>
    %1321 = vector.broadcast %1319 : vector<1x24xf32> to vector<3x24xf32>
    %1322 = arith.mulf %1321, %1320 : vector<3x24xf32>
    %1323 = arith.addf %1318, %1322 : vector<3x24xf32>
    %1324 = vector.extract_strided_slice %946 {offsets = [0, 46], sizes = [15, 4], strides = [1, 1]} : vector<15x60xf32> to vector<15x4xf32>
    %1325 = tpu.concatenate %1324, %1324, %1324, %1324, %1324, %1324 in 1 : vector<15x4xf32>, vector<15x4xf32>, vector<15x4xf32>, vector<15x4xf32>, vector<15x4xf32>, vector<15x4xf32> -> vector<15x24xf32>
    %c62_878 = arith.constant 62 : index
    %c0_879 = arith.constant 0 : index
    %1326 = vector.load %arg3[%c62_878, %c0_879] : memref<90x24xf32, #tpu.memory_space<vmem>>, vector<1x24xf32>
    %1327 = vector.extract_strided_slice %1325 {offsets = [0, 0], sizes = [3, 24], strides = [1, 1]} : vector<15x24xf32> to vector<3x24xf32>
    %1328 = vector.broadcast %1326 : vector<1x24xf32> to vector<3x24xf32>
    %1329 = arith.mulf %1328, %1327 : vector<3x24xf32>
    %1330 = arith.addf %1323, %1329 : vector<3x24xf32>
    %c65_880 = arith.constant 65 : index
    %c0_881 = arith.constant 0 : index
    %1331 = vector.load %arg3[%c65_880, %c0_881] : memref<90x24xf32, #tpu.memory_space<vmem>>, vector<1x24xf32>
    %1332 = vector.extract_strided_slice %1325 {offsets = [3, 0], sizes = [3, 24], strides = [1, 1]} : vector<15x24xf32> to vector<3x24xf32>
    %1333 = vector.broadcast %1331 : vector<1x24xf32> to vector<3x24xf32>
    %1334 = arith.mulf %1333, %1332 : vector<3x24xf32>
    %1335 = arith.addf %1330, %1334 : vector<3x24xf32>
    %c68_882 = arith.constant 68 : index
    %c0_883 = arith.constant 0 : index
    %1336 = vector.load %arg3[%c68_882, %c0_883] : memref<90x24xf32, #tpu.memory_space<vmem>>, vector<1x24xf32>
    %1337 = vector.extract_strided_slice %1325 {offsets = [6, 0], sizes = [3, 24], strides = [1, 1]} : vector<15x24xf32> to vector<3x24xf32>
    %1338 = vector.broadcast %1336 : vector<1x24xf32> to vector<3x24xf32>
    %1339 = arith.mulf %1338, %1337 : vector<3x24xf32>
    %1340 = arith.addf %1335, %1339 : vector<3x24xf32>
    %c71_884 = arith.constant 71 : index
    %c0_885 = arith.constant 0 : index
    %1341 = vector.load %arg3[%c71_884, %c0_885] : memref<90x24xf32, #tpu.memory_space<vmem>>, vector<1x24xf32>
    %1342 = vector.extract_strided_slice %1325 {offsets = [9, 0], sizes = [3, 24], strides = [1, 1]} : vector<15x24xf32> to vector<3x24xf32>
    %1343 = vector.broadcast %1341 : vector<1x24xf32> to vector<3x24xf32>
    %1344 = arith.mulf %1343, %1342 : vector<3x24xf32>
    %1345 = arith.addf %1340, %1344 : vector<3x24xf32>
    %c74 = arith.constant 74 : index
    %c0_886 = arith.constant 0 : index
    %1346 = vector.load %arg3[%c74, %c0_886] : memref<90x24xf32, #tpu.memory_space<vmem>>, vector<1x24xf32>
    %1347 = vector.extract_strided_slice %1325 {offsets = [12, 0], sizes = [3, 24], strides = [1, 1]} : vector<15x24xf32> to vector<3x24xf32>
    %1348 = vector.broadcast %1346 : vector<1x24xf32> to vector<3x24xf32>
    %1349 = arith.mulf %1348, %1347 : vector<3x24xf32>
    %1350 = arith.addf %1345, %1349 : vector<3x24xf32>
    %1351 = vector.extract_strided_slice %946 {offsets = [0, 50], sizes = [15, 4], strides = [1, 1]} : vector<15x60xf32> to vector<15x4xf32>
    %1352 = tpu.concatenate %1351, %1351, %1351, %1351, %1351, %1351 in 1 : vector<15x4xf32>, vector<15x4xf32>, vector<15x4xf32>, vector<15x4xf32>, vector<15x4xf32>, vector<15x4xf32> -> vector<15x24xf32>
    %c75 = arith.constant 75 : index
    %c0_887 = arith.constant 0 : index
    %1353 = vector.load %arg3[%c75, %c0_887] : memref<90x24xf32, #tpu.memory_space<vmem>>, vector<1x24xf32>
    %1354 = vector.extract_strided_slice %1352 {offsets = [0, 0], sizes = [3, 24], strides = [1, 1]} : vector<15x24xf32> to vector<3x24xf32>
    %1355 = vector.broadcast %1353 : vector<1x24xf32> to vector<3x24xf32>
    %1356 = arith.mulf %1355, %1354 : vector<3x24xf32>
    %1357 = arith.addf %1350, %1356 : vector<3x24xf32>
    %c78 = arith.constant 78 : index
    %c0_888 = arith.constant 0 : index
    %1358 = vector.load %arg3[%c78, %c0_888] : memref<90x24xf32, #tpu.memory_space<vmem>>, vector<1x24xf32>
    %1359 = vector.extract_strided_slice %1352 {offsets = [3, 0], sizes = [3, 24], strides = [1, 1]} : vector<15x24xf32> to vector<3x24xf32>
    %1360 = vector.broadcast %1358 : vector<1x24xf32> to vector<3x24xf32>
    %1361 = arith.mulf %1360, %1359 : vector<3x24xf32>
    %1362 = arith.addf %1357, %1361 : vector<3x24xf32>
    %c81 = arith.constant 81 : index
    %c0_889 = arith.constant 0 : index
    %1363 = vector.load %arg3[%c81, %c0_889] : memref<90x24xf32, #tpu.memory_space<vmem>>, vector<1x24xf32>
    %1364 = vector.extract_strided_slice %1352 {offsets = [6, 0], sizes = [3, 24], strides = [1, 1]} : vector<15x24xf32> to vector<3x24xf32>
    %1365 = vector.broadcast %1363 : vector<1x24xf32> to vector<3x24xf32>
    %1366 = arith.mulf %1365, %1364 : vector<3x24xf32>
    %1367 = arith.addf %1362, %1366 : vector<3x24xf32>
    %c84 = arith.constant 84 : index
    %c0_890 = arith.constant 0 : index
    %1368 = vector.load %arg3[%c84, %c0_890] : memref<90x24xf32, #tpu.memory_space<vmem>>, vector<1x24xf32>
    %1369 = vector.extract_strided_slice %1352 {offsets = [9, 0], sizes = [3, 24], strides = [1, 1]} : vector<15x24xf32> to vector<3x24xf32>
    %1370 = vector.broadcast %1368 : vector<1x24xf32> to vector<3x24xf32>
    %1371 = arith.mulf %1370, %1369 : vector<3x24xf32>
    %1372 = arith.addf %1367, %1371 : vector<3x24xf32>
    %c87 = arith.constant 87 : index
    %c0_891 = arith.constant 0 : index
    %1373 = vector.load %arg3[%c87, %c0_891] : memref<90x24xf32, #tpu.memory_space<vmem>>, vector<1x24xf32>
    %1374 = vector.extract_strided_slice %1352 {offsets = [12, 0], sizes = [3, 24], strides = [1, 1]} : vector<15x24xf32> to vector<3x24xf32>
    %1375 = vector.broadcast %1373 : vector<1x24xf32> to vector<3x24xf32>
    %1376 = arith.mulf %1375, %1374 : vector<3x24xf32>
    %1377 = arith.addf %1372, %1376 : vector<3x24xf32>
    %1378 = vector.extract_strided_slice %946 {offsets = [0, 53], sizes = [15, 4], strides = [1, 1]} : vector<15x60xf32> to vector<15x4xf32>
    %1379 = tpu.concatenate %1378, %1378, %1378, %1378, %1378, %1378 in 1 : vector<15x4xf32>, vector<15x4xf32>, vector<15x4xf32>, vector<15x4xf32>, vector<15x4xf32>, vector<15x4xf32> -> vector<15x24xf32>
    %c76 = arith.constant 76 : index
    %c0_892 = arith.constant 0 : index
    %1380 = vector.load %arg3[%c76, %c0_892] : memref<90x24xf32, #tpu.memory_space<vmem>>, vector<1x24xf32>
    %1381 = vector.extract_strided_slice %1379 {offsets = [0, 0], sizes = [3, 24], strides = [1, 1]} : vector<15x24xf32> to vector<3x24xf32>
    %1382 = vector.broadcast %1380 : vector<1x24xf32> to vector<3x24xf32>
    %1383 = arith.mulf %1382, %1381 : vector<3x24xf32>
    %1384 = arith.addf %1377, %1383 : vector<3x24xf32>
    %c79 = arith.constant 79 : index
    %c0_893 = arith.constant 0 : index
    %1385 = vector.load %arg3[%c79, %c0_893] : memref<90x24xf32, #tpu.memory_space<vmem>>, vector<1x24xf32>
    %1386 = vector.extract_strided_slice %1379 {offsets = [3, 0], sizes = [3, 24], strides = [1, 1]} : vector<15x24xf32> to vector<3x24xf32>
    %1387 = vector.broadcast %1385 : vector<1x24xf32> to vector<3x24xf32>
    %1388 = arith.mulf %1387, %1386 : vector<3x24xf32>
    %1389 = arith.addf %1384, %1388 : vector<3x24xf32>
    %c82 = arith.constant 82 : index
    %c0_894 = arith.constant 0 : index
    %1390 = vector.load %arg3[%c82, %c0_894] : memref<90x24xf32, #tpu.memory_space<vmem>>, vector<1x24xf32>
    %1391 = vector.extract_strided_slice %1379 {offsets = [6, 0], sizes = [3, 24], strides = [1, 1]} : vector<15x24xf32> to vector<3x24xf32>
    %1392 = vector.broadcast %1390 : vector<1x24xf32> to vector<3x24xf32>
    %1393 = arith.mulf %1392, %1391 : vector<3x24xf32>
    %1394 = arith.addf %1389, %1393 : vector<3x24xf32>
    %c85 = arith.constant 85 : index
    %c0_895 = arith.constant 0 : index
    %1395 = vector.load %arg3[%c85, %c0_895] : memref<90x24xf32, #tpu.memory_space<vmem>>, vector<1x24xf32>
    %1396 = vector.extract_strided_slice %1379 {offsets = [9, 0], sizes = [3, 24], strides = [1, 1]} : vector<15x24xf32> to vector<3x24xf32>
    %1397 = vector.broadcast %1395 : vector<1x24xf32> to vector<3x24xf32>
    %1398 = arith.mulf %1397, %1396 : vector<3x24xf32>
    %1399 = arith.addf %1394, %1398 : vector<3x24xf32>
    %c88 = arith.constant 88 : index
    %c0_896 = arith.constant 0 : index
    %1400 = vector.load %arg3[%c88, %c0_896] : memref<90x24xf32, #tpu.memory_space<vmem>>, vector<1x24xf32>
    %1401 = vector.extract_strided_slice %1379 {offsets = [12, 0], sizes = [3, 24], strides = [1, 1]} : vector<15x24xf32> to vector<3x24xf32>
    %1402 = vector.broadcast %1400 : vector<1x24xf32> to vector<3x24xf32>
    %1403 = arith.mulf %1402, %1401 : vector<3x24xf32>
    %1404 = arith.addf %1399, %1403 : vector<3x24xf32>
    %1405 = vector.extract_strided_slice %946 {offsets = [0, 56], sizes = [15, 4], strides = [1, 1]} : vector<15x60xf32> to vector<15x4xf32>
    %1406 = tpu.concatenate %1405, %1405, %1405, %1405, %1405, %1405 in 1 : vector<15x4xf32>, vector<15x4xf32>, vector<15x4xf32>, vector<15x4xf32>, vector<15x4xf32>, vector<15x4xf32> -> vector<15x24xf32>
    %c77 = arith.constant 77 : index
    %c0_897 = arith.constant 0 : index
    %1407 = vector.load %arg3[%c77, %c0_897] : memref<90x24xf32, #tpu.memory_space<vmem>>, vector<1x24xf32>
    %1408 = vector.extract_strided_slice %1406 {offsets = [0, 0], sizes = [3, 24], strides = [1, 1]} : vector<15x24xf32> to vector<3x24xf32>
    %1409 = vector.broadcast %1407 : vector<1x24xf32> to vector<3x24xf32>
    %1410 = arith.mulf %1409, %1408 : vector<3x24xf32>
    %1411 = arith.addf %1404, %1410 : vector<3x24xf32>
    %c80 = arith.constant 80 : index
    %c0_898 = arith.constant 0 : index
    %1412 = vector.load %arg3[%c80, %c0_898] : memref<90x24xf32, #tpu.memory_space<vmem>>, vector<1x24xf32>
    %1413 = vector.extract_strided_slice %1406 {offsets = [3, 0], sizes = [3, 24], strides = [1, 1]} : vector<15x24xf32> to vector<3x24xf32>
    %1414 = vector.broadcast %1412 : vector<1x24xf32> to vector<3x24xf32>
    %1415 = arith.mulf %1414, %1413 : vector<3x24xf32>
    %1416 = arith.addf %1411, %1415 : vector<3x24xf32>
    %c83 = arith.constant 83 : index
    %c0_899 = arith.constant 0 : index
    %1417 = vector.load %arg3[%c83, %c0_899] : memref<90x24xf32, #tpu.memory_space<vmem>>, vector<1x24xf32>
    %1418 = vector.extract_strided_slice %1406 {offsets = [6, 0], sizes = [3, 24], strides = [1, 1]} : vector<15x24xf32> to vector<3x24xf32>
    %1419 = vector.broadcast %1417 : vector<1x24xf32> to vector<3x24xf32>
    %1420 = arith.mulf %1419, %1418 : vector<3x24xf32>
    %1421 = arith.addf %1416, %1420 : vector<3x24xf32>
    %c86 = arith.constant 86 : index
    %c0_900 = arith.constant 0 : index
    %1422 = vector.load %arg3[%c86, %c0_900] : memref<90x24xf32, #tpu.memory_space<vmem>>, vector<1x24xf32>
    %1423 = vector.extract_strided_slice %1406 {offsets = [9, 0], sizes = [3, 24], strides = [1, 1]} : vector<15x24xf32> to vector<3x24xf32>
    %1424 = vector.broadcast %1422 : vector<1x24xf32> to vector<3x24xf32>
    %1425 = arith.mulf %1424, %1423 : vector<3x24xf32>
    %1426 = arith.addf %1421, %1425 : vector<3x24xf32>
    %c89 = arith.constant 89 : index
    %c0_901 = arith.constant 0 : index
    %1427 = vector.load %arg3[%c89, %c0_901] : memref<90x24xf32, #tpu.memory_space<vmem>>, vector<1x24xf32>
    %1428 = vector.extract_strided_slice %1406 {offsets = [12, 0], sizes = [3, 24], strides = [1, 1]} : vector<15x24xf32> to vector<3x24xf32>
    %1429 = vector.broadcast %1427 : vector<1x24xf32> to vector<3x24xf32>
    %1430 = arith.mulf %1429, %1428 : vector<3x24xf32>
    %1431 = arith.addf %1426, %1430 : vector<3x24xf32>
    %c0_902 = arith.constant 0 : index
    %c0_903 = arith.constant 0 : index
    %1432 = vector.load %arg4[%c0_902, %c0_903] : memref<1x24xf32, #tpu.memory_space<vmem>>, vector<1x24xf32>
    %1433 = vector.broadcast %1432 : vector<1x24xf32> to vector<3x24xf32>
    %1434 = arith.addf %1431, %1433 : vector<3x24xf32>
    %c0_904 = arith.constant 0 : index
    %c0_905 = arith.constant 0 : index
    %c0_906 = arith.constant 0 : index
    %1435 = vector.load %arg6[%c0_904, %c0_905, %c0_906] : memref<1x3x24xf32, #tpu.memory_space<vmem>>, vector<1x3x24xf32>
    %1436 = vector.shape_cast %1435 : vector<1x3x24xf32> to vector<3x24xf32>
    %1437 = vector.shape_cast %1434 : vector<3x24xf32> to vector<1x3x24xf32>
    tpu.vector_store %arg6[%c0_904, %c0_905, %c0_906], %1437 {strides = array<i32>} : memref<1x3x24xf32, #tpu.memory_space<vmem>>, vector<1x3x24xf32>,
    return
  }
  func.func @transform_0(%arg0: i32) -> (i32, i32) {
    %c0_i32 = arith.constant 0 : i32
    %c0_i32_0 = arith.constant 0 : i32
    %c0_i32_1 = arith.constant 0 : i32
    return %c0_i32, %c0_i32_0 : i32, i32
  }
  func.func @transform_1(%arg0: i32) -> (i32, i32) {
    %c0_i32 = arith.constant 0 : i32
    %c0_i32_0 = arith.constant 0 : i32
    %c0_i32_1 = arith.constant 0 : i32
    return %c0_i32, %c0_i32_0 : i32, i32
  }
  func.func @transform_2(%arg0: i32) -> (i32, i32) {
    %c0_i32 = arith.constant 0 : i32
    %c0_i32_0 = arith.constant 0 : i32
    %c0_i32_1 = arith.constant 0 : i32
    return %c0_i32, %c0_i32_0 : i32, i32
  }
  func.func @transform_3(%arg0: i32) -> (i32, i32) {
    %c0_i32 = arith.constant 0 : i32
    %c0_i32_0 = arith.constant 0 : i32
    %c0_i32_1 = arith.constant 0 : i32
    return %c0_i32, %c0_i32_0 : i32, i32
  }
  func.func @transform_4(%arg0: i32) -> (i32, i32, i32, i32) {
    %c0_i32 = arith.constant 0 : i32
    %c0_i32_0 = arith.constant 0 : i32
    %c0_i32_1 = arith.constant 0 : i32
    %c0_i32_2 = arith.constant 0 : i32
    return %arg0, %c0_i32, %c0_i32_0, %c0_i32_1 : i32, i32, i32, i32
  }
  func.func @transform_5(%arg0: i32) -> (i32, i32, i32) {
    %c0_i32 = arith.constant 0 : i32
    %c0_i32_0 = arith.constant 0 : i32
    %c0_i32_1 = arith.constant 0 : i32
    return %arg0, %c0_i32, %c0_i32_0 : i32, i32, i32
  }
}

</mosaic_0001>

<llo_original>
// kernel: testmodel_forward.1
$region0: #{testmodel_forward.1}
  #allocation0 [shape = 'u32[]', space=smem, size = 0x4, offset = 0x4, fixed_abs, tag = 'smem constant byte address 0x4 - core index']
  #allocation1 [shape = 'u32[144,128]{1,0:T(1,128)}', space=vmem, size = 0x12000, scoped, tag = 'internal scratch']
  %s0 = inlined_call_operand.vmem [shape: f32[45,60], index: 0, kind: input, shape index: {}]
  %s1 = inlined_call_operand.vmem [shape: f32[1,60], index: 1, kind: input, shape index: {}]
  %s2 = inlined_call_operand.vmem [shape: f32[90,24], index: 2, kind: input, shape index: {}]
  %s3 = inlined_call_operand.vmem [shape: f32[1,24], index: 3, kind: input, shape index: {}]
  %s4 = inlined_call_operand.vmem [shape: f32[2,72,15,60], index: 4, kind: input, shape index: {}]
  %s5 = inlined_call_operand.vmem [shape: f32[2,3,24], index: 5, kind: output, shape index: {}]
  %s6 = sld [smem:[#allocation0]]
  $region53: #{testmodel_forward.1} parent=0
    _
  %s8 = ssub.s32 1, %s6
  %s9 = scalar_select 0, %s8, %s6
  loop: start=0, step=1, limit=4
  $region2: #{testmodel_forward.1} parent=0 // loop_pre_header
    _
  $region3: #{testmodel_forward.1} parent=0 // loop_header
    %s11 = sphi 0, %s15
    %p12 = scmp.ge.s32.totalorder %s11, 4
    %s19 = sphi 0, %s19
    %s21 = sphi 0, %s19
    %s22 = sphi 0, %s21
    %s36 = sphi 0, %s22
    %s40 = sphi 0, %s40
    %s42 = sphi 0, %s40
    %s43 = sphi 0, %s42
    %s57 = sphi 0, %s43
    %s61 = sphi 0, %s61
    %s63 = sphi 0, %s61
    %s64 = sphi 0, %s63
    %s78 = sphi 0, %s64
    %s82 = sphi 0, %s82
    %s84 = sphi 0, %s82
    %s85 = sphi 0, %s84
    %s99 = sphi 0, %s85
    %s105 = sphi 0, %s107
    %s108 = sphi 0, %s105
    %s109 = sphi 0, %s108
    %s125 = sphi 0, %s109
    %s131 = sphi 0, %s133
    %s134 = sphi 0, %s131
    %s135 = sphi 0, %s134
    %s151 = sphi 0, %s135
  $region4: #{testmodel_forward.1} parent=0 // loop_header_branch
    %14 = sbr.rel (%p12) target = $region8
  $region5: #{testmodel_forward.1} parent=0 // loop_body
    %s16 = ssub.s32 %s11, 1
    %s17 = ssub.s32 %s11, 2
    %s18 = sadd.s32 %s11, 1
    %s20 = sadd.s32 %s19, 1
    %p23 = scmp.eq.s32.totalorder %s11, 1
    %p24 = scmp.ne.s32.totalorder %s19, %s21
    %p25 = scmp.eq.s32.totalorder %s11, 0
    %p26 = por %p24, %p25
    %p27 = scmp.ne.s32.totalorder %s19, %s21
    %p28 = scmp.eq.s32.totalorder %s16, 1
    %p29 = por %p27, %p28
    %p30 = scmp.ne.s32.totalorder %s21, %s22
    %p31 = scmp.eq.s32.totalorder %s16, 0
    %p32 = por %p30, %p31
    %p33 = scmp.ne.s32.totalorder %s21, %s22
    %p34 = scmp.eq.s32.totalorder %s17, 1
    %p35 = por %p33, %p34
    %p37 = scmp.ne.s32.totalorder %s22, %s36
    %p38 = scmp.eq.s32.totalorder %s17, 0
    %p39 = por %p37, %p38
    %s41 = sadd.s32 %s40, 1
    %p44 = scmp.eq.s32.totalorder %s11, 1
    %p45 = scmp.ne.s32.totalorder %s40, %s42
    %p46 = scmp.eq.s32.totalorder %s11, 0
    %p47 = por %p45, %p46
    %p48 = scmp.ne.s32.totalorder %s40, %s42
    %p49 = scmp.eq.s32.totalorder %s16, 1
    %p50 = por %p48, %p49
    %p51 = scmp.ne.s32.totalorder %s42, %s43
    %p52 = scmp.eq.s32.totalorder %s16, 0
    %p53 = por %p51, %p52
    %p54 = scmp.ne.s32.totalorder %s42, %s43
    %p55 = scmp.eq.s32.totalorder %s17, 1
    %p56 = por %p54, %p55
    %p58 = scmp.ne.s32.totalorder %s43, %s57
    %p59 = scmp.eq.s32.totalorder %s17, 0
    %p60 = por %p58, %p59
    %s62 = sadd.s32 %s61, 1
    %p65 = scmp.eq.s32.totalorder %s11, 1
    %p66 = scmp.ne.s32.totalorder %s61, %s63
    %p67 = scmp.eq.s32.totalorder %s11, 0
    %p68 = por %p66, %p67
    %p69 = scmp.ne.s32.totalorder %s61, %s63
    %p70 = scmp.eq.s32.totalorder %s16, 1
    %p71 = por %p69, %p70
    %p72 = scmp.ne.s32.totalorder %s63, %s64
    %p73 = scmp.eq.s32.totalorder %s16, 0
    %p74 = por %p72, %p73
    %p75 = scmp.ne.s32.totalorder %s63, %s64
    %p76 = scmp.eq.s32.totalorder %s17, 1
    %p77 = por %p75, %p76
    %p79 = scmp.ne.s32.totalorder %s64, %s78
    %p80 = scmp.eq.s32.totalorder %s17, 0
    %p81 = por %p79, %p80
    %s83 = sadd.s32 %s82, 1
    %p86 = scmp.eq.s32.totalorder %s11, 1
    %p87 = scmp.ne.s32.totalorder %s82, %s84
    %p88 = scmp.eq.s32.totalorder %s11, 0
    %p89 = por %p87, %p88
    %p90 = scmp.ne.s32.totalorder %s82, %s84
    %p91 = scmp.eq.s32.totalorder %s16, 1
    %p92 = por %p90, %p91
    %p93 = scmp.ne.s32.totalorder %s84, %s85
    %p94 = scmp.eq.s32.totalorder %s16, 0
    %p95 = por %p93, %p94
    %p96 = scmp.ne.s32.totalorder %s84, %s85
    %p97 = scmp.eq.s32.totalorder %s17, 1
    %p98 = por %p96, %p97
    %p100 = scmp.ne.s32.totalorder %s85, %s99
    %p101 = scmp.eq.s32.totalorder %s17, 0
    %p102 = por %p100, %p101
    %s103 = ssub.s32 %s11, %s18
    %p104 = scmp.eq.s32.totalorder %s103, 0
    %s106 = sadd.s32 %s105, 1
    %s107 = scalar_select %p104, %s105, %s106
    %p110 = pneg %p104
    %p111 = scmp.eq.s32.totalorder %s11, 1
    %p112 = por %p110, %p111
    %p113 = scmp.ne.s32.totalorder %s105, %s108
    %p114 = scmp.eq.s32.totalorder %s11, 0
    %p115 = por %p113, %p114
    %p116 = scmp.ne.s32.totalorder %s105, %s108
    %p117 = scmp.eq.s32.totalorder %s16, 1
    %p118 = por %p116, %p117
    %p119 = scmp.ne.s32.totalorder %s108, %s109
    %p120 = scmp.eq.s32.totalorder %s16, 0
    %p121 = por %p119, %p120
    %p122 = scmp.ne.s32.totalorder %s108, %s109
    %p123 = scmp.eq.s32.totalorder %s17, 1
    %p124 = por %p122, %p123
    %p126 = scmp.ne.s32.totalorder %s109, %s125
    %p127 = scmp.eq.s32.totalorder %s17, 0
    %p128 = por %p126, %p127
    %s129 = ssub.s32 %s11, %s18
    %p130 = scmp.eq.s32.totalorder %s129, 0
    %s132 = sadd.s32 %s131, 1
    %s133 = scalar_select %p130, %s131, %s132
    %p136 = pneg %p130
    %p137 = scmp.eq.s32.totalorder %s11, 1
    %p138 = por %p136, %p137
    %p139 = scmp.ne.s32.totalorder %s131, %s134
    %p140 = scmp.eq.s32.totalorder %s11, 0
    %p141 = por %p139, %p140
    %p142 = scmp.ne.s32.totalorder %s131, %s134
    %p143 = scmp.eq.s32.totalorder %s16, 1
    %p144 = por %p142, %p143
    %p145 = scmp.ne.s32.totalorder %s134, %s135
    %p146 = scmp.eq.s32.totalorder %s16, 0
    %p147 = por %p145, %p146
    %p148 = scmp.ne.s32.totalorder %s134, %s135
    %p149 = scmp.eq.s32.totalorder %s17, 1
    %p150 = por %p148, %p149
    %p152 = scmp.ne.s32.totalorder %s135, %s151
    %p153 = scmp.eq.s32.totalorder %s17, 0
    %p154 = por %p152, %p153
    %p155 = scmp.le.s32.totalorder 1, %s11
    %p156 = scmp.lt.s32.totalorder %s11, 3
    %p157 = pnand %p155, %p156
    %p158 = pneg %p157
    // Predicated region
    $region9: #{testmodel_forward.1} parent=5 // pred_check
      _
    $region10: #{testmodel_forward.1} parent=5 // pred_check_branch
      %160 = sbr.rel (%p157) target = $region12
    $region11: #{testmodel_forward.1} parent=5 // pred_region
      %s161 = ssub.s32 %s11, 1
      // Predicated region
      $region13: #{testmodel_forward.1} parent=11 // pred_check
        %p162 = pneg %p32
      $region14: #{testmodel_forward.1} parent=11 // pred_check_branch
        %164 = sbr.rel (%p162) target = $region16
      $region15: #{testmodel_forward.1} parent=11 // pred_region
        _
      $region16: #{testmodel_forward.1} parent=11 // pred_fallthru
        _
      // Predicated region
      $region17: #{testmodel_forward.1} parent=11 // pred_check
        %p165 = pneg %p53
      $region18: #{testmodel_forward.1} parent=11 // pred_check_branch
        %167 = sbr.rel (%p165) target = $region20
      $region19: #{testmodel_forward.1} parent=11 // pred_region
        _
      $region20: #{testmodel_forward.1} parent=11 // pred_fallthru
        _
      // Predicated region
      $region21: #{testmodel_forward.1} parent=11 // pred_check
        %p168 = pneg %p74
      $region22: #{testmodel_forward.1} parent=11 // pred_check_branch
        %170 = sbr.rel (%p168) target = $region24
      $region23: #{testmodel_forward.1} parent=11 // pred_region
        _
      $region24: #{testmodel_forward.1} parent=11 // pred_fallthru
        _
      // Predicated region
      $region25: #{testmodel_forward.1} parent=11 // pred_check
        %p171 = pneg %p95
      $region26: #{testmodel_forward.1} parent=11 // pred_check_branch
        %173 = sbr.rel (%p171) target = $region28
      $region27: #{testmodel_forward.1} parent=11 // pred_region
        _
      $region28: #{testmodel_forward.1} parent=11 // pred_fallthru
        _
    $region12: #{testmodel_forward.1} parent=5 // pred_fallthru
      _
    %p174 = scmp.lt.s32.totalorder %s11, 2
    // Predicated region
    $region29: #{testmodel_forward.1} parent=5 // pred_check
      %p175 = pneg %p174
    $region30: #{testmodel_forward.1} parent=5 // pred_check_branch
      %177 = sbr.rel (%p175) target = $region32
    $region31: #{testmodel_forward.1} parent=5 // pred_region
      // Predicated region
      $region33: #{testmodel_forward.1} parent=31 // pred_check
        %p178 = pneg %p115
      $region34: #{testmodel_forward.1} parent=31 // pred_check_branch
        %180 = sbr.rel (%p178) target = $region36
      $region35: #{testmodel_forward.1} parent=31 // pred_region
        %p181 = scmp.lt.s32.totalorder %s11, 1
        %s182 = scalar_select %p181, %s11, 1
        %s183 = smul.addr %s182, 144
        %s184 = smul.addr %s183, 8
        %s185 = scalar_lea.vmem %s4, %s184
      $region36: #{testmodel_forward.1} parent=31 // pred_fallthru
        _
    $region32: #{testmodel_forward.1} parent=5 // pred_fallthru
      _
    %p186 = scmp.le.s32.totalorder 1, %s11
    %p187 = scmp.lt.s32.totalorder %s11, 3
    %p188 = pnand %p186, %p187
    %p189 = pneg %p188
    // Predicated region
    $region37: #{testmodel_forward.1} parent=5 // pred_check
      _
    $region38: #{testmodel_forward.1} parent=5 // pred_check_branch
      %191 = sbr.rel (%p188) target = $region40
    $region39: #{testmodel_forward.1} parent=5 // pred_region
      %s192 = ssub.s32 %s11, 1
      %p193 = pneg %p32
      %p194 = pneg %p29
      %p195 = pneg %p53
      %p196 = pneg %p50
      %p197 = pneg %p74
      %p198 = pneg %p71
      %p199 = pneg %p95
      %p200 = pneg %p92
      %p201 = scmp.lt.s32.totalorder %s16, 1
      %s202 = scalar_select %p201, %s16, 1
      %s203 = smul.addr %s202, 144
      %s204 = smul.addr %s203, 8
      %s205 = scalar_lea.vmem %s4, %s204
      %p206 = pneg %p121
      %p207 = pneg %p118
      %p208 = pneg %p147
      %p209 = pneg %p144
      %p210 = scmp.lt.s32.totalorder %s16, 1
      %s211 = scalar_select %p210, %s16, 1
      %s212 = smul.addr %s211, 4
      %s213 = scalar_lea.vmem %s5, %s212
      %p214 = scmp.lt.s32.totalorder %s16, 1
      %s215 = scalar_select %p214, %s16, 1
      %s216 = smul.addr %s215, 144
      %s217 = smul.addr %s216, 8
      %s218 = scalar_lea.vmem %s4, %s217
      %p219 = scmp.lt.s32.totalorder %s16, 1
      %s220 = scalar_select %p219, %s16, 1
      %s221 = smul.addr %s220, 4
      %s222 = scalar_lea.vmem %s5, %s221
      %v223 = vld [vmem:[%s0] sm:$0x1]
      %v224 = vld [vmem:[%s218] sm:$0xff]
      %v225 = vld [vmem:[%s218 + $0x8] sm:$0x7f]
      %v226 = vlaneseq
      %v227 = vshrl.u32 %v226, 7
      %v228 = vsub.s32 0, %v227
      %v229 = vrot.slane %v223, %v228
      %v230 = vmul.f32 %v229, %v224
      %v231 = vmul.f32 %v229, %v225
      %s232 = scalar_lea.vmem %s218, 288
      %v233 = vld [vmem:[%s232] sm:$0xff]
      %v234 = vld [vmem:[%s232 + $0x8] sm:$0x7f]
      %v235 = vmul.f32 %v229, %v233
      %v236 = vmul.f32 %v229, %v234
      %s237 = scalar_lea.vmem %s218, 576
      %v238 = vld [vmem:[%s237] sm:$0xff]
      %v239 = vld [vmem:[%s237 + $0x8] sm:$0x7f]
      %v240 = vmul.f32 %v229, %v238
      %v241 = vmul.f32 %v229, %v239
      %s242 = scalar_lea.vmem %s218, 864
      %v243 = vld [vmem:[%s242] sm:$0xff]
      %v244 = vld [vmem:[%s242 + $0x8] sm:$0x7f]
      %v245 = vmul.f32 %v229, %v243
      %v246 = vmul.f32 %v229, %v244
      %v247 = vld [vmem:[%s0 + $0x1] sm:$0x1]
      %v248 = vlaneseq
      %v249 = vshrl.u32 %v248, 7
      %v250 = vsub.s32 0, %v249
      %v251 = vrot.slane %v247, %v250
      %v252 = vmul.f32 %v251, %v233
      %v253 = vmul.f32 %v251, %v234
      %v254 = vadd.f32 %v230, %v252
      %v255 = vadd.f32 %v231, %v253
      %s256 = scalar_lea.vmem %s218, 16
      %v257 = vld [vmem:[%s256] sm:$0xff]
      %v258 = vld [vmem:[%s256 + $0x8] sm:$0x7f]
      %v259 = vmul.f32 %v251, %v257
      %v260 = vmul.f32 %v251, %v258
      %v261 = vadd.f32 %v235, %v259
      %v262 = vadd.f32 %v236, %v260
      %v263 = vmul.f32 %v251, %v243
      %v264 = vmul.f32 %v251, %v244
      %v265 = vadd.f32 %v240, %v263
      %v266 = vadd.f32 %v241, %v264
      %s267 = scalar_lea.vmem %s218, 592
      %v268 = vld [vmem:[%s267] sm:$0xff]
      %v269 = vld [vmem:[%s267 + $0x8] sm:$0x7f]
      %v270 = vmul.f32 %v251, %v268
      %v271 = vmul.f32 %v251, %v269
      %v272 = vadd.f32 %v245, %v270
      %v273 = vadd.f32 %v246, %v271
      %v274 = vld [vmem:[%s0 + $0x2] sm:$0x1]
      %v275 = vlaneseq
      %v276 = vshrl.u32 %v275, 7
      %v277 = vsub.s32 0, %v276
      %v278 = vrot.slane %v274, %v277
      %v279 = vmul.f32 %v278, %v257
      %v280 = vmul.f32 %v278, %v258
      %v281 = vadd.f32 %v254, %v279
      %v282 = vadd.f32 %v255, %v280
      %s283 = scalar_lea.vmem %s218, 304
      %v284 = vld [vmem:[%s283] sm:$0xff]
      %v285 = vld [vmem:[%s283 + $0x8] sm:$0x7f]
      %v286 = vmul.f32 %v278, %v284
      %v287 = vmul.f32 %v278, %v285
      %v288 = vadd.f32 %v261, %v286
      %v289 = vadd.f32 %v262, %v287
      %v290 = vmul.f32 %v278, %v268
      %v291 = vmul.f32 %v278, %v269
      %v292 = vadd.f32 %v265, %v290
      %v293 = vadd.f32 %v266, %v291
      %s294 = scalar_lea.vmem %s218, 880
      %v295 = vld [vmem:[%s294] sm:$0xff]
      %v296 = vld [vmem:[%s294 + $0x8] sm:$0x7f]
      %v297 = vmul.f32 %v278, %v295
      %v298 = vmul.f32 %v278, %v296
      %v299 = vadd.f32 %v272, %v297
      %v300 = vadd.f32 %v273, %v298
      %v301 = vld [vmem:[%s0 + $0x3] sm:$0x1]
      %v302 = vlaneseq
      %v303 = vshrl.u32 %v302, 7
      %v304 = vsub.s32 0, %v303
      %v305 = vrot.slane %v301, %v304
      %v306 = vmul.f32 %v305, %v284
      %v307 = vmul.f32 %v305, %v285
      %v308 = vadd.f32 %v281, %v306
      %v309 = vadd.f32 %v282, %v307
      %s310 = scalar_lea.vmem %s218, 32
      %v311 = vld [vmem:[%s310] sm:$0xff]
      %v312 = vld [vmem:[%s310 + $0x8] sm:$0x7f]
      %v313 = vmul.f32 %v305, %v311
      %v314 = vmul.f32 %v305, %v312
      %v315 = vadd.f32 %v288, %v313
      %v316 = vadd.f32 %v289, %v314
      %v317 = vmul.f32 %v305, %v295
      %v318 = vmul.f32 %v305, %v296
      %v319 = vadd.f32 %v292, %v317
      %v320 = vadd.f32 %v293, %v318
      %s321 = scalar_lea.vmem %s218, 608
      %v322 = vld [vmem:[%s321] sm:$0xff]
      %v323 = vld [vmem:[%s321 + $0x8] sm:$0x7f]
      %v324 = vmul.f32 %v305, %v322
      %v325 = vmul.f32 %v305, %v323
      %v326 = vadd.f32 %v299, %v324
      %v327 = vadd.f32 %v300, %v325
      %v328 = vld [vmem:[%s0 + $0x4] sm:$0x1]
      %v329 = vlaneseq
      %v330 = vshrl.u32 %v329, 7
      %v331 = vsub.s32 0, %v330
      %v332 = vrot.slane %v328, %v331
      %v333 = vmul.f32 %v332, %v311
      %v334 = vmul.f32 %v332, %v312
      %v335 = vadd.f32 %v308, %v333
      %v336 = vadd.f32 %v309, %v334
      %s337 = scalar_lea.vmem %s218, 320
      %v338 = vld [vmem:[%s337] sm:$0xff]
      %v339 = vld [vmem:[%s337 + $0x8] sm:$0x7f]
      %v340 = vmul.f32 %v332, %v338
      %v341 = vmul.f32 %v332, %v339
      %v342 = vadd.f32 %v315, %v340
      %v343 = vadd.f32 %v316, %v341
      %v344 = vmul.f32 %v332, %v322
      %v345 = vmul.f32 %v332, %v323
      %v346 = vadd.f32 %v319, %v344
      %v347 = vadd.f32 %v320, %v345
      %s348 = scalar_lea.vmem %s218, 896
      %v349 = vld [vmem:[%s348] sm:$0xff]
      %v350 = vld [vmem:[%s348 + $0x8] sm:$0x7f]
      %v351 = vmul.f32 %v332, %v349
      %v352 = vmul.f32 %v332, %v350
      %v353 = vadd.f32 %v326, %v351
      %v354 = vadd.f32 %v327, %v352
      %v355 = vld [vmem:[%s0 + $0x5] sm:$0x1]
      %v356 = vlaneseq
      %v357 = vshrl.u32 %v356, 7
      %v358 = vsub.s32 0, %v357
      %v359 = vrot.slane %v355, %v358
      %v360 = vmul.f32 %v359, %v238
      %v361 = vmul.f32 %v359, %v239
      %v362 = vadd.f32 %v335, %v360
      %v363 = vadd.f32 %v336, %v361
      %v364 = vmul.f32 %v359, %v243
      %v365 = vmul.f32 %v359, %v244
      %v366 = vadd.f32 %v342, %v364
      %v367 = vadd.f32 %v343, %v365
      %s368 = scalar_lea.vmem %s218, 48
      %v369 = vld [vmem:[%s368] sm:$0xff]
      %v370 = vld [vmem:[%s368 + $0x8] sm:$0x7f]
      %v371 = vmul.f32 %v359, %v369
      %v372 = vmul.f32 %v359, %v370
      %v373 = vadd.f32 %v346, %v371
      %v374 = vadd.f32 %v347, %v372
      %s375 = scalar_lea.vmem %s218, 336
      %v376 = vld [vmem:[%s375] sm:$0xff]
      %v377 = vld [vmem:[%s375 + $0x8] sm:$0x7f]
      %v378 = vmul.f32 %v359, %v376
      %v379 = vmul.f32 %v359, %v377
      %v380 = vadd.f32 %v353, %v378
      %v381 = vadd.f32 %v354, %v379
      %v382 = vld [vmem:[%s0 + $0x6] sm:$0x1]
      %v383 = vlaneseq
      %v384 = vshrl.u32 %v383, 7
      %v385 = vsub.s32 0, %v384
      %v386 = vrot.slane %v382, %v385
      %v387 = vmul.f32 %v386, %v243
      %v388 = vmul.f32 %v386, %v244
      %v389 = vadd.f32 %v362, %v387
      %v390 = vadd.f32 %v363, %v388
      %v391 = vmul.f32 %v386, %v268
      %v392 = vmul.f32 %v386, %v269
      %v393 = vadd.f32 %v366, %v391
      %v394 = vadd.f32 %v367, %v392
      %v395 = vmul.f32 %v386, %v376
      %v396 = vmul.f32 %v386, %v377
      %v397 = vadd.f32 %v373, %v395
      %v398 = vadd.f32 %v374, %v396
      %s399 = scalar_lea.vmem %s218, 64
      %v400 = vld [vmem:[%s399] sm:$0xff]
      %v401 = vld [vmem:[%s399 + $0x8] sm:$0x7f]
      %v402 = vmul.f32 %v386, %v400
      %v403 = vmul.f32 %v386, %v401
      %v404 = vadd.f32 %v380, %v402
      %v405 = vadd.f32 %v381, %v403
      %v406 = vld [vmem:[%s0 + $0x7] sm:$0x1]
      %v407 = vlaneseq
      %v408 = vshrl.u32 %v407, 7
      %v409 = vsub.s32 0, %v408
      %v410 = vrot.slane %v406, %v409
      %v411 = vmul.f32 %v410, %v268
      %v412 = vmul.f32 %v410, %v269
      %v413 = vadd.f32 %v389, %v411
      %v414 = vadd.f32 %v390, %v412
      %v415 = vmul.f32 %v410, %v295
      %v416 = vmul.f32 %v410, %v296
      %v417 = vadd.f32 %v393, %v415
      %v418 = vadd.f32 %v394, %v416
      %v419 = vmul.f32 %v410, %v400
      %v420 = vmul.f32 %v410, %v401
      %v421 = vadd.f32 %v397, %v419
      %v422 = vadd.f32 %v398, %v420
      %s423 = scalar_lea.vmem %s218, 352
      %v424 = vld [vmem:[%s423] sm:$0xff]
      %v425 = vld [vmem:[%s423 + $0x8] sm:$0x7f]
      %v426 = vmul.f32 %v410, %v424
      %v427 = vmul.f32 %v410, %v425
      %v428 = vadd.f32 %v404, %v426
      %v429 = vadd.f32 %v405, %v427
      %v430 = vld [vmem:[%s0 + $0x8] sm:$0x1]
      %v431 = vlaneseq
      %v432 = vshrl.u32 %v431, 7
      %v433 = vsub.s32 0, %v432
      %v434 = vrot.slane %v430, %v433
      %v435 = vmul.f32 %v434, %v295
      %v436 = vmul.f32 %v434, %v296
      %v437 = vadd.f32 %v413, %v435
      %v438 = vadd.f32 %v414, %v436
      %v439 = vmul.f32 %v434, %v322
      %v440 = vmul.f32 %v434, %v323
      %v441 = vadd.f32 %v417, %v439
      %v442 = vadd.f32 %v418, %v440
      %v443 = vmul.f32 %v434, %v424
      %v444 = vmul.f32 %v434, %v425
      %v445 = vadd.f32 %v421, %v443
      %v446 = vadd.f32 %v422, %v444
      %s447 = scalar_lea.vmem %s218, 80
      %v448 = vld [vmem:[%s447] sm:$0xff]
      %v449 = vld [vmem:[%s447 + $0x8] sm:$0x7f]
      %v450 = vmul.f32 %v434, %v448
      %v451 = vmul.f32 %v434, %v449
      %v452 = vadd.f32 %v428, %v450
      %v453 = vadd.f32 %v429, %v451
      %v454 = vld [vmem:[%s0 + $0x9] sm:$0x1]
      %v455 = vlaneseq
      %v456 = vshrl.u32 %v455, 7
      %v457 = vsub.s32 0, %v456
      %v458 = vrot.slane %v454, %v457
      %v459 = vmul.f32 %v458, %v322
      %v460 = vmul.f32 %v458, %v323
      %v461 = vadd.f32 %v437, %v459
      %v462 = vadd.f32 %v438, %v460
      %v463 = vmul.f32 %v458, %v349
      %v464 = vmul.f32 %v458, %v350
      %v465 = vadd.f32 %v441, %v463
      %v466 = vadd.f32 %v442, %v464
      %v467 = vmul.f32 %v458, %v448
      %v468 = vmul.f32 %v458, %v449
      %v469 = vadd.f32 %v445, %v467
      %v470 = vadd.f32 %v446, %v468
      %s471 = scalar_lea.vmem %s218, 368
      %v472 = vld [vmem:[%s471] sm:$0xff]
      %v473 = vld [vmem:[%s471 + $0x8] sm:$0x7f]
      %v474 = vmul.f32 %v458, %v472
      %v475 = vmul.f32 %v458, %v473
      %v476 = vadd.f32 %v452, %v474
      %v477 = vadd.f32 %v453, %v475
      %v478 = vld [vmem:[%s0 + $0xa] sm:$0x1]
      %v479 = vlaneseq
      %v480 = vshrl.u32 %v479, 7
      %v481 = vsub.s32 0, %v480
      %v482 = vrot.slane %v478, %v481
      %v483 = vmul.f32 %v482, %v369
      %v484 = vmul.f32 %v482, %v370
      %v485 = vadd.f32 %v461, %v483
      %v486 = vadd.f32 %v462, %v484
      %v487 = vmul.f32 %v482, %v376
      %v488 = vmul.f32 %v482, %v377
      %v489 = vadd.f32 %v465, %v487
      %v490 = vadd.f32 %v466, %v488
      %s491 = scalar_lea.vmem %s218, 624
      %v492 = vld [vmem:[%s491] sm:$0xff]
      %v493 = vld [vmem:[%s491 + $0x8] sm:$0x7f]
      %v494 = vmul.f32 %v482, %v492
      %v495 = vmul.f32 %v482, %v493
      %v496 = vadd.f32 %v469, %v494
      %v497 = vadd.f32 %v470, %v495
      %s498 = scalar_lea.vmem %s218, 912
      %v499 = vld [vmem:[%s498] sm:$0xff]
      %v500 = vld [vmem:[%s498 + $0x8] sm:$0x7f]
      %v501 = vmul.f32 %v482, %v499
      %v502 = vmul.f32 %v482, %v500
      %v503 = vadd.f32 %v476, %v501
      %v504 = vadd.f32 %v477, %v502
      %v505 = vld [vmem:[%s0 + $0xb] sm:$0x1]
      %v506 = vlaneseq
      %v507 = vshrl.u32 %v506, 7
      %v508 = vsub.s32 0, %v507
      %v509 = vrot.slane %v505, %v508
      %v510 = vmul.f32 %v509, %v376
      %v511 = vmul.f32 %v509, %v377
      %v512 = vadd.f32 %v485, %v510
      %v513 = vadd.f32 %v486, %v511
      %v514 = vmul.f32 %v509, %v400
      %v515 = vmul.f32 %v509, %v401
      %v516 = vadd.f32 %v489, %v514
      %v517 = vadd.f32 %v490, %v515
      %v518 = vmul.f32 %v509, %v499
      %v519 = vmul.f32 %v509, %v500
      %v520 = vadd.f32 %v496, %v518
      %v521 = vadd.f32 %v497, %v519
      %s522 = scalar_lea.vmem %s218, 640
      %v523 = vld [vmem:[%s522] sm:$0xff]
      %v524 = vld [vmem:[%s522 + $0x8] sm:$0x7f]
      %v525 = vmul.f32 %v509, %v523
      %v526 = vmul.f32 %v509, %v524
      %v527 = vadd.f32 %v503, %v525
      %v528 = vadd.f32 %v504, %v526
      %v529 = vld [vmem:[%s0 + $0xc] sm:$0x1]
      %v530 = vlaneseq
      %v531 = vshrl.u32 %v530, 7
      %v532 = vsub.s32 0, %v531
      %v533 = vrot.slane %v529, %v532
      %v534 = vmul.f32 %v533, %v400
      %v535 = vmul.f32 %v533, %v401
      %v536 = vadd.f32 %v512, %v534
      %v537 = vadd.f32 %v513, %v535
      %v538 = vmul.f32 %v533, %v424
      %v539 = vmul.f32 %v533, %v425
      %v540 = vadd.f32 %v516, %v538
      %v541 = vadd.f32 %v517, %v539
      %v542 = vmul.f32 %v533, %v523
      %v543 = vmul.f32 %v533, %v524
      %v544 = vadd.f32 %v520, %v542
      %v545 = vadd.f32 %v521, %v543
      %s546 = scalar_lea.vmem %s218, 928
      %v547 = vld [vmem:[%s546] sm:$0xff]
      %v548 = vld [vmem:[%s546 + $0x8] sm:$0x7f]
      %v549 = vmul.f32 %v533, %v547
      %v550 = vmul.f32 %v533, %v548
      %v551 = vadd.f32 %v527, %v549
      %v552 = vadd.f32 %v528, %v550
      %v553 = vld [vmem:[%s0 + $0xd] sm:$0x1]
      %v554 = vlaneseq
      %v555 = vshrl.u32 %v554, 7
      %v556 = vsub.s32 0, %v555
      %v557 = vrot.slane %v553, %v556
      %v558 = vmul.f32 %v557, %v424
      %v559 = vmul.f32 %v557, %v425
      %v560 = vadd.f32 %v536, %v558
      %v561 = vadd.f32 %v537, %v559
      %v562 = vmul.f32 %v557, %v448
      %v563 = vmul.f32 %v557, %v449
      %v564 = vadd.f32 %v540, %v562
      %v565 = vadd.f32 %v541, %v563
      %v566 = vmul.f32 %v557, %v547
      %v567 = vmul.f32 %v557, %v548
      %v568 = vadd.f32 %v544, %v566
      %v569 = vadd.f32 %v545, %v567
      %s570 = scalar_lea.vmem %s218, 656
      %v571 = vld [vmem:[%s570] sm:$0xff]
      %v572 = vld [vmem:[%s570 + $0x8] sm:$0x7f]
      %v573 = vmul.f32 %v557, %v571
      %v574 = vmul.f32 %v557, %v572
      %v575 = vadd.f32 %v551, %v573
      %v576 = vadd.f32 %v552, %v574
      %v577 = vld [vmem:[%s0 + $0xe] sm:$0x1]
      %v578 = vlaneseq
      %v579 = vshrl.u32 %v578, 7
      %v580 = vsub.s32 0, %v579
      %v581 = vrot.slane %v577, %v580
      %v582 = vmul.f32 %v581, %v448
      %v583 = vmul.f32 %v581, %v449
      %v584 = vadd.f32 %v560, %v582
      %v585 = vadd.f32 %v561, %v583
      %v586 = vmul.f32 %v581, %v472
      %v587 = vmul.f32 %v581, %v473
      %v588 = vadd.f32 %v564, %v586
      %v589 = vadd.f32 %v565, %v587
      %v590 = vmul.f32 %v581, %v571
      %v591 = vmul.f32 %v581, %v572
      %v592 = vadd.f32 %v568, %v590
      %v593 = vadd.f32 %v569, %v591
      %s594 = scalar_lea.vmem %s218, 944
      %v595 = vld [vmem:[%s594] sm:$0xff]
      %v596 = vld [vmem:[%s594 + $0x8] sm:$0x7f]
      %v597 = vmul.f32 %v581, %v595
      %v598 = vmul.f32 %v581, %v596
      %v599 = vadd.f32 %v575, %v597
      %v600 = vadd.f32 %v576, %v598
      %v601 = vld [vmem:[%s0 + $0xf] sm:$0x1]
      %s602 = scalar_lea.vmem %s218, 96
      %v603 = vld [vmem:[%s602] sm:$0xff]
      %v604 = vld [vmem:[%s602 + $0x8] sm:$0x7f]
      %v605 = vlaneseq
      %v606 = vshrl.u32 %v605, 7
      %v607 = vsub.s32 0, %v606
      %v608 = vrot.slane %v601, %v607
      %v609 = vmul.f32 %v608, %v603
      %v610 = vmul.f32 %v608, %v604
      %v611 = vadd.f32 %v584, %v609
      %v612 = vadd.f32 %v585, %v610
      %s613 = scalar_lea.vmem %s218, 384
      %v614 = vld [vmem:[%s613] sm:$0xff]
      %v615 = vld [vmem:[%s613 + $0x8] sm:$0x7f]
      %v616 = vmul.f32 %v608, %v614
      %v617 = vmul.f32 %v608, %v615
      %v618 = vadd.f32 %v588, %v616
      %v619 = vadd.f32 %v589, %v617
      %s620 = scalar_lea.vmem %s218, 672
      %v621 = vld [vmem:[%s620] sm:$0xff]
      %v622 = vld [vmem:[%s620 + $0x8] sm:$0x7f]
      %v623 = vmul.f32 %v608, %v621
      %v624 = vmul.f32 %v608, %v622
      %v625 = vadd.f32 %v592, %v623
      %v626 = vadd.f32 %v593, %v624
      %s627 = scalar_lea.vmem %s218, 960
      %v628 = vld [vmem:[%s627] sm:$0xff]
      %v629 = vld [vmem:[%s627 + $0x8] sm:$0x7f]
      %v630 = vmul.f32 %v608, %v628
      %v631 = vmul.f32 %v608, %v629
      %v632 = vadd.f32 %v599, %v630
      %v633 = vadd.f32 %v600, %v631
      %v634 = vld [vmem:[%s0 + $0x10] sm:$0x1]
      %v635 = vlaneseq
      %v636 = vshrl.u32 %v635, 7
      %v637 = vsub.s32 0, %v636
      %v638 = vrot.slane %v634, %v637
      %v639 = vmul.f32 %v638, %v614
      %v640 = vmul.f32 %v638, %v615
      %v641 = vadd.f32 %v611, %v639
      %v642 = vadd.f32 %v612, %v640
      %s643 = scalar_lea.vmem %s218, 112
      %v644 = vld [vmem:[%s643] sm:$0xff]
      %v645 = vld [vmem:[%s643 + $0x8] sm:$0x7f]
      %v646 = vmul.f32 %v638, %v644
      %v647 = vmul.f32 %v638, %v645
      %v648 = vadd.f32 %v618, %v646
      %v649 = vadd.f32 %v619, %v647
      %v650 = vmul.f32 %v638, %v628
      %v651 = vmul.f32 %v638, %v629
      %v652 = vadd.f32 %v625, %v650
      %v653 = vadd.f32 %v626, %v651
      %s654 = scalar_lea.vmem %s218, 688
      %v655 = vld [vmem:[%s654] sm:$0xff]
      %v656 = vld [vmem:[%s654 + $0x8] sm:$0x7f]
      %v657 = vmul.f32 %v638, %v655
      %v658 = vmul.f32 %v638, %v656
      %v659 = vadd.f32 %v632, %v657
      %v660 = vadd.f32 %v633, %v658
      %v661 = vld [vmem:[%s0 + $0x11] sm:$0x1]
      %v662 = vlaneseq
      %v663 = vshrl.u32 %v662, 7
      %v664 = vsub.s32 0, %v663
      %v665 = vrot.slane %v661, %v664
      %v666 = vmul.f32 %v665, %v644
      %v667 = vmul.f32 %v665, %v645
      %v668 = vadd.f32 %v641, %v666
      %v669 = vadd.f32 %v642, %v667
      %s670 = scalar_lea.vmem %s218, 400
      %v671 = vld [vmem:[%s670] sm:$0xff]
      %v672 = vld [vmem:[%s670 + $0x8] sm:$0x7f]
      %v673 = vmul.f32 %v665, %v671
      %v674 = vmul.f32 %v665, %v672
      %v675 = vadd.f32 %v648, %v673
      %v676 = vadd.f32 %v649, %v674
      %v677 = vmul.f32 %v665, %v655
      %v678 = vmul.f32 %v665, %v656
      %v679 = vadd.f32 %v652, %v677
      %v680 = vadd.f32 %v653, %v678
      %s681 = scalar_lea.vmem %s218, 976
      %v682 = vld [vmem:[%s681] sm:$0xff]
      %v683 = vld [vmem:[%s681 + $0x8] sm:$0x7f]
      %v684 = vmul.f32 %v665, %v682
      %v685 = vmul.f32 %v665, %v683
      %v686 = vadd.f32 %v659, %v684
      %v687 = vadd.f32 %v660, %v685
      %v688 = vld [vmem:[%s0 + $0x12] sm:$0x1]
      %v689 = vlaneseq
      %v690 = vshrl.u32 %v689, 7
      %v691 = vsub.s32 0, %v690
      %v692 = vrot.slane %v688, %v691
      %v693 = vmul.f32 %v692, %v671
      %v694 = vmul.f32 %v692, %v672
      %v695 = vadd.f32 %v668, %v693
      %v696 = vadd.f32 %v669, %v694
      %s697 = scalar_lea.vmem %s218, 128
      %v698 = vld [vmem:[%s697] sm:$0xff]
      %v699 = vld [vmem:[%s697 + $0x8] sm:$0x7f]
      %v700 = vmul.f32 %v692, %v698
      %v701 = vmul.f32 %v692, %v699
      %v702 = vadd.f32 %v675, %v700
      %v703 = vadd.f32 %v676, %v701
      %v704 = vmul.f32 %v692, %v682
      %v705 = vmul.f32 %v692, %v683
      %v706 = vadd.f32 %v679, %v704
      %v707 = vadd.f32 %v680, %v705
      %s708 = scalar_lea.vmem %s218, 704
      %v709 = vld [vmem:[%s708] sm:$0xff]
      %v710 = vld [vmem:[%s708 + $0x8] sm:$0x7f]
      %v711 = vmul.f32 %v692, %v709
      %v712 = vmul.f32 %v692, %v710
      %v713 = vadd.f32 %v686, %v711
      %v714 = vadd.f32 %v687, %v712
      %v715 = vld [vmem:[%s0 + $0x13] sm:$0x1]
      %v716 = vlaneseq
      %v717 = vshrl.u32 %v716, 7
      %v718 = vsub.s32 0, %v717
      %v719 = vrot.slane %v715, %v718
      %v720 = vmul.f32 %v719, %v698
      %v721 = vmul.f32 %v719, %v699
      %v722 = vadd.f32 %v695, %v720
      %v723 = vadd.f32 %v696, %v721
      %s724 = scalar_lea.vmem %s218, 416
      %v725 = vld [vmem:[%s724] sm:$0xff]
      %v726 = vld [vmem:[%s724 + $0x8] sm:$0x7f]
      %v727 = vmul.f32 %v719, %v725
      %v728 = vmul.f32 %v719, %v726
      %v729 = vadd.f32 %v702, %v727
      %v730 = vadd.f32 %v703, %v728
      %v731 = vmul.f32 %v719, %v709
      %v732 = vmul.f32 %v719, %v710
      %v733 = vadd.f32 %v706, %v731
      %v734 = vadd.f32 %v707, %v732
      %s735 = scalar_lea.vmem %s218, 992
      %v736 = vld [vmem:[%s735] sm:$0xff]
      %v737 = vld [vmem:[%s735 + $0x8] sm:$0x7f]
      %v738 = vmul.f32 %v719, %v736
      %v739 = vmul.f32 %v719, %v737
      %v740 = vadd.f32 %v713, %v738
      %v741 = vadd.f32 %v714, %v739
      %v742 = vld [vmem:[%s0 + $0x14] sm:$0x1]
      %v743 = vlaneseq
      %v744 = vshrl.u32 %v743, 7
      %v745 = vsub.s32 0, %v744
      %v746 = vrot.slane %v742, %v745
      %v747 = vmul.f32 %v746, %v621
      %v748 = vmul.f32 %v746, %v622
      %v749 = vadd.f32 %v722, %v747
      %v750 = vadd.f32 %v723, %v748
      %v751 = vmul.f32 %v746, %v628
      %v752 = vmul.f32 %v746, %v629
      %v753 = vadd.f32 %v729, %v751
      %v754 = vadd.f32 %v730, %v752
      %s755 = scalar_lea.vmem %s218, 144
      %v756 = vld [vmem:[%s755] sm:$0xff]
      %v757 = vld [vmem:[%s755 + $0x8] sm:$0x7f]
      %v758 = vmul.f32 %v746, %v756
      %v759 = vmul.f32 %v746, %v757
      %v760 = vadd.f32 %v733, %v758
      %v761 = vadd.f32 %v734, %v759
      %s762 = scalar_lea.vmem %s218, 432
      %v763 = vld [vmem:[%s762] sm:$0xff]
      %v764 = vld [vmem:[%s762 + $0x8] sm:$0x7f]
      %v765 = vmul.f32 %v746, %v763
      %v766 = vmul.f32 %v746, %v764
      %v767 = vadd.f32 %v740, %v765
      %v768 = vadd.f32 %v741, %v766
      %v769 = vld [vmem:[%s0 + $0x15] sm:$0x1]
      %v770 = vlaneseq
      %v771 = vshrl.u32 %v770, 7
      %v772 = vsub.s32 0, %v771
      %v773 = vrot.slane %v769, %v772
      %v774 = vmul.f32 %v773, %v628
      %v775 = vmul.f32 %v773, %v629
      %v776 = vadd.f32 %v749, %v774
      %v777 = vadd.f32 %v750, %v775
      %v778 = vmul.f32 %v773, %v655
      %v779 = vmul.f32 %v773, %v656
      %v780 = vadd.f32 %v753, %v778
      %v781 = vadd.f32 %v754, %v779
      %v782 = vmul.f32 %v773, %v763
      %v783 = vmul.f32 %v773, %v764
      %v784 = vadd.f32 %v760, %v782
      %v785 = vadd.f32 %v761, %v783
      %s786 = scalar_lea.vmem %s218, 160
      %v787 = vld [vmem:[%s786] sm:$0xff]
      %v788 = vld [vmem:[%s786 + $0x8] sm:$0x7f]
      %v789 = vmul.f32 %v773, %v787
      %v790 = vmul.f32 %v773, %v788
      %v791 = vadd.f32 %v767, %v789
      %v792 = vadd.f32 %v768, %v790
      %v793 = vld [vmem:[%s0 + $0x16] sm:$0x1]
      %v794 = vlaneseq
      %v795 = vshrl.u32 %v794, 7
      %v796 = vsub.s32 0, %v795
      %v797 = vrot.slane %v793, %v796
      %v798 = vmul.f32 %v797, %v655
      %v799 = vmul.f32 %v797, %v656
      %v800 = vadd.f32 %v776, %v798
      %v801 = vadd.f32 %v777, %v799
      %v802 = vmul.f32 %v797, %v682
      %v803 = vmul.f32 %v797, %v683
      %v804 = vadd.f32 %v780, %v802
      %v805 = vadd.f32 %v781, %v803
      %v806 = vmul.f32 %v797, %v787
      %v807 = vmul.f32 %v797, %v788
      %v808 = vadd.f32 %v784, %v806
      %v809 = vadd.f32 %v785, %v807
      %s810 = scalar_lea.vmem %s218, 448
      %v811 = vld [vmem:[%s810] sm:$0xff]
      %v812 = vld [vmem:[%s810 + $0x8] sm:$0x7f]
      %v813 = vmul.f32 %v797, %v811
      %v814 = vmul.f32 %v797, %v812
      %v815 = vadd.f32 %v791, %v813
      %v816 = vadd.f32 %v792, %v814
      %v817 = vld [vmem:[%s0 + $0x17] sm:$0x1]
      %v818 = vlaneseq
      %v819 = vshrl.u32 %v818, 7
      %v820 = vsub.s32 0, %v819
      %v821 = vrot.slane %v817, %v820
      %v822 = vmul.f32 %v821, %v682
      %v823 = vmul.f32 %v821, %v683
      %v824 = vadd.f32 %v800, %v822
      %v825 = vadd.f32 %v801, %v823
      %v826 = vmul.f32 %v821, %v709
      %v827 = vmul.f32 %v821, %v710
      %v828 = vadd.f32 %v804, %v826
      %v829 = vadd.f32 %v805, %v827
      %v830 = vmul.f32 %v821, %v811
      %v831 = vmul.f32 %v821, %v812
      %v832 = vadd.f32 %v808, %v830
      %v833 = vadd.f32 %v809, %v831
      %s834 = scalar_lea.vmem %s218, 176
      %v835 = vld [vmem:[%s834] sm:$0xff]
      %v836 = vld [vmem:[%s834 + $0x8] sm:$0x7f]
      %v837 = vmul.f32 %v821, %v835
      %v838 = vmul.f32 %v821, %v836
      %v839 = vadd.f32 %v815, %v837
      %v840 = vadd.f32 %v816, %v838
      %v841 = vld [vmem:[%s0 + $0x18] sm:$0x1]
      %v842 = vlaneseq
      %v843 = vshrl.u32 %v842, 7
      %v844 = vsub.s32 0, %v843
      %v845 = vrot.slane %v841, %v844
      %v846 = vmul.f32 %v845, %v709
      %v847 = vmul.f32 %v845, %v710
      %v848 = vadd.f32 %v824, %v846
      %v849 = vadd.f32 %v825, %v847
      %v850 = vmul.f32 %v845, %v736
      %v851 = vmul.f32 %v845, %v737
      %v852 = vadd.f32 %v828, %v850
      %v853 = vadd.f32 %v829, %v851
      %v854 = vmul.f32 %v845, %v835
      %v855 = vmul.f32 %v845, %v836
      %v856 = vadd.f32 %v832, %v854
      %v857 = vadd.f32 %v833, %v855
      %s858 = scalar_lea.vmem %s218, 464
      %v859 = vld [vmem:[%s858] sm:$0xff]
      %v860 = vld [vmem:[%s858 + $0x8] sm:$0x7f]
      %v861 = vmul.f32 %v845, %v859
      %v862 = vmul.f32 %v845, %v860
      %v863 = vadd.f32 %v839, %v861
      %v864 = vadd.f32 %v840, %v862
      %v865 = vld [vmem:[%s0 + $0x19] sm:$0x1]
      %v866 = vlaneseq
      %v867 = vshrl.u32 %v866, 7
      %v868 = vsub.s32 0, %v867
      %v869 = vrot.slane %v865, %v868
      %v870 = vmul.f32 %v869, %v756
      %v871 = vmul.f32 %v869, %v757
      %v872 = vadd.f32 %v848, %v870
      %v873 = vadd.f32 %v849, %v871
      %v874 = vmul.f32 %v869, %v763
      %v875 = vmul.f32 %v869, %v764
      %v876 = vadd.f32 %v852, %v874
      %v877 = vadd.f32 %v853, %v875
      %s878 = scalar_lea.vmem %s218, 720
      %v879 = vld [vmem:[%s878] sm:$0xff]
      %v880 = vld [vmem:[%s878 + $0x8] sm:$0x7f]
      %v881 = vmul.f32 %v869, %v879
      %v882 = vmul.f32 %v869, %v880
      %v883 = vadd.f32 %v856, %v881
      %v884 = vadd.f32 %v857, %v882
      %s885 = scalar_lea.vmem %s218, 1008
      %v886 = vld [vmem:[%s885] sm:$0xff]
      %v887 = vld [vmem:[%s885 + $0x8] sm:$0x7f]
      %v888 = vmul.f32 %v869, %v886
      %v889 = vmul.f32 %v869, %v887
      %v890 = vadd.f32 %v863, %v888
      %v891 = vadd.f32 %v864, %v889
      %v892 = vld [vmem:[%s0 + $0x1a] sm:$0x1]
      %v893 = vlaneseq
      %v894 = vshrl.u32 %v893, 7
      %v895 = vsub.s32 0, %v894
      %v896 = vrot.slane %v892, %v895
      %v897 = vmul.f32 %v896, %v763
      %v898 = vmul.f32 %v896, %v764
      %v899 = vadd.f32 %v872, %v897
      %v900 = vadd.f32 %v873, %v898
      %v901 = vmul.f32 %v896, %v787
      %v902 = vmul.f32 %v896, %v788
      %v903 = vadd.f32 %v876, %v901
      %v904 = vadd.f32 %v877, %v902
      %v905 = vmul.f32 %v896, %v886
      %v906 = vmul.f32 %v896, %v887
      %v907 = vadd.f32 %v883, %v905
      %v908 = vadd.f32 %v884, %v906
      %s909 = scalar_lea.vmem %s218, 736
      %v910 = vld [vmem:[%s909] sm:$0xff]
      %v911 = vld [vmem:[%s909 + $0x8] sm:$0x7f]
      %v912 = vmul.f32 %v896, %v910
      %v913 = vmul.f32 %v896, %v911
      %v914 = vadd.f32 %v890, %v912
      %v915 = vadd.f32 %v891, %v913
      %v916 = vld [vmem:[%s0 + $0x1b] sm:$0x1]
      %v917 = vlaneseq
      %v918 = vshrl.u32 %v917, 7
      %v919 = vsub.s32 0, %v918
      %v920 = vrot.slane %v916, %v919
      %v921 = vmul.f32 %v920, %v787
      %v922 = vmul.f32 %v920, %v788
      %v923 = vadd.f32 %v899, %v921
      %v924 = vadd.f32 %v900, %v922
      %v925 = vmul.f32 %v920, %v811
      %v926 = vmul.f32 %v920, %v812
      %v927 = vadd.f32 %v903, %v925
      %v928 = vadd.f32 %v904, %v926
      %v929 = vmul.f32 %v920, %v910
      %v930 = vmul.f32 %v920, %v911
      %v931 = vadd.f32 %v907, %v929
      %v932 = vadd.f32 %v908, %v930
      %s933 = scalar_lea.vmem %s218, 1024
      %v934 = vld [vmem:[%s933] sm:$0xff]
      %v935 = vld [vmem:[%s933 + $0x8] sm:$0x7f]
      %v936 = vmul.f32 %v920, %v934
      %v937 = vmul.f32 %v920, %v935
      %v938 = vadd.f32 %v914, %v936
      %v939 = vadd.f32 %v915, %v937
      %v940 = vld [vmem:[%s0 + $0x1c] sm:$0x1]
      %v941 = vlaneseq
      %v942 = vshrl.u32 %v941, 7
      %v943 = vsub.s32 0, %v942
      %v944 = vrot.slane %v940, %v943
      %v945 = vmul.f32 %v944, %v811
      %v946 = vmul.f32 %v944, %v812
      %v947 = vadd.f32 %v923, %v945
      %v948 = vadd.f32 %v924, %v946
      %v949 = vmul.f32 %v944, %v835
      %v950 = vmul.f32 %v944, %v836
      %v951 = vadd.f32 %v927, %v949
      %v952 = vadd.f32 %v928, %v950
      %v953 = vmul.f32 %v944, %v934
      %v954 = vmul.f32 %v944, %v935
      %v955 = vadd.f32 %v931, %v953
      %v956 = vadd.f32 %v932, %v954
      %s957 = scalar_lea.vmem %s218, 752
      %v958 = vld [vmem:[%s957] sm:$0xff]
      %v959 = vld [vmem:[%s957 + $0x8] sm:$0x7f]
      %v960 = vmul.f32 %v944, %v958
      %v961 = vmul.f32 %v944, %v959
      %v962 = vadd.f32 %v938, %v960
      %v963 = vadd.f32 %v939, %v961
      %v964 = vld [vmem:[%s0 + $0x1d] sm:$0x1]
      %v965 = vlaneseq
      %v966 = vshrl.u32 %v965, 7
      %v967 = vsub.s32 0, %v966
      %v968 = vrot.slane %v964, %v967
      %v969 = vmul.f32 %v968, %v835
      %v970 = vmul.f32 %v968, %v836
      %v971 = vadd.f32 %v947, %v969
      %v972 = vadd.f32 %v948, %v970
      %v973 = vmul.f32 %v968, %v859
      %v974 = vmul.f32 %v968, %v860
      %v975 = vadd.f32 %v951, %v973
      %v976 = vadd.f32 %v952, %v974
      %v977 = vmul.f32 %v968, %v958
      %v978 = vmul.f32 %v968, %v959
      %v979 = vadd.f32 %v955, %v977
      %v980 = vadd.f32 %v956, %v978
      %s981 = scalar_lea.vmem %s218, 1040
      %v982 = vld [vmem:[%s981] sm:$0xff]
      %v983 = vld [vmem:[%s981 + $0x8] sm:$0x7f]
      %v984 = vmul.f32 %v968, %v982
      %v985 = vmul.f32 %v968, %v983
      %v986 = vadd.f32 %v962, %v984
      %v987 = vadd.f32 %v963, %v985
      %v988 = vld [vmem:[%s0 + $0x1e] sm:$0x1]
      %s989 = scalar_lea.vmem %s218, 192
      %v990 = vld [vmem:[%s989] sm:$0xff]
      %v991 = vld [vmem:[%s989 + $0x8] sm:$0x7f]
      %v992 = vlaneseq
      %v993 = vshrl.u32 %v992, 7
      %v994 = vsub.s32 0, %v993
      %v995 = vrot.slane %v988, %v994
      %v996 = vmul.f32 %v995, %v990
      %v997 = vmul.f32 %v995, %v991
      %v998 = vadd.f32 %v971, %v996
      %v999 = vadd.f32 %v972, %v997
      %s1000 = scalar_lea.vmem %s218, 480
      %v1001 = vld [vmem:[%s1000] sm:$0xff]
      %v1002 = vld [vmem:[%s1000 + $0x8] sm:$0x7f]
      %v1003 = vmul.f32 %v995, %v1001
      %v1004 = vmul.f32 %v995, %v1002
      %v1005 = vadd.f32 %v975, %v1003
      %v1006 = vadd.f32 %v976, %v1004
      %s1007 = scalar_lea.vmem %s218, 768
      %v1008 = vld [vmem:[%s1007] sm:$0xff]
      %v1009 = vld [vmem:[%s1007 + $0x8] sm:$0x7f]
      %v1010 = vmul.f32 %v995, %v1008
      %v1011 = vmul.f32 %v995, %v1009
      %v1012 = vadd.f32 %v979, %v1010
      %v1013 = vadd.f32 %v980, %v1011
      %s1014 = scalar_lea.vmem %s218, 1056
      %v1015 = vld [vmem:[%s1014] sm:$0xff]
      %v1016 = vld [vmem:[%s1014 + $0x8] sm:$0x7f]
      %v1017 = vmul.f32 %v995, %v1015
      %v1018 = vmul.f32 %v995, %v1016
      %v1019 = vadd.f32 %v986, %v1017
      %v1020 = vadd.f32 %v987, %v1018
      %v1021 = vld [vmem:[%s0 + $0x1f] sm:$0x1]
      %v1022 = vlaneseq
      %v1023 = vshrl.u32 %v1022, 7
      %v1024 = vsub.s32 0, %v1023
      %v1025 = vrot.slane %v1021, %v1024
      %v1026 = vmul.f32 %v1025, %v1001
      %v1027 = vmul.f32 %v1025, %v1002
      %v1028 = vadd.f32 %v998, %v1026
      %v1029 = vadd.f32 %v999, %v1027
      %s1030 = scalar_lea.vmem %s218, 208
      %v1031 = vld [vmem:[%s1030] sm:$0xff]
      %v1032 = vld [vmem:[%s1030 + $0x8] sm:$0x7f]
      %v1033 = vmul.f32 %v1025, %v1031
      %v1034 = vmul.f32 %v1025, %v1032
      %v1035 = vadd.f32 %v1005, %v1033
      %v1036 = vadd.f32 %v1006, %v1034
      %v1037 = vmul.f32 %v1025, %v1015
      %v1038 = vmul.f32 %v1025, %v1016
      %v1039 = vadd.f32 %v1012, %v1037
      %v1040 = vadd.f32 %v1013, %v1038
      %s1041 = scalar_lea.vmem %s218, 784
      %v1042 = vld [vmem:[%s1041] sm:$0xff]
      %v1043 = vld [vmem:[%s1041 + $0x8] sm:$0x7f]
      %v1044 = vmul.f32 %v1025, %v1042
      %v1045 = vmul.f32 %v1025, %v1043
      %v1046 = vadd.f32 %v1019, %v1044
      %v1047 = vadd.f32 %v1020, %v1045
      %v1048 = vld [vmem:[%s0 + $0x20] sm:$0x1]
      %v1049 = vlaneseq
      %v1050 = vshrl.u32 %v1049, 7
      %v1051 = vsub.s32 0, %v1050
      %v1052 = vrot.slane %v1048, %v1051
      %v1053 = vmul.f32 %v1052, %v1031
      %v1054 = vmul.f32 %v1052, %v1032
      %v1055 = vadd.f32 %v1028, %v1053
      %v1056 = vadd.f32 %v1029, %v1054
      %s1057 = scalar_lea.vmem %s218, 496
      %v1058 = vld [vmem:[%s1057] sm:$0xff]
      %v1059 = vld [vmem:[%s1057 + $0x8] sm:$0x7f]
      %v1060 = vmul.f32 %v1052, %v1058
      %v1061 = vmul.f32 %v1052, %v1059
      %v1062 = vadd.f32 %v1035, %v1060
      %v1063 = vadd.f32 %v1036, %v1061
      %v1064 = vmul.f32 %v1052, %v1042
      %v1065 = vmul.f32 %v1052, %v1043
      %v1066 = vadd.f32 %v1039, %v1064
      %v1067 = vadd.f32 %v1040, %v1065
      %s1068 = scalar_lea.vmem %s218, 1072
      %v1069 = vld [vmem:[%s1068] sm:$0xff]
      %v1070 = vld [vmem:[%s1068 + $0x8] sm:$0x7f]
      %v1071 = vmul.f32 %v1052, %v1069
      %v1072 = vmul.f32 %v1052, %v1070
      %v1073 = vadd.f32 %v1046, %v1071
      %v1074 = vadd.f32 %v1047, %v1072
      %v1075 = vld [vmem:[%s0 + $0x21] sm:$0x1]
      %v1076 = vlaneseq
      %v1077 = vshrl.u32 %v1076, 7
      %v1078 = vsub.s32 0, %v1077
      %v1079 = vrot.slane %v1075, %v1078
      %v1080 = vmul.f32 %v1079, %v1058
      %v1081 = vmul.f32 %v1079, %v1059
      %v1082 = vadd.f32 %v1055, %v1080
      %v1083 = vadd.f32 %v1056, %v1081
      %s1084 = scalar_lea.vmem %s218, 224
      %v1085 = vld [vmem:[%s1084] sm:$0xff]
      %v1086 = vld [vmem:[%s1084 + $0x8] sm:$0x7f]
      %v1087 = vmul.f32 %v1079, %v1085
      %v1088 = vmul.f32 %v1079, %v1086
      %v1089 = vadd.f32 %v1062, %v1087
      %v1090 = vadd.f32 %v1063, %v1088
      %v1091 = vmul.f32 %v1079, %v1069
      %v1092 = vmul.f32 %v1079, %v1070
      %v1093 = vadd.f32 %v1066, %v1091
      %v1094 = vadd.f32 %v1067, %v1092
      %s1095 = scalar_lea.vmem %s218, 800
      %v1096 = vld [vmem:[%s1095] sm:$0xff]
      %v1097 = vld [vmem:[%s1095 + $0x8] sm:$0x7f]
      %v1098 = vmul.f32 %v1079, %v1096
      %v1099 = vmul.f32 %v1079, %v1097
      %v1100 = vadd.f32 %v1073, %v1098
      %v1101 = vadd.f32 %v1074, %v1099
      %v1102 = vld [vmem:[%s0 + $0x22] sm:$0x1]
      %v1103 = vlaneseq
      %v1104 = vshrl.u32 %v1103, 7
      %v1105 = vsub.s32 0, %v1104
      %v1106 = vrot.slane %v1102, %v1105
      %v1107 = vmul.f32 %v1106, %v1085
      %v1108 = vmul.f32 %v1106, %v1086
      %v1109 = vadd.f32 %v1082, %v1107
      %v1110 = vadd.f32 %v1083, %v1108
      %s1111 = scalar_lea.vmem %s218, 512
      %v1112 = vld [vmem:[%s1111] sm:$0xff]
      %v1113 = vld [vmem:[%s1111 + $0x8] sm:$0x7f]
      %v1114 = vmul.f32 %v1106, %v1112
      %v1115 = vmul.f32 %v1106, %v1113
      %v1116 = vadd.f32 %v1089, %v1114
      %v1117 = vadd.f32 %v1090, %v1115
      %v1118 = vmul.f32 %v1106, %v1096
      %v1119 = vmul.f32 %v1106, %v1097
      %v1120 = vadd.f32 %v1093, %v1118
      %v1121 = vadd.f32 %v1094, %v1119
      %s1122 = scalar_lea.vmem %s218, 1088
      %v1123 = vld [vmem:[%s1122] sm:$0xff]
      %v1124 = vld [vmem:[%s1122 + $0x8] sm:$0x7f]
      %v1125 = vmul.f32 %v1106, %v1123
      %v1126 = vmul.f32 %v1106, %v1124
      %v1127 = vadd.f32 %v1100, %v1125
      %v1128 = vadd.f32 %v1101, %v1126
      %v1129 = vld [vmem:[%s0 + $0x23] sm:$0x1]
      %v1130 = vlaneseq
      %v1131 = vshrl.u32 %v1130, 7
      %v1132 = vsub.s32 0, %v1131
      %v1133 = vrot.slane %v1129, %v1132
      %v1134 = vmul.f32 %v1133, %v1008
      %v1135 = vmul.f32 %v1133, %v1009
      %v1136 = vadd.f32 %v1109, %v1134
      %v1137 = vadd.f32 %v1110, %v1135
      %v1138 = vmul.f32 %v1133, %v1015
      %v1139 = vmul.f32 %v1133, %v1016
      %v1140 = vadd.f32 %v1116, %v1138
      %v1141 = vadd.f32 %v1117, %v1139
      %s1142 = scalar_lea.vmem %s218, 240
      %v1143 = vld [vmem:[%s1142] sm:$0xff]
      %v1144 = vld [vmem:[%s1142 + $0x8] sm:$0x7f]
      %v1145 = vmul.f32 %v1133, %v1143
      %v1146 = vmul.f32 %v1133, %v1144
      %v1147 = vadd.f32 %v1120, %v1145
      %v1148 = vadd.f32 %v1121, %v1146
      %s1149 = scalar_lea.vmem %s218, 528
      %v1150 = vld [vmem:[%s1149] sm:$0xff]
      %v1151 = vld [vmem:[%s1149 + $0x8] sm:$0x7f]
      %v1152 = vmul.f32 %v1133, %v1150
      %v1153 = vmul.f32 %v1133, %v1151
      %v1154 = vadd.f32 %v1127, %v1152
      %v1155 = vadd.f32 %v1128, %v1153
      %v1156 = vld [vmem:[%s0 + $0x24] sm:$0x1]
      %v1157 = vlaneseq
      %v1158 = vshrl.u32 %v1157, 7
      %v1159 = vsub.s32 0, %v1158
      %v1160 = vrot.slane %v1156, %v1159
      %v1161 = vmul.f32 %v1160, %v1015
      %v1162 = vmul.f32 %v1160, %v1016
      %v1163 = vadd.f32 %v1136, %v1161
      %v1164 = vadd.f32 %v1137, %v1162
      %v1165 = vmul.f32 %v1160, %v1042
      %v1166 = vmul.f32 %v1160, %v1043
      %v1167 = vadd.f32 %v1140, %v1165
      %v1168 = vadd.f32 %v1141, %v1166
      %v1169 = vmul.f32 %v1160, %v1150
      %v1170 = vmul.f32 %v1160, %v1151
      %v1171 = vadd.f32 %v1147, %v1169
      %v1172 = vadd.f32 %v1148, %v1170
      %s1173 = scalar_lea.vmem %s218, 256
      %v1174 = vld [vmem:[%s1173] sm:$0xff]
      %v1175 = vld [vmem:[%s1173 + $0x8] sm:$0x7f]
      %v1176 = vmul.f32 %v1160, %v1174
      %v1177 = vmul.f32 %v1160, %v1175
      %v1178 = vadd.f32 %v1154, %v1176
      %v1179 = vadd.f32 %v1155, %v1177
      %v1180 = vld [vmem:[%s0 + $0x25] sm:$0x1]
      %v1181 = vlaneseq
      %v1182 = vshrl.u32 %v1181, 7
      %v1183 = vsub.s32 0, %v1182
      %v1184 = vrot.slane %v1180, %v1183
      %v1185 = vmul.f32 %v1184, %v1042
      %v1186 = vmul.f32 %v1184, %v1043
      %v1187 = vadd.f32 %v1163, %v1185
      %v1188 = vadd.f32 %v1164, %v1186
      %v1189 = vmul.f32 %v1184, %v1069
      %v1190 = vmul.f32 %v1184, %v1070
      %v1191 = vadd.f32 %v1167, %v1189
      %v1192 = vadd.f32 %v1168, %v1190
      %v1193 = vmul.f32 %v1184, %v1174
      %v1194 = vmul.f32 %v1184, %v1175
      %v1195 = vadd.f32 %v1171, %v1193
      %v1196 = vadd.f32 %v1172, %v1194
      %s1197 = scalar_lea.vmem %s218, 544
      %v1198 = vld [vmem:[%s1197] sm:$0xff]
      %v1199 = vld [vmem:[%s1197 + $0x8] sm:$0x7f]
      %v1200 = vmul.f32 %v1184, %v1198
      %v1201 = vmul.f32 %v1184, %v1199
      %v1202 = vadd.f32 %v1178, %v1200
      %v1203 = vadd.f32 %v1179, %v1201
      %v1204 = vld [vmem:[%s0 + $0x26] sm:$0x1]
      %v1205 = vlaneseq
      %v1206 = vshrl.u32 %v1205, 7
      %v1207 = vsub.s32 0, %v1206
      %v1208 = vrot.slane %v1204, %v1207
      %v1209 = vmul.f32 %v1208, %v1069
      %v1210 = vmul.f32 %v1208, %v1070
      %v1211 = vadd.f32 %v1187, %v1209
      %v1212 = vadd.f32 %v1188, %v1210
      %v1213 = vmul.f32 %v1208, %v1096
      %v1214 = vmul.f32 %v1208, %v1097
      %v1215 = vadd.f32 %v1191, %v1213
      %v1216 = vadd.f32 %v1192, %v1214
      %v1217 = vmul.f32 %v1208, %v1198
      %v1218 = vmul.f32 %v1208, %v1199
      %v1219 = vadd.f32 %v1195, %v1217
      %v1220 = vadd.f32 %v1196, %v1218
      %s1221 = scalar_lea.vmem %s218, 272
      %v1222 = vld [vmem:[%s1221] sm:$0xff]
      %v1223 = vld [vmem:[%s1221 + $0x8] sm:$0x7f]
      %v1224 = vmul.f32 %v1208, %v1222
      %v1225 = vmul.f32 %v1208, %v1223
      %v1226 = vadd.f32 %v1202, %v1224
      %v1227 = vadd.f32 %v1203, %v1225
      %v1228 = vld [vmem:[%s0 + $0x27] sm:$0x1]
      %v1229 = vlaneseq
      %v1230 = vshrl.u32 %v1229, 7
      %v1231 = vsub.s32 0, %v1230
      %v1232 = vrot.slane %v1228, %v1231
      %v1233 = vmul.f32 %v1232, %v1096
      %v1234 = vmul.f32 %v1232, %v1097
      %v1235 = vadd.f32 %v1211, %v1233
      %v1236 = vadd.f32 %v1212, %v1234
      %v1237 = vmul.f32 %v1232, %v1123
      %v1238 = vmul.f32 %v1232, %v1124
      %v1239 = vadd.f32 %v1215, %v1237
      %v1240 = vadd.f32 %v1216, %v1238
      %v1241 = vmul.f32 %v1232, %v1222
      %v1242 = vmul.f32 %v1232, %v1223
      %v1243 = vadd.f32 %v1219, %v1241
      %v1244 = vadd.f32 %v1220, %v1242
      %s1245 = scalar_lea.vmem %s218, 560
      %v1246 = vld [vmem:[%s1245] sm:$0xff]
      %v1247 = vld [vmem:[%s1245 + $0x8] sm:$0x7f]
      %v1248 = vmul.f32 %v1232, %v1246
      %v1249 = vmul.f32 %v1232, %v1247
      %v1250 = vadd.f32 %v1226, %v1248
      %v1251 = vadd.f32 %v1227, %v1249
      %v1252 = vld [vmem:[%s0 + $0x28] sm:$0x1]
      %v1253 = vlaneseq
      %v1254 = vshrl.u32 %v1253, 7
      %v1255 = vsub.s32 0, %v1254
      %v1256 = vrot.slane %v1252, %v1255
      %v1257 = vmul.f32 %v1256, %v1143
      %v1258 = vmul.f32 %v1256, %v1144
      %v1259 = vadd.f32 %v1235, %v1257
      %v1260 = vadd.f32 %v1236, %v1258
      %v1261 = vmul.f32 %v1256, %v1150
      %v1262 = vmul.f32 %v1256, %v1151
      %v1263 = vadd.f32 %v1239, %v1261
      %v1264 = vadd.f32 %v1240, %v1262
      %s1265 = scalar_lea.vmem %s218, 816
      %v1266 = vld [vmem:[%s1265] sm:$0xff]
      %v1267 = vld [vmem:[%s1265 + $0x8] sm:$0x7f]
      %v1268 = vmul.f32 %v1256, %v1266
      %v1269 = vmul.f32 %v1256, %v1267
      %v1270 = vadd.f32 %v1243, %v1268
      %v1271 = vadd.f32 %v1244, %v1269
      %s1272 = scalar_lea.vmem %s218, 1104
      %v1273 = vld [vmem:[%s1272] sm:$0xff]
      %v1274 = vld [vmem:[%s1272 + $0x8] sm:$0x7f]
      %v1275 = vmul.f32 %v1256, %v1273
      %v1276 = vmul.f32 %v1256, %v1274
      %v1277 = vadd.f32 %v1250, %v1275
      %v1278 = vadd.f32 %v1251, %v1276
      %v1279 = vld [vmem:[%s0 + $0x29] sm:$0x1]
      %v1280 = vlaneseq
      %v1281 = vshrl.u32 %v1280, 7
      %v1282 = vsub.s32 0, %v1281
      %v1283 = vrot.slane %v1279, %v1282
      %v1284 = vmul.f32 %v1283, %v1150
      %v1285 = vmul.f32 %v1283, %v1151
      %v1286 = vadd.f32 %v1259, %v1284
      %v1287 = vadd.f32 %v1260, %v1285
      %v1288 = vmul.f32 %v1283, %v1174
      %v1289 = vmul.f32 %v1283, %v1175
      %v1290 = vadd.f32 %v1263, %v1288
      %v1291 = vadd.f32 %v1264, %v1289
      %v1292 = vmul.f32 %v1283, %v1273
      %v1293 = vmul.f32 %v1283, %v1274
      %v1294 = vadd.f32 %v1270, %v1292
      %v1295 = vadd.f32 %v1271, %v1293
      %s1296 = scalar_lea.vmem %s218, 832
      %v1297 = vld [vmem:[%s1296] sm:$0xff]
      %v1298 = vld [vmem:[%s1296 + $0x8] sm:$0x7f]
      %v1299 = vmul.f32 %v1283, %v1297
      %v1300 = vmul.f32 %v1283, %v1298
      %v1301 = vadd.f32 %v1277, %v1299
      %v1302 = vadd.f32 %v1278, %v1300
      %v1303 = vld [vmem:[%s0 + $0x2a] sm:$0x1]
      %v1304 = vlaneseq
      %v1305 = vshrl.u32 %v1304, 7
      %v1306 = vsub.s32 0, %v1305
      %v1307 = vrot.slane %v1303, %v1306
      %v1308 = vmul.f32 %v1307, %v1174
      %v1309 = vmul.f32 %v1307, %v1175
      %v1310 = vadd.f32 %v1286, %v1308
      %v1311 = vadd.f32 %v1287, %v1309
      %v1312 = vmul.f32 %v1307, %v1198
      %v1313 = vmul.f32 %v1307, %v1199
      %v1314 = vadd.f32 %v1290, %v1312
      %v1315 = vadd.f32 %v1291, %v1313
      %v1316 = vmul.f32 %v1307, %v1297
      %v1317 = vmul.f32 %v1307, %v1298
      %v1318 = vadd.f32 %v1294, %v1316
      %v1319 = vadd.f32 %v1295, %v1317
      %s1320 = scalar_lea.vmem %s218, 1120
      %v1321 = vld [vmem:[%s1320] sm:$0xff]
      %v1322 = vld [vmem:[%s1320 + $0x8] sm:$0x7f]
      %v1323 = vmul.f32 %v1307, %v1321
      %v1324 = vmul.f32 %v1307, %v1322
      %v1325 = vadd.f32 %v1301, %v1323
      %v1326 = vadd.f32 %v1302, %v1324
      %v1327 = vld [vmem:[%s0 + $0x2b] sm:$0x1]
      %v1328 = vlaneseq
      %v1329 = vshrl.u32 %v1328, 7
      %v1330 = vsub.s32 0, %v1329
      %v1331 = vrot.slane %v1327, %v1330
      %v1332 = vmul.f32 %v1331, %v1198
      %v1333 = vmul.f32 %v1331, %v1199
      %v1334 = vadd.f32 %v1310, %v1332
      %v1335 = vadd.f32 %v1311, %v1333
      %v1336 = vmul.f32 %v1331, %v1222
      %v1337 = vmul.f32 %v1331, %v1223
      %v1338 = vadd.f32 %v1314, %v1336
      %v1339 = vadd.f32 %v1315, %v1337
      %v1340 = vmul.f32 %v1331, %v1321
      %v1341 = vmul.f32 %v1331, %v1322
      %v1342 = vadd.f32 %v1318, %v1340
      %v1343 = vadd.f32 %v1319, %v1341
      %s1344 = scalar_lea.vmem %s218, 848
      %v1345 = vld [vmem:[%s1344] sm:$0xff]
      %v1346 = vld [vmem:[%s1344 + $0x8] sm:$0x7f]
      %v1347 = vmul.f32 %v1331, %v1345
      %v1348 = vmul.f32 %v1331, %v1346
      %v1349 = vadd.f32 %v1325, %v1347
      %v1350 = vadd.f32 %v1326, %v1348
      %v1351 = vld [vmem:[%s0 + $0x2c] sm:$0x1]
      %v1352 = vlaneseq
      %v1353 = vshrl.u32 %v1352, 7
      %v1354 = vsub.s32 0, %v1353
      %v1355 = vrot.slane %v1351, %v1354
      %v1356 = vmul.f32 %v1355, %v1222
      %v1357 = vmul.f32 %v1355, %v1223
      %v1358 = vadd.f32 %v1334, %v1356
      %v1359 = vadd.f32 %v1335, %v1357
      %v1360 = vmul.f32 %v1355, %v1246
      %v1361 = vmul.f32 %v1355, %v1247
      %v1362 = vadd.f32 %v1338, %v1360
      %v1363 = vadd.f32 %v1339, %v1361
      %v1364 = vmul.f32 %v1355, %v1345
      %v1365 = vmul.f32 %v1355, %v1346
      %v1366 = vadd.f32 %v1342, %v1364
      %v1367 = vadd.f32 %v1343, %v1365
      %s1368 = scalar_lea.vmem %s218, 1136
      %v1369 = vld [vmem:[%s1368] sm:$0xff]
      %v1370 = vld [vmem:[%s1368 + $0x8] sm:$0x7f]
      %v1371 = vmul.f32 %v1355, %v1369
      %v1372 = vmul.f32 %v1355, %v1370
      %v1373 = vadd.f32 %v1349, %v1371
      %v1374 = vadd.f32 %v1350, %v1372
      %v1375 = vmax.f32 %v1358, %v1362
      %v1376 = vmax.f32 %v1359, %v1363
      %v1377 = vmax.f32 %v1366, %v1373
      %v1378 = vmax.f32 %v1367, %v1374
      %v1379 = vmax.f32 %v1375, %v1377
      %v1380 = vmax.f32 %v1376, %v1378
      %v1381 = vld [vmem:[%s1] sm:$0x1]
      %v1383 = vlaneseq
      %v1384 = vshrl.u32 %v1383, 7
      %v1385 = vsub.s32 0, %v1384
      %v1386 = vrot.slane %v1381, %v1385
      %v1388 = vadd.f32 %v1379, %v1386
      %v1389 = vadd.f32 %v1380, %v1386
      %1392 = vrot.lane.b32.xlu0 %v1388, 4
      %v1393 = vpop.permute.xlu0 %1392
      %1394 = vrot.lane.b32.xlu0 %v1389, 4
      %v1395 = vpop.permute.xlu0 %1394
      %1398 = vrot.lane.b32.xlu0 %v1388, 8
      %v1399 = vpop.permute.xlu0 %1398
      %1400 = vrot.lane.b32.xlu0 %v1389, 8
      %v1401 = vpop.permute.xlu0 %1400
      %1404 = vrot.lane.b32.xlu0 %v1388, 12
      %v1405 = vpop.permute.xlu0 %1404
      %1406 = vrot.lane.b32.xlu0 %v1389, 12
      %v1407 = vpop.permute.xlu0 %1406
      %1410 = vrot.lane.b32.xlu0 %v1388, 16
      %v1411 = vpop.permute.xlu0 %1410
      %1412 = vrot.lane.b32.xlu0 %v1389, 16
      %v1413 = vpop.permute.xlu0 %1412
      %1416 = vrot.lane.b32.xlu0 %v1388, 20
      %v1417 = vpop.permute.xlu0 %1416
      %1418 = vrot.lane.b32.xlu0 %v1389, 20
      %v1419 = vpop.permute.xlu0 %1418
      %vm1422 = vcmask 31744
      %v1423 = vsel %vm1422, %v1388, %v1393
      %v1424 = vsel %vm1422, %v1389, %v1395
      %vm1425 = vcmask 64512
      %v1426 = vsel %vm1425, %v1423, %v1399
      %v1427 = vsel %vm1425, %v1424, %v1401
      %vm1428 = vcmask 97280
      %v1429 = vsel %vm1428, %v1426, %v1405
      %v1430 = vsel %vm1428, %v1427, %v1407
      %vm1431 = vcmask 130048
      %v1432 = vsel %vm1431, %v1429, %v1411
      %v1433 = vsel %vm1431, %v1430, %v1413
      %vm1434 = vcmask 162816
      %v1435 = vsel %vm1434, %v1432, %v1417
      %v1436 = vsel %vm1434, %v1433, %v1419
      %v1437 = vld [vmem:[%s2] sm:$0x1]
      %v1438 = vlaneseq
      %v1439 = vshrl.u32 %v1438, 7
      %v1440 = vsub.s32 0, %v1439
      %v1441 = vrot.slane %v1437, %v1440
      %v1442 = vmul.f32 %v1441, %v1435
      %v1443 = vld [vmem:[%s2 + $0x3] sm:$0x1]
      %v1444 = vlaneseq
      %v1445 = vshrl.u32 %v1444, 7
      %v1446 = vsub.s32 0, %v1445
      %v1447 = vrot.slane %v1443, %v1446
      %v1448 = vmul.f32 %v1447, %v1435
      %v1450 = vrot.slane %v1448, 3
      %v1452 = vadd.f32 %v1442, %v1450
      %v1453 = vld [vmem:[%s2 + $0x6] sm:$0x1]
      %v1454 = vlaneseq
      %v1455 = vshrl.u32 %v1454, 7
      %v1456 = vsub.s32 0, %v1455
      %v1457 = vrot.slane %v1453, %v1456
      %v1458 = vmul.f32 %v1457, %v1435
      %v1459 = vmul.f32 %v1457, %v1436
      %vm1462 = vcmask 1041408
      %v1463 = vrot.slane %v1458, 6
      %v1464 = vrot.slane %v1459, 6
      %v1465 = vsel %vm1462, %v1463, %v1464
      %v1467 = vadd.f32 %v1452, %v1465
      %v1468 = vld [vmem:[%s2 + $0x9] sm:$0x1]
      %v1469 = vlaneseq
      %v1470 = vshrl.u32 %v1469, 7
      %v1471 = vsub.s32 0, %v1470
      %v1472 = vrot.slane %v1468, %v1471
      %v1473 = vmul.f32 %v1472, %v1436
      %v1475 = vrot.slane %v1473, 1
      %v1477 = vadd.f32 %v1467, %v1475
      %v1478 = vld [vmem:[%s2 + $0xc] sm:$0x1]
      %v1479 = vlaneseq
      %v1480 = vshrl.u32 %v1479, 7
      %v1481 = vsub.s32 0, %v1480
      %v1482 = vrot.slane %v1478, %v1481
      %v1483 = vmul.f32 %v1482, %v1436
      %v1485 = vrot.slane %v1483, 4
      %v1487 = vadd.f32 %v1477, %v1485
      %1488 = vrot.lane.b32.xlu0 %v1388, 125
      %v1489 = vpop.permute.xlu0 %1488
      %1490 = vrot.lane.b32.xlu0 %v1389, 125
      %v1491 = vpop.permute.xlu0 %1490
      %1494 = vrot.lane.b32.xlu0 %v1388, 1
      %v1495 = vpop.permute.xlu0 %1494
      %1496 = vrot.lane.b32.xlu0 %v1389, 1
      %v1497 = vpop.permute.xlu0 %1496
      %1500 = vrot.lane.b32.xlu0 %v1388, 5
      %v1501 = vpop.permute.xlu0 %1500
      %1502 = vrot.lane.b32.xlu0 %v1389, 5
      %v1503 = vpop.permute.xlu0 %1502
      %1506 = vrot.lane.b32.xlu0 %v1388, 9
      %v1507 = vpop.permute.xlu0 %1506
      %1508 = vrot.lane.b32.xlu0 %v1389, 9
      %v1509 = vpop.permute.xlu0 %1508
      %1512 = vrot.lane.b32.xlu0 %v1388, 13
      %v1513 = vpop.permute.xlu0 %1512
      %1514 = vrot.lane.b32.xlu0 %v1389, 13
      %v1515 = vpop.permute.xlu0 %1514
      %1518 = vrot.lane.b32.xlu0 %v1388, 17
      %v1519 = vpop.permute.xlu0 %1518
      %1520 = vrot.lane.b32.xlu0 %v1389, 17
      %v1521 = vpop.permute.xlu0 %1520
      %v1524 = vsel %vm1422, %v1489, %v1495
      %v1525 = vsel %vm1422, %v1491, %v1497
      %v1526 = vsel %vm1425, %v1524, %v1501
      %v1527 = vsel %vm1425, %v1525, %v1503
      %v1528 = vsel %vm1428, %v1526, %v1507
      %v1529 = vsel %vm1428, %v1527, %v1509
      %v1530 = vsel %vm1431, %v1528, %v1513
      %v1531 = vsel %vm1431, %v1529, %v1515
      %v1532 = vsel %vm1434, %v1530, %v1519
      %v1533 = vsel %vm1434, %v1531, %v1521
      %v1534 = vld [vmem:[%s2 + $0x1] sm:$0x1]
      %v1535 = vlaneseq
      %v1536 = vshrl.u32 %v1535, 7
      %v1537 = vsub.s32 0, %v1536
      %v1538 = vrot.slane %v1534, %v1537
      %v1539 = vmul.f32 %v1538, %v1532
      %v1540 = vadd.f32 %v1487, %v1539
      %v1541 = vld [vmem:[%s2 + $0x4] sm:$0x1]
      %v1542 = vlaneseq
      %v1543 = vshrl.u32 %v1542, 7
      %v1544 = vsub.s32 0, %v1543
      %v1545 = vrot.slane %v1541, %v1544
      %v1546 = vmul.f32 %v1545, %v1532
      %v1548 = vrot.slane %v1546, 3
      %v1550 = vadd.f32 %v1540, %v1548
      %v1551 = vld [vmem:[%s2 + $0x7] sm:$0x1]
      %v1552 = vlaneseq
      %v1553 = vshrl.u32 %v1552, 7
      %v1554 = vsub.s32 0, %v1553
      %v1555 = vrot.slane %v1551, %v1554
      %v1556 = vmul.f32 %v1555, %v1532
      %v1557 = vmul.f32 %v1555, %v1533
      %v1560 = vrot.slane %v1556, 6
      %v1561 = vrot.slane %v1557, 6
      %v1562 = vsel %vm1462, %v1560, %v1561
      %v1564 = vadd.f32 %v1550, %v1562
      %v1565 = vld [vmem:[%s2 + $0xa] sm:$0x1]
      %v1566 = vlaneseq
      %v1567 = vshrl.u32 %v1566, 7
      %v1568 = vsub.s32 0, %v1567
      %v1569 = vrot.slane %v1565, %v1568
      %v1570 = vmul.f32 %v1569, %v1533
      %v1572 = vrot.slane %v1570, 1
      %v1574 = vadd.f32 %v1564, %v1572
      %v1575 = vld [vmem:[%s2 + $0xd] sm:$0x1]
      %v1576 = vlaneseq
      %v1577 = vshrl.u32 %v1576, 7
      %v1578 = vsub.s32 0, %v1577
      %v1579 = vrot.slane %v1575, %v1578
      %v1580 = vmul.f32 %v1579, %v1533
      %v1582 = vrot.slane %v1580, 4
      %v1584 = vadd.f32 %v1574, %v1582
      %1585 = vrot.lane.b32.xlu0 %v1388, 122
      %v1586 = vpop.permute.xlu0 %1585
      %1587 = vrot.lane.b32.xlu0 %v1389, 122
      %v1588 = vpop.permute.xlu0 %1587
      %1591 = vrot.lane.b32.xlu0 %v1388, 126
      %v1592 = vpop.permute.xlu0 %1591
      %1593 = vrot.lane.b32.xlu0 %v1389, 126
      %v1594 = vpop.permute.xlu0 %1593
      %1597 = vrot.lane.b32.xlu0 %v1388, 2
      %v1598 = vpop.permute.xlu0 %1597
      %1599 = vrot.lane.b32.xlu0 %v1389, 2
      %v1600 = vpop.permute.xlu0 %1599
      %1603 = vrot.lane.b32.xlu0 %v1388, 6
      %v1604 = vpop.permute.xlu0 %1603
      %1605 = vrot.lane.b32.xlu0 %v1389, 6
      %v1606 = vpop.permute.xlu0 %1605
      %1609 = vrot.lane.b32.xlu0 %v1388, 10
      %v1610 = vpop.permute.xlu0 %1609
      %1611 = vrot.lane.b32.xlu0 %v1389, 10
      %v1612 = vpop.permute.xlu0 %1611
      %1615 = vrot.lane.b32.xlu0 %v1388, 14
      %v1616 = vpop.permute.xlu0 %1615
      %1617 = vrot.lane.b32.xlu0 %v1389, 14
      %v1618 = vpop.permute.xlu0 %1617
      %v1621 = vsel %vm1422, %v1586, %v1592
      %v1622 = vsel %vm1422, %v1588, %v1594
      %v1623 = vsel %vm1425, %v1621, %v1598
      %v1624 = vsel %vm1425, %v1622, %v1600
      %v1625 = vsel %vm1428, %v1623, %v1604
      %v1626 = vsel %vm1428, %v1624, %v1606
      %v1627 = vsel %vm1431, %v1625, %v1610
      %v1628 = vsel %vm1431, %v1626, %v1612
      %v1629 = vsel %vm1434, %v1627, %v1616
      %v1630 = vsel %vm1434, %v1628, %v1618
      %v1631 = vld [vmem:[%s2 + $0x2] sm:$0x1]
      %v1632 = vlaneseq
      %v1633 = vshrl.u32 %v1632, 7
      %v1634 = vsub.s32 0, %v1633
      %v1635 = vrot.slane %v1631, %v1634
      %v1636 = vmul.f32 %v1635, %v1629
      %v1637 = vadd.f32 %v1584, %v1636
      %v1638 = vld [vmem:[%s2 + $0x5] sm:$0x1]
      %v1639 = vlaneseq
      %v1640 = vshrl.u32 %v1639, 7
      %v1641 = vsub.s32 0, %v1640
      %v1642 = vrot.slane %v1638, %v1641
      %v1643 = vmul.f32 %v1642, %v1629
      %v1645 = vrot.slane %v1643, 3
      %v1647 = vadd.f32 %v1637, %v1645
      %v1648 = vld [vmem:[%s2 + $0x8] sm:$0x1]
      %v1649 = vlaneseq
      %v1650 = vshrl.u32 %v1649, 7
      %v1651 = vsub.s32 0, %v1650
      %v1652 = vrot.slane %v1648, %v1651
      %v1653 = vmul.f32 %v1652, %v1629
      %v1654 = vmul.f32 %v1652, %v1630
      %v1657 = vrot.slane %v1653, 6
      %v1658 = vrot.slane %v1654, 6
      %v1659 = vsel %vm1462, %v1657, %v1658
      %v1661 = vadd.f32 %v1647, %v1659
      %v1662 = vld [vmem:[%s2 + $0xb] sm:$0x1]
      %v1663 = vlaneseq
      %v1664 = vshrl.u32 %v1663, 7
      %v1665 = vsub.s32 0, %v1664
      %v1666 = vrot.slane %v1662, %v1665
      %v1667 = vmul.f32 %v1666, %v1630
      %v1669 = vrot.slane %v1667, 1
      %v1671 = vadd.f32 %v1661, %v1669
      %v1672 = vld [vmem:[%s2 + $0xe] sm:$0x1]
      %v1673 = vlaneseq
      %v1674 = vshrl.u32 %v1673, 7
      %v1675 = vsub.s32 0, %v1674
      %v1676 = vrot.slane %v1672, %v1675
      %v1677 = vmul.f32 %v1676, %v1630
      %v1679 = vrot.slane %v1677, 4
      %v1681 = vadd.f32 %v1671, %v1679
      %1682 = vrot.lane.b32.xlu0 %v1388, 118
      %v1683 = vpop.permute.xlu0 %1682
      %1684 = vrot.lane.b32.xlu0 %v1389, 118
      %v1685 = vpop.permute.xlu0 %1684
      %v1688 = vsel %vm1422, %v1683, %v1586
      %v1689 = vsel %vm1422, %v1685, %v1588
      %v1690 = vsel %vm1425, %v1688, %v1592
      %v1691 = vsel %vm1425, %v1689, %v1594
      %v1692 = vsel %vm1428, %v1690, %v1598
      %v1693 = vsel %vm1428, %v1691, %v1600
      %v1694 = vsel %vm1431, %v1692, %v1604
      %v1695 = vsel %vm1431, %v1693, %v1606
      %v1696 = vsel %vm1434, %v1694, %v1610
      %v1697 = vsel %vm1434, %v1695, %v1612
      %v1698 = vld [vmem:[%s2 + $0xf] sm:$0x1]
      %v1699 = vlaneseq
      %v1700 = vshrl.u32 %v1699, 7
      %v1701 = vsub.s32 0, %v1700
      %v1702 = vrot.slane %v1698, %v1701
      %v1703 = vmul.f32 %v1702, %v1696
      %v1704 = vadd.f32 %v1681, %v1703
      %v1705 = vld [vmem:[%s2 + $0x12] sm:$0x1]
      %v1706 = vlaneseq
      %v1707 = vshrl.u32 %v1706, 7
      %v1708 = vsub.s32 0, %v1707
      %v1709 = vrot.slane %v1705, %v1708
      %v1710 = vmul.f32 %v1709, %v1696
      %v1712 = vrot.slane %v1710, 3
      %v1714 = vadd.f32 %v1704, %v1712
      %v1715 = vld [vmem:[%s2 + $0x15] sm:$0x1]
      %v1716 = vlaneseq
      %v1717 = vshrl.u32 %v1716, 7
      %v1718 = vsub.s32 0, %v1717
      %v1719 = vrot.slane %v1715, %v1718
      %v1720 = vmul.f32 %v1719, %v1696
      %v1721 = vmul.f32 %v1719, %v1697
      %v1724 = vrot.slane %v1720, 6
      %v1725 = vrot.slane %v1721, 6
      %v1726 = vsel %vm1462, %v1724, %v1725
      %v1728 = vadd.f32 %v1714, %v1726
      %v1729 = vld [vmem:[%s2 + $0x18] sm:$0x1]
      %v1730 = vlaneseq
      %v1731 = vshrl.u32 %v1730, 7
      %v1732 = vsub.s32 0, %v1731
      %v1733 = vrot.slane %v1729, %v1732
      %v1734 = vmul.f32 %v1733, %v1697
      %v1736 = vrot.slane %v1734, 1
      %v1738 = vadd.f32 %v1728, %v1736
      %v1739 = vld [vmem:[%s2 + $0x1b] sm:$0x1]
      %v1740 = vlaneseq
      %v1741 = vshrl.u32 %v1740, 7
      %v1742 = vsub.s32 0, %v1741
      %v1743 = vrot.slane %v1739, %v1742
      %v1744 = vmul.f32 %v1743, %v1697
      %v1746 = vrot.slane %v1744, 4
      %v1748 = vadd.f32 %v1738, %v1746
      %1749 = vrot.lane.b32.xlu0 %v1388, 115
      %v1750 = vpop.permute.xlu0 %1749
      %1751 = vrot.lane.b32.xlu0 %v1389, 115
      %v1752 = vpop.permute.xlu0 %1751
      %1755 = vrot.lane.b32.xlu0 %v1388, 119
      %v1756 = vpop.permute.xlu0 %1755
      %1757 = vrot.lane.b32.xlu0 %v1389, 119
      %v1758 = vpop.permute.xlu0 %1757
      %1761 = vrot.lane.b32.xlu0 %v1388, 123
      %v1762 = vpop.permute.xlu0 %1761
      %1763 = vrot.lane.b32.xlu0 %v1389, 123
      %v1764 = vpop.permute.xlu0 %1763
      %1767 = vrot.lane.b32.xlu0 %v1388, 127
      %v1768 = vpop.permute.xlu0 %1767
      %1769 = vrot.lane.b32.xlu0 %v1389, 127
      %v1770 = vpop.permute.xlu0 %1769
      %1773 = vrot.lane.b32.xlu0 %v1388, 3
      %v1774 = vpop.permute.xlu0 %1773
      %1775 = vrot.lane.b32.xlu0 %v1389, 3
      %v1776 = vpop.permute.xlu0 %1775
      %1779 = vrot.lane.b32.xlu0 %v1388, 7
      %v1780 = vpop.permute.xlu0 %1779
      %1781 = vrot.lane.b32.xlu0 %v1389, 7
      %v1782 = vpop.permute.xlu0 %1781
      %v1785 = vsel %vm1422, %v1750, %v1756
      %v1786 = vsel %vm1422, %v1752, %v1758
      %v1787 = vsel %vm1425, %v1785, %v1762
      %v1788 = vsel %vm1425, %v1786, %v1764
      %v1789 = vsel %vm1428, %v1787, %v1768
      %v1790 = vsel %vm1428, %v1788, %v1770
      %v1791 = vsel %vm1431, %v1789, %v1774
      %v1792 = vsel %vm1431, %v1790, %v1776
      %v1793 = vsel %vm1434, %v1791, %v1780
      %v1794 = vsel %vm1434, %v1792, %v1782
      %v1795 = vld [vmem:[%s2 + $0x10] sm:$0x1]
      %v1796 = vlaneseq
      %v1797 = vshrl.u32 %v1796, 7
      %v1798 = vsub.s32 0, %v1797
      %v1799 = vrot.slane %v1795, %v1798
      %v1800 = vmul.f32 %v1799, %v1793
      %v1801 = vadd.f32 %v1748, %v1800
      %v1802 = vld [vmem:[%s2 + $0x13] sm:$0x1]
      %v1803 = vlaneseq
      %v1804 = vshrl.u32 %v1803, 7
      %v1805 = vsub.s32 0, %v1804
      %v1806 = vrot.slane %v1802, %v1805
      %v1807 = vmul.f32 %v1806, %v1793
      %v1809 = vrot.slane %v1807, 3
      %v1811 = vadd.f32 %v1801, %v1809
      %v1812 = vld [vmem:[%s2 + $0x16] sm:$0x1]
      %v1813 = vlaneseq
      %v1814 = vshrl.u32 %v1813, 7
      %v1815 = vsub.s32 0, %v1814
      %v1816 = vrot.slane %v1812, %v1815
      %v1817 = vmul.f32 %v1816, %v1793
      %v1818 = vmul.f32 %v1816, %v1794
      %v1821 = vrot.slane %v1817, 6
      %v1822 = vrot.slane %v1818, 6
      %v1823 = vsel %vm1462, %v1821, %v1822
      %v1825 = vadd.f32 %v1811, %v1823
      %v1826 = vld [vmem:[%s2 + $0x19] sm:$0x1]
      %v1827 = vlaneseq
      %v1828 = vshrl.u32 %v1827, 7
      %v1829 = vsub.s32 0, %v1828
      %v1830 = vrot.slane %v1826, %v1829
      %v1831 = vmul.f32 %v1830, %v1794
      %v1833 = vrot.slane %v1831, 1
      %v1835 = vadd.f32 %v1825, %v1833
      %v1836 = vld [vmem:[%s2 + $0x1c] sm:$0x1]
      %v1837 = vlaneseq
      %v1838 = vshrl.u32 %v1837, 7
      %v1839 = vsub.s32 0, %v1838
      %v1840 = vrot.slane %v1836, %v1839
      %v1841 = vmul.f32 %v1840, %v1794
      %v1843 = vrot.slane %v1841, 4
      %v1845 = vadd.f32 %v1835, %v1843
      %1846 = vrot.lane.b32.xlu0 %v1388, 112
      %v1847 = vpop.permute.xlu0 %1846
      %1848 = vrot.lane.b32.xlu0 %v1389, 112
      %v1849 = vpop.permute.xlu0 %1848
      %1852 = vrot.lane.b32.xlu0 %v1388, 116
      %v1853 = vpop.permute.xlu0 %1852
      %1854 = vrot.lane.b32.xlu0 %v1389, 116
      %v1855 = vpop.permute.xlu0 %1854
      %1858 = vrot.lane.b32.xlu0 %v1388, 120
      %v1859 = vpop.permute.xlu0 %1858
      %1860 = vrot.lane.b32.xlu0 %v1389, 120
      %v1861 = vpop.permute.xlu0 %1860
      %1864 = vrot.lane.b32.xlu0 %v1388, 124
      %v1865 = vpop.permute.xlu0 %1864
      %1866 = vrot.lane.b32.xlu0 %v1389, 124
      %v1867 = vpop.permute.xlu0 %1866
      %v1870 = vsel %vm1422, %v1847, %v1853
      %v1871 = vsel %vm1422, %v1849, %v1855
      %v1872 = vsel %vm1425, %v1870, %v1859
      %v1873 = vsel %vm1425, %v1871, %v1861
      %v1874 = vsel %vm1428, %v1872, %v1865
      %v1875 = vsel %vm1428, %v1873, %v1867
      %v1876 = vsel %vm1431, %v1874, %v1388
      %v1877 = vsel %vm1431, %v1875, %v1389
      %v1878 = vsel %vm1434, %v1876, %v1393
      %v1879 = vsel %vm1434, %v1877, %v1395
      %v1880 = vld [vmem:[%s2 + $0x11] sm:$0x1]
      %v1881 = vlaneseq
      %v1882 = vshrl.u32 %v1881, 7
      %v1883 = vsub.s32 0, %v1882
      %v1884 = vrot.slane %v1880, %v1883
      %v1885 = vmul.f32 %v1884, %v1878
      %v1886 = vadd.f32 %v1845, %v1885
      %v1887 = vld [vmem:[%s2 + $0x14] sm:$0x1]
      %v1888 = vlaneseq
      %v1889 = vshrl.u32 %v1888, 7
      %v1890 = vsub.s32 0, %v1889
      %v1891 = vrot.slane %v1887, %v1890
      %v1892 = vmul.f32 %v1891, %v1878
      %v1894 = vrot.slane %v1892, 3
      %v1896 = vadd.f32 %v1886, %v1894
      %v1897 = vld [vmem:[%s2 + $0x17] sm:$0x1]
      %v1898 = vlaneseq
      %v1899 = vshrl.u32 %v1898, 7
      %v1900 = vsub.s32 0, %v1899
      %v1901 = vrot.slane %v1897, %v1900
      %v1902 = vmul.f32 %v1901, %v1878
      %v1903 = vmul.f32 %v1901, %v1879
      %v1906 = vrot.slane %v1902, 6
      %v1907 = vrot.slane %v1903, 6
      %v1908 = vsel %vm1462, %v1906, %v1907
      %v1910 = vadd.f32 %v1896, %v1908
      %v1911 = vld [vmem:[%s2 + $0x1a] sm:$0x1]
      %v1912 = vlaneseq
      %v1913 = vshrl.u32 %v1912, 7
      %v1914 = vsub.s32 0, %v1913
      %v1915 = vrot.slane %v1911, %v1914
      %v1916 = vmul.f32 %v1915, %v1879
      %v1918 = vrot.slane %v1916, 1
      %v1920 = vadd.f32 %v1910, %v1918
      %v1921 = vld [vmem:[%s2 + $0x1d] sm:$0x1]
      %v1922 = vlaneseq
      %v1923 = vshrl.u32 %v1922, 7
      %v1924 = vsub.s32 0, %v1923
      %v1925 = vrot.slane %v1921, %v1924
      %v1926 = vmul.f32 %v1925, %v1879
      %v1928 = vrot.slane %v1926, 4
      %v1930 = vadd.f32 %v1920, %v1928
      %1931 = vrot.lane.b32.xlu0 %v1388, 108
      %v1932 = vpop.permute.xlu0 %1931
      %1933 = vrot.lane.b32.xlu0 %v1389, 108
      %v1934 = vpop.permute.xlu0 %1933
      %v1937 = vsel %vm1422, %v1932, %v1847
      %v1938 = vsel %vm1422, %v1934, %v1849
      %v1939 = vsel %vm1425, %v1937, %v1853
      %v1940 = vsel %vm1425, %v1938, %v1855
      %v1941 = vsel %vm1428, %v1939, %v1859
      %v1942 = vsel %vm1428, %v1940, %v1861
      %v1943 = vsel %vm1431, %v1941, %v1865
      %v1944 = vsel %vm1431, %v1942, %v1867
      %v1945 = vsel %vm1434, %v1943, %v1388
      %v1946 = vsel %vm1434, %v1944, %v1389
      %v1947 = vld [vmem:[%s2 + $0x1e] sm:$0x1]
      %v1948 = vlaneseq
      %v1949 = vshrl.u32 %v1948, 7
      %v1950 = vsub.s32 0, %v1949
      %v1951 = vrot.slane %v1947, %v1950
      %v1952 = vmul.f32 %v1951, %v1945
      %v1953 = vadd.f32 %v1930, %v1952
      %v1954 = vld [vmem:[%s2 + $0x21] sm:$0x1]
      %v1955 = vlaneseq
      %v1956 = vshrl.u32 %v1955, 7
      %v1957 = vsub.s32 0, %v1956
      %v1958 = vrot.slane %v1954, %v1957
      %v1959 = vmul.f32 %v1958, %v1945
      %v1961 = vrot.slane %v1959, 3
      %v1963 = vadd.f32 %v1953, %v1961
      %v1964 = vld [vmem:[%s2 + $0x24] sm:$0x1]
      %v1965 = vlaneseq
      %v1966 = vshrl.u32 %v1965, 7
      %v1967 = vsub.s32 0, %v1966
      %v1968 = vrot.slane %v1964, %v1967
      %v1969 = vmul.f32 %v1968, %v1945
      %v1970 = vmul.f32 %v1968, %v1946
      %v1973 = vrot.slane %v1969, 6
      %v1974 = vrot.slane %v1970, 6
      %v1975 = vsel %vm1462, %v1973, %v1974
      %v1977 = vadd.f32 %v1963, %v1975
      %v1978 = vld [vmem:[%s2 + $0x27] sm:$0x1]
      %v1979 = vlaneseq
      %v1980 = vshrl.u32 %v1979, 7
      %v1981 = vsub.s32 0, %v1980
      %v1982 = vrot.slane %v1978, %v1981
      %v1983 = vmul.f32 %v1982, %v1946
      %v1985 = vrot.slane %v1983, 1
      %v1987 = vadd.f32 %v1977, %v1985
      %v1988 = vld [vmem:[%s2 + $0x2a] sm:$0x1]
      %v1989 = vlaneseq
      %v1990 = vshrl.u32 %v1989, 7
      %v1991 = vsub.s32 0, %v1990
      %v1992 = vrot.slane %v1988, %v1991
      %v1993 = vmul.f32 %v1992, %v1946
      %v1995 = vrot.slane %v1993, 4
      %v1997 = vadd.f32 %v1987, %v1995
      %1998 = vrot.lane.b32.xlu0 %v1388, 105
      %v1999 = vpop.permute.xlu0 %1998
      %2000 = vrot.lane.b32.xlu0 %v1389, 105
      %v2001 = vpop.permute.xlu0 %2000
      %2004 = vrot.lane.b32.xlu0 %v1388, 109
      %v2005 = vpop.permute.xlu0 %2004
      %2006 = vrot.lane.b32.xlu0 %v1389, 109
      %v2007 = vpop.permute.xlu0 %2006
      %2010 = vrot.lane.b32.xlu0 %v1388, 113
      %v2011 = vpop.permute.xlu0 %2010
      %2012 = vrot.lane.b32.xlu0 %v1389, 113
      %v2013 = vpop.permute.xlu0 %2012
      %2016 = vrot.lane.b32.xlu0 %v1388, 117
      %v2017 = vpop.permute.xlu0 %2016
      %2018 = vrot.lane.b32.xlu0 %v1389, 117
      %v2019 = vpop.permute.xlu0 %2018
      %2022 = vrot.lane.b32.xlu0 %v1388, 121
      %v2023 = vpop.permute.xlu0 %2022
      %2024 = vrot.lane.b32.xlu0 %v1389, 121
      %v2025 = vpop.permute.xlu0 %2024
      %v2028 = vsel %vm1422, %v1999, %v2005
      %v2029 = vsel %vm1422, %v2001, %v2007
      %v2030 = vsel %vm1425, %v2028, %v2011
      %v2031 = vsel %vm1425, %v2029, %v2013
      %v2032 = vsel %vm1428, %v2030, %v2017
      %v2033 = vsel %vm1428, %v2031, %v2019
      %v2034 = vsel %vm1431, %v2032, %v2023
      %v2035 = vsel %vm1431, %v2033, %v2025
      %v2036 = vsel %vm1434, %v2034, %v1489
      %v2037 = vsel %vm1434, %v2035, %v1491
      %v2038 = vld [vmem:[%s2 + $0x1f] sm:$0x1]
      %v2039 = vlaneseq
      %v2040 = vshrl.u32 %v2039, 7
      %v2041 = vsub.s32 0, %v2040
      %v2042 = vrot.slane %v2038, %v2041
      %v2043 = vmul.f32 %v2042, %v2036
      %v2044 = vadd.f32 %v1997, %v2043
      %v2045 = vld [vmem:[%s2 + $0x22] sm:$0x1]
      %v2046 = vlaneseq
      %v2047 = vshrl.u32 %v2046, 7
      %v2048 = vsub.s32 0, %v2047
      %v2049 = vrot.slane %v2045, %v2048
      %v2050 = vmul.f32 %v2049, %v2036
      %v2052 = vrot.slane %v2050, 3
      %v2054 = vadd.f32 %v2044, %v2052
      %v2055 = vld [vmem:[%s2 + $0x25] sm:$0x1]
      %v2056 = vlaneseq
      %v2057 = vshrl.u32 %v2056, 7
      %v2058 = vsub.s32 0, %v2057
      %v2059 = vrot.slane %v2055, %v2058
      %v2060 = vmul.f32 %v2059, %v2036
      %v2061 = vmul.f32 %v2059, %v2037
      %v2064 = vrot.slane %v2060, 6
      %v2065 = vrot.slane %v2061, 6
      %v2066 = vsel %vm1462, %v2064, %v2065
      %v2068 = vadd.f32 %v2054, %v2066
      %v2069 = vld [vmem:[%s2 + $0x28] sm:$0x1]
      %v2070 = vlaneseq
      %v2071 = vshrl.u32 %v2070, 7
      %v2072 = vsub.s32 0, %v2071
      %v2073 = vrot.slane %v2069, %v2072
      %v2074 = vmul.f32 %v2073, %v2037
      %v2076 = vrot.slane %v2074, 1
      %v2078 = vadd.f32 %v2068, %v2076
      %v2079 = vld [vmem:[%s2 + $0x2b] sm:$0x1]
      %v2080 = vlaneseq
      %v2081 = vshrl.u32 %v2080, 7
      %v2082 = vsub.s32 0, %v2081
      %v2083 = vrot.slane %v2079, %v2082
      %v2084 = vmul.f32 %v2083, %v2037
      %v2086 = vrot.slane %v2084, 4
      %v2088 = vadd.f32 %v2078, %v2086
      %2089 = vrot.lane.b32.xlu0 %v1388, 102
      %v2090 = vpop.permute.xlu0 %2089
      %2091 = vrot.lane.b32.xlu0 %v1389, 102
      %v2092 = vpop.permute.xlu0 %2091
      %2095 = vrot.lane.b32.xlu0 %v1388, 106
      %v2096 = vpop.permute.xlu0 %2095
      %2097 = vrot.lane.b32.xlu0 %v1389, 106
      %v2098 = vpop.permute.xlu0 %2097
      %2101 = vrot.lane.b32.xlu0 %v1388, 110
      %v2102 = vpop.permute.xlu0 %2101
      %2103 = vrot.lane.b32.xlu0 %v1389, 110
      %v2104 = vpop.permute.xlu0 %2103
      %2107 = vrot.lane.b32.xlu0 %v1388, 114
      %v2108 = vpop.permute.xlu0 %2107
      %2109 = vrot.lane.b32.xlu0 %v1389, 114
      %v2110 = vpop.permute.xlu0 %2109
      %v2113 = vsel %vm1422, %v2090, %v2096
      %v2114 = vsel %vm1422, %v2092, %v2098
      %v2115 = vsel %vm1425, %v2113, %v2102
      %v2116 = vsel %vm1425, %v2114, %v2104
      %v2117 = vsel %vm1428, %v2115, %v2108
      %v2118 = vsel %vm1428, %v2116, %v2110
      %v2119 = vsel %vm1431, %v2117, %v1683
      %v2120 = vsel %vm1431, %v2118, %v1685
      %v2121 = vsel %vm1434, %v2119, %v1586
      %v2122 = vsel %vm1434, %v2120, %v1588
      %v2123 = vld [vmem:[%s2 + $0x20] sm:$0x1]
      %v2124 = vlaneseq
      %v2125 = vshrl.u32 %v2124, 7
      %v2126 = vsub.s32 0, %v2125
      %v2127 = vrot.slane %v2123, %v2126
      %v2128 = vmul.f32 %v2127, %v2121
      %v2129 = vadd.f32 %v2088, %v2128
      %v2130 = vld [vmem:[%s2 + $0x23] sm:$0x1]
      %v2131 = vlaneseq
      %v2132 = vshrl.u32 %v2131, 7
      %v2133 = vsub.s32 0, %v2132
      %v2134 = vrot.slane %v2130, %v2133
      %v2135 = vmul.f32 %v2134, %v2121
      %v2137 = vrot.slane %v2135, 3
      %v2139 = vadd.f32 %v2129, %v2137
      %v2140 = vld [vmem:[%s2 + $0x26] sm:$0x1]
      %v2141 = vlaneseq
      %v2142 = vshrl.u32 %v2141, 7
      %v2143 = vsub.s32 0, %v2142
      %v2144 = vrot.slane %v2140, %v2143
      %v2145 = vmul.f32 %v2144, %v2121
      %v2146 = vmul.f32 %v2144, %v2122
      %v2149 = vrot.slane %v2145, 6
      %v2150 = vrot.slane %v2146, 6
      %v2151 = vsel %vm1462, %v2149, %v2150
      %v2153 = vadd.f32 %v2139, %v2151
      %v2154 = vld [vmem:[%s2 + $0x29] sm:$0x1]
      %v2155 = vlaneseq
      %v2156 = vshrl.u32 %v2155, 7
      %v2157 = vsub.s32 0, %v2156
      %v2158 = vrot.slane %v2154, %v2157
      %v2159 = vmul.f32 %v2158, %v2122
      %v2161 = vrot.slane %v2159, 1
      %v2163 = vadd.f32 %v2153, %v2161
      %v2164 = vld [vmem:[%s2 + $0x2c] sm:$0x1]
      %v2165 = vlaneseq
      %v2166 = vshrl.u32 %v2165, 7
      %v2167 = vsub.s32 0, %v2166
      %v2168 = vrot.slane %v2164, %v2167
      %v2169 = vmul.f32 %v2168, %v2122
      %v2171 = vrot.slane %v2169, 4
      %v2173 = vadd.f32 %v2163, %v2171
      %2174 = vrot.lane.b32.xlu0 %v1388, 98
      %v2175 = vpop.permute.xlu0 %2174
      %2176 = vrot.lane.b32.xlu0 %v1389, 98
      %v2177 = vpop.permute.xlu0 %2176
      %v2180 = vsel %vm1422, %v2175, %v2090
      %v2181 = vsel %vm1422, %v2177, %v2092
      %v2182 = vsel %vm1425, %v2180, %v2096
      %v2183 = vsel %vm1425, %v2181, %v2098
      %v2184 = vsel %vm1428, %v2182, %v2102
      %v2185 = vsel %vm1428, %v2183, %v2104
      %v2186 = vsel %vm1431, %v2184, %v2108
      %v2187 = vsel %vm1431, %v2185, %v2110
      %v2188 = vsel %vm1434, %v2186, %v1683
      %v2189 = vsel %vm1434, %v2187, %v1685
      %v2190 = vld [vmem:[%s2 + $0x2d] sm:$0x1]
      %v2191 = vlaneseq
      %v2192 = vshrl.u32 %v2191, 7
      %v2193 = vsub.s32 0, %v2192
      %v2194 = vrot.slane %v2190, %v2193
      %v2195 = vmul.f32 %v2194, %v2188
      %v2196 = vadd.f32 %v2173, %v2195
      %v2197 = vld [vmem:[%s2 + $0x30] sm:$0x1]
      %v2198 = vlaneseq
      %v2199 = vshrl.u32 %v2198, 7
      %v2200 = vsub.s32 0, %v2199
      %v2201 = vrot.slane %v2197, %v2200
      %v2202 = vmul.f32 %v2201, %v2188
      %v2204 = vrot.slane %v2202, 3
      %v2206 = vadd.f32 %v2196, %v2204
      %v2207 = vld [vmem:[%s2 + $0x33] sm:$0x1]
      %v2208 = vlaneseq
      %v2209 = vshrl.u32 %v2208, 7
      %v2210 = vsub.s32 0, %v2209
      %v2211 = vrot.slane %v2207, %v2210
      %v2212 = vmul.f32 %v2211, %v2188
      %v2213 = vmul.f32 %v2211, %v2189
      %v2216 = vrot.slane %v2212, 6
      %v2217 = vrot.slane %v2213, 6
      %v2218 = vsel %vm1462, %v2216, %v2217
      %v2220 = vadd.f32 %v2206, %v2218
      %v2221 = vld [vmem:[%s2 + $0x36] sm:$0x1]
      %v2222 = vlaneseq
      %v2223 = vshrl.u32 %v2222, 7
      %v2224 = vsub.s32 0, %v2223
      %v2225 = vrot.slane %v2221, %v2224
      %v2226 = vmul.f32 %v2225, %v2189
      %v2228 = vrot.slane %v2226, 1
      %v2230 = vadd.f32 %v2220, %v2228
      %v2231 = vld [vmem:[%s2 + $0x39] sm:$0x1]
      %v2232 = vlaneseq
      %v2233 = vshrl.u32 %v2232, 7
      %v2234 = vsub.s32 0, %v2233
      %v2235 = vrot.slane %v2231, %v2234
      %v2236 = vmul.f32 %v2235, %v2189
      %v2238 = vrot.slane %v2236, 4
      %v2240 = vadd.f32 %v2230, %v2238
      %2241 = vrot.lane.b32.xlu0 %v1388, 95
      %v2242 = vpop.permute.xlu0 %2241
      %2243 = vrot.lane.b32.xlu0 %v1389, 95
      %v2244 = vpop.permute.xlu0 %2243
      %2247 = vrot.lane.b32.xlu0 %v1388, 99
      %v2248 = vpop.permute.xlu0 %2247
      %2249 = vrot.lane.b32.xlu0 %v1389, 99
      %v2250 = vpop.permute.xlu0 %2249
      %2253 = vrot.lane.b32.xlu0 %v1388, 103
      %v2254 = vpop.permute.xlu0 %2253
      %2255 = vrot.lane.b32.xlu0 %v1389, 103
      %v2256 = vpop.permute.xlu0 %2255
      %2259 = vrot.lane.b32.xlu0 %v1388, 107
      %v2260 = vpop.permute.xlu0 %2259
      %2261 = vrot.lane.b32.xlu0 %v1389, 107
      %v2262 = vpop.permute.xlu0 %2261
      %2265 = vrot.lane.b32.xlu0 %v1388, 111
      %v2266 = vpop.permute.xlu0 %2265
      %2267 = vrot.lane.b32.xlu0 %v1389, 111
      %v2268 = vpop.permute.xlu0 %2267
      %v2271 = vsel %vm1422, %v2242, %v2248
      %v2272 = vsel %vm1422, %v2244, %v2250
      %v2273 = vsel %vm1425, %v2271, %v2254
      %v2274 = vsel %vm1425, %v2272, %v2256
      %v2275 = vsel %vm1428, %v2273, %v2260
      %v2276 = vsel %vm1428, %v2274, %v2262
      %v2277 = vsel %vm1431, %v2275, %v2266
      %v2278 = vsel %vm1431, %v2276, %v2268
      %v2279 = vsel %vm1434, %v2277, %v1750
      %v2280 = vsel %vm1434, %v2278, %v1752
      %v2281 = vld [vmem:[%s2 + $0x2e] sm:$0x1]
      %v2282 = vlaneseq
      %v2283 = vshrl.u32 %v2282, 7
      %v2284 = vsub.s32 0, %v2283
      %v2285 = vrot.slane %v2281, %v2284
      %v2286 = vmul.f32 %v2285, %v2279
      %v2287 = vadd.f32 %v2240, %v2286
      %v2288 = vld [vmem:[%s2 + $0x31] sm:$0x1]
      %v2289 = vlaneseq
      %v2290 = vshrl.u32 %v2289, 7
      %v2291 = vsub.s32 0, %v2290
      %v2292 = vrot.slane %v2288, %v2291
      %v2293 = vmul.f32 %v2292, %v2279
      %v2295 = vrot.slane %v2293, 3
      %v2297 = vadd.f32 %v2287, %v2295
      %v2298 = vld [vmem:[%s2 + $0x34] sm:$0x1]
      %v2299 = vlaneseq
      %v2300 = vshrl.u32 %v2299, 7
      %v2301 = vsub.s32 0, %v2300
      %v2302 = vrot.slane %v2298, %v2301
      %v2303 = vmul.f32 %v2302, %v2279
      %v2304 = vmul.f32 %v2302, %v2280
      %v2307 = vrot.slane %v2303, 6
      %v2308 = vrot.slane %v2304, 6
      %v2309 = vsel %vm1462, %v2307, %v2308
      %v2311 = vadd.f32 %v2297, %v2309
      %v2312 = vld [vmem:[%s2 + $0x37] sm:$0x1]
      %v2313 = vlaneseq
      %v2314 = vshrl.u32 %v2313, 7
      %v2315 = vsub.s32 0, %v2314
      %v2316 = vrot.slane %v2312, %v2315
      %v2317 = vmul.f32 %v2316, %v2280
      %v2319 = vrot.slane %v2317, 1
      %v2321 = vadd.f32 %v2311, %v2319
      %v2322 = vld [vmem:[%s2 + $0x3a] sm:$0x1]
      %v2323 = vlaneseq
      %v2324 = vshrl.u32 %v2323, 7
      %v2325 = vsub.s32 0, %v2324
      %v2326 = vrot.slane %v2322, %v2325
      %v2327 = vmul.f32 %v2326, %v2280
      %v2329 = vrot.slane %v2327, 4
      %v2331 = vadd.f32 %v2321, %v2329
      %2332 = vrot.lane.b32.xlu0 %v1388, 92
      %v2333 = vpop.permute.xlu0 %2332
      %2334 = vrot.lane.b32.xlu0 %v1389, 92
      %v2335 = vpop.permute.xlu0 %2334
      %2338 = vrot.lane.b32.xlu0 %v1388, 96
      %v2339 = vpop.permute.xlu0 %2338
      %2340 = vrot.lane.b32.xlu0 %v1389, 96
      %v2341 = vpop.permute.xlu0 %2340
      %2344 = vrot.lane.b32.xlu0 %v1388, 100
      %v2345 = vpop.permute.xlu0 %2344
      %2346 = vrot.lane.b32.xlu0 %v1389, 100
      %v2347 = vpop.permute.xlu0 %2346
      %2350 = vrot.lane.b32.xlu0 %v1388, 104
      %v2351 = vpop.permute.xlu0 %2350
      %2352 = vrot.lane.b32.xlu0 %v1389, 104
      %v2353 = vpop.permute.xlu0 %2352
      %v2356 = vsel %vm1422, %v2333, %v2339
      %v2357 = vsel %vm1422, %v2335, %v2341
      %v2358 = vsel %vm1425, %v2356, %v2345
      %v2359 = vsel %vm1425, %v2357, %v2347
      %v2360 = vsel %vm1428, %v2358, %v2351
      %v2361 = vsel %vm1428, %v2359, %v2353
      %v2362 = vsel %vm1431, %v2360, %v1932
      %v2363 = vsel %vm1431, %v2361, %v1934
      %v2364 = vsel %vm1434, %v2362, %v1847
      %v2365 = vsel %vm1434, %v2363, %v1849
      %v2366 = vld [vmem:[%s2 + $0x2f] sm:$0x1]
      %v2367 = vlaneseq
      %v2368 = vshrl.u32 %v2367, 7
      %v2369 = vsub.s32 0, %v2368
      %v2370 = vrot.slane %v2366, %v2369
      %v2371 = vmul.f32 %v2370, %v2364
      %v2372 = vadd.f32 %v2331, %v2371
      %v2373 = vld [vmem:[%s2 + $0x32] sm:$0x1]
      %v2374 = vlaneseq
      %v2375 = vshrl.u32 %v2374, 7
      %v2376 = vsub.s32 0, %v2375
      %v2377 = vrot.slane %v2373, %v2376
      %v2378 = vmul.f32 %v2377, %v2364
      %v2380 = vrot.slane %v2378, 3
      %v2382 = vadd.f32 %v2372, %v2380
      %v2383 = vld [vmem:[%s2 + $0x35] sm:$0x1]
      %v2384 = vlaneseq
      %v2385 = vshrl.u32 %v2384, 7
      %v2386 = vsub.s32 0, %v2385
      %v2387 = vrot.slane %v2383, %v2386
      %v2388 = vmul.f32 %v2387, %v2364
      %v2389 = vmul.f32 %v2387, %v2365
      %v2392 = vrot.slane %v2388, 6
      %v2393 = vrot.slane %v2389, 6
      %v2394 = vsel %vm1462, %v2392, %v2393
      %v2396 = vadd.f32 %v2382, %v2394
      %v2397 = vld [vmem:[%s2 + $0x38] sm:$0x1]
      %v2398 = vlaneseq
      %v2399 = vshrl.u32 %v2398, 7
      %v2400 = vsub.s32 0, %v2399
      %v2401 = vrot.slane %v2397, %v2400
      %v2402 = vmul.f32 %v2401, %v2365
      %v2404 = vrot.slane %v2402, 1
      %v2406 = vadd.f32 %v2396, %v2404
      %v2407 = vld [vmem:[%s2 + $0x3b] sm:$0x1]
      %v2408 = vlaneseq
      %v2409 = vshrl.u32 %v2408, 7
      %v2410 = vsub.s32 0, %v2409
      %v2411 = vrot.slane %v2407, %v2410
      %v2412 = vmul.f32 %v2411, %v2365
      %v2414 = vrot.slane %v2412, 4
      %v2416 = vadd.f32 %v2406, %v2414
      %2417 = vrot.lane.b32.xlu0 %v1388, 88
      %v2418 = vpop.permute.xlu0 %2417
      %2419 = vrot.lane.b32.xlu0 %v1389, 88
      %v2420 = vpop.permute.xlu0 %2419
      %v2423 = vsel %vm1422, %v2418, %v2333
      %v2424 = vsel %vm1422, %v2420, %v2335
      %v2425 = vsel %vm1425, %v2423, %v2339
      %v2426 = vsel %vm1425, %v2424, %v2341
      %v2427 = vsel %vm1428, %v2425, %v2345
      %v2428 = vsel %vm1428, %v2426, %v2347
      %v2429 = vsel %vm1431, %v2427, %v2351
      %v2430 = vsel %vm1431, %v2428, %v2353
      %v2431 = vsel %vm1434, %v2429, %v1932
      %v2432 = vsel %vm1434, %v2430, %v1934
      %v2433 = vld [vmem:[%s2 + $0x3c] sm:$0x1]
      %v2434 = vlaneseq
      %v2435 = vshrl.u32 %v2434, 7
      %v2436 = vsub.s32 0, %v2435
      %v2437 = vrot.slane %v2433, %v2436
      %v2438 = vmul.f32 %v2437, %v2431
      %v2439 = vadd.f32 %v2416, %v2438
      %v2440 = vld [vmem:[%s2 + $0x3f] sm:$0x1]
      %v2441 = vlaneseq
      %v2442 = vshrl.u32 %v2441, 7
      %v2443 = vsub.s32 0, %v2442
      %v2444 = vrot.slane %v2440, %v2443
      %v2445 = vmul.f32 %v2444, %v2431
      %v2447 = vrot.slane %v2445, 3
      %v2449 = vadd.f32 %v2439, %v2447
      %v2450 = vld [vmem:[%s2 + $0x42] sm:$0x1]
      %v2451 = vlaneseq
      %v2452 = vshrl.u32 %v2451, 7
      %v2453 = vsub.s32 0, %v2452
      %v2454 = vrot.slane %v2450, %v2453
      %v2455 = vmul.f32 %v2454, %v2431
      %v2456 = vmul.f32 %v2454, %v2432
      %v2459 = vrot.slane %v2455, 6
      %v2460 = vrot.slane %v2456, 6
      %v2461 = vsel %vm1462, %v2459, %v2460
      %v2463 = vadd.f32 %v2449, %v2461
      %v2464 = vld [vmem:[%s2 + $0x45] sm:$0x1]
      %v2465 = vlaneseq
      %v2466 = vshrl.u32 %v2465, 7
      %v2467 = vsub.s32 0, %v2466
      %v2468 = vrot.slane %v2464, %v2467
      %v2469 = vmul.f32 %v2468, %v2432
      %v2471 = vrot.slane %v2469, 1
      %v2473 = vadd.f32 %v2463, %v2471
      %v2474 = vld [vmem:[%s2 + $0x48] sm:$0x1]
      %v2475 = vlaneseq
      %v2476 = vshrl.u32 %v2475, 7
      %v2477 = vsub.s32 0, %v2476
      %v2478 = vrot.slane %v2474, %v2477
      %v2479 = vmul.f32 %v2478, %v2432
      %v2481 = vrot.slane %v2479, 4
      %v2483 = vadd.f32 %v2473, %v2481
      %2484 = vrot.lane.b32.xlu0 %v1388, 85
      %v2485 = vpop.permute.xlu0 %2484
      %2486 = vrot.lane.b32.xlu0 %v1389, 85
      %v2487 = vpop.permute.xlu0 %2486
      %2490 = vrot.lane.b32.xlu0 %v1388, 89
      %v2491 = vpop.permute.xlu0 %2490
      %2492 = vrot.lane.b32.xlu0 %v1389, 89
      %v2493 = vpop.permute.xlu0 %2492
      %2496 = vrot.lane.b32.xlu0 %v1388, 93
      %v2497 = vpop.permute.xlu0 %2496
      %2498 = vrot.lane.b32.xlu0 %v1389, 93
      %v2499 = vpop.permute.xlu0 %2498
      %2502 = vrot.lane.b32.xlu0 %v1388, 97
      %v2503 = vpop.permute.xlu0 %2502
      %2504 = vrot.lane.b32.xlu0 %v1389, 97
      %v2505 = vpop.permute.xlu0 %2504
      %2508 = vrot.lane.b32.xlu0 %v1388, 101
      %v2509 = vpop.permute.xlu0 %2508
      %2510 = vrot.lane.b32.xlu0 %v1389, 101
      %v2511 = vpop.permute.xlu0 %2510
      %v2514 = vsel %vm1422, %v2485, %v2491
      %v2515 = vsel %vm1422, %v2487, %v2493
      %v2516 = vsel %vm1425, %v2514, %v2497
      %v2517 = vsel %vm1425, %v2515, %v2499
      %v2518 = vsel %vm1428, %v2516, %v2503
      %v2519 = vsel %vm1428, %v2517, %v2505
      %v2520 = vsel %vm1431, %v2518, %v2509
      %v2521 = vsel %vm1431, %v2519, %v2511
      %v2522 = vsel %vm1434, %v2520, %v1999
      %v2523 = vsel %vm1434, %v2521, %v2001
      %v2524 = vld [vmem:[%s2 + $0x3d] sm:$0x1]
      %v2525 = vlaneseq
      %v2526 = vshrl.u32 %v2525, 7
      %v2527 = vsub.s32 0, %v2526
      %v2528 = vrot.slane %v2524, %v2527
      %v2529 = vmul.f32 %v2528, %v2522
      %v2530 = vadd.f32 %v2483, %v2529
      %v2531 = vld [vmem:[%s2 + $0x40] sm:$0x1]
      %v2532 = vlaneseq
      %v2533 = vshrl.u32 %v2532, 7
      %v2534 = vsub.s32 0, %v2533
      %v2535 = vrot.slane %v2531, %v2534
      %v2536 = vmul.f32 %v2535, %v2522
      %v2538 = vrot.slane %v2536, 3
      %v2540 = vadd.f32 %v2530, %v2538
      %v2541 = vld [vmem:[%s2 + $0x43] sm:$0x1]
      %v2542 = vlaneseq
      %v2543 = vshrl.u32 %v2542, 7
      %v2544 = vsub.s32 0, %v2543
      %v2545 = vrot.slane %v2541, %v2544
      %v2546 = vmul.f32 %v2545, %v2522
      %v2547 = vmul.f32 %v2545, %v2523
      %v2550 = vrot.slane %v2546, 6
      %v2551 = vrot.slane %v2547, 6
      %v2552 = vsel %vm1462, %v2550, %v2551
      %v2554 = vadd.f32 %v2540, %v2552
      %v2555 = vld [vmem:[%s2 + $0x46] sm:$0x1]
      %v2556 = vlaneseq
      %v2557 = vshrl.u32 %v2556, 7
      %v2558 = vsub.s32 0, %v2557
      %v2559 = vrot.slane %v2555, %v2558
      %v2560 = vmul.f32 %v2559, %v2523
      %v2562 = vrot.slane %v2560, 1
      %v2564 = vadd.f32 %v2554, %v2562
      %v2565 = vld [vmem:[%s2 + $0x49] sm:$0x1]
      %v2566 = vlaneseq
      %v2567 = vshrl.u32 %v2566, 7
      %v2568 = vsub.s32 0, %v2567
      %v2569 = vrot.slane %v2565, %v2568
      %v2570 = vmul.f32 %v2569, %v2523
      %v2572 = vrot.slane %v2570, 4
      %v2574 = vadd.f32 %v2564, %v2572
      %2575 = vrot.lane.b32.xlu0 %v1388, 82
      %v2576 = vpop.permute.xlu0 %2575
      %2577 = vrot.lane.b32.xlu0 %v1389, 82
      %v2578 = vpop.permute.xlu0 %2577
      %2581 = vrot.lane.b32.xlu0 %v1388, 86
      %v2582 = vpop.permute.xlu0 %2581
      %2583 = vrot.lane.b32.xlu0 %v1389, 86
      %v2584 = vpop.permute.xlu0 %2583
      %2587 = vrot.lane.b32.xlu0 %v1388, 90
      %v2588 = vpop.permute.xlu0 %2587
      %2589 = vrot.lane.b32.xlu0 %v1389, 90
      %v2590 = vpop.permute.xlu0 %2589
      %2593 = vrot.lane.b32.xlu0 %v1388, 94
      %v2594 = vpop.permute.xlu0 %2593
      %2595 = vrot.lane.b32.xlu0 %v1389, 94
      %v2596 = vpop.permute.xlu0 %2595
      %v2599 = vsel %vm1422, %v2576, %v2582
      %v2600 = vsel %vm1422, %v2578, %v2584
      %v2601 = vsel %vm1425, %v2599, %v2588
      %v2602 = vsel %vm1425, %v2600, %v2590
      %v2603 = vsel %vm1428, %v2601, %v2594
      %v2604 = vsel %vm1428, %v2602, %v2596
      %v2605 = vsel %vm1431, %v2603, %v2175
      %v2606 = vsel %vm1431, %v2604, %v2177
      %v2607 = vsel %vm1434, %v2605, %v2090
      %v2608 = vsel %vm1434, %v2606, %v2092
      %v2609 = vld [vmem:[%s2 + $0x3e] sm:$0x1]
      %v2610 = vlaneseq
      %v2611 = vshrl.u32 %v2610, 7
      %v2612 = vsub.s32 0, %v2611
      %v2613 = vrot.slane %v2609, %v2612
      %v2614 = vmul.f32 %v2613, %v2607
      %v2615 = vadd.f32 %v2574, %v2614
      %v2616 = vld [vmem:[%s2 + $0x41] sm:$0x1]
      %v2617 = vlaneseq
      %v2618 = vshrl.u32 %v2617, 7
      %v2619 = vsub.s32 0, %v2618
      %v2620 = vrot.slane %v2616, %v2619
      %v2621 = vmul.f32 %v2620, %v2607
      %v2623 = vrot.slane %v2621, 3
      %v2625 = vadd.f32 %v2615, %v2623
      %v2626 = vld [vmem:[%s2 + $0x44] sm:$0x1]
      %v2627 = vlaneseq
      %v2628 = vshrl.u32 %v2627, 7
      %v2629 = vsub.s32 0, %v2628
      %v2630 = vrot.slane %v2626, %v2629
      %v2631 = vmul.f32 %v2630, %v2607
      %v2632 = vmul.f32 %v2630, %v2608
      %v2635 = vrot.slane %v2631, 6
      %v2636 = vrot.slane %v2632, 6
      %v2637 = vsel %vm1462, %v2635, %v2636
      %v2639 = vadd.f32 %v2625, %v2637
      %v2640 = vld [vmem:[%s2 + $0x47] sm:$0x1]
      %v2641 = vlaneseq
      %v2642 = vshrl.u32 %v2641, 7
      %v2643 = vsub.s32 0, %v2642
      %v2644 = vrot.slane %v2640, %v2643
      %v2645 = vmul.f32 %v2644, %v2608
      %v2647 = vrot.slane %v2645, 1
      %v2649 = vadd.f32 %v2639, %v2647
      %v2650 = vld [vmem:[%s2 + $0x4a] sm:$0x1]
      %v2651 = vlaneseq
      %v2652 = vshrl.u32 %v2651, 7
      %v2653 = vsub.s32 0, %v2652
      %v2654 = vrot.slane %v2650, %v2653
      %v2655 = vmul.f32 %v2654, %v2608
      %v2657 = vrot.slane %v2655, 4
      %v2659 = vadd.f32 %v2649, %v2657
      %2660 = vrot.lane.b32.xlu0 %v1388, 78
      %v2661 = vpop.permute.xlu0 %2660
      %2662 = vrot.lane.b32.xlu0 %v1389, 78
      %v2663 = vpop.permute.xlu0 %2662
      %v2666 = vsel %vm1422, %v2661, %v2576
      %v2667 = vsel %vm1422, %v2663, %v2578
      %v2668 = vsel %vm1425, %v2666, %v2582
      %v2669 = vsel %vm1425, %v2667, %v2584
      %v2670 = vsel %vm1428, %v2668, %v2588
      %v2671 = vsel %vm1428, %v2669, %v2590
      %v2672 = vsel %vm1431, %v2670, %v2594
      %v2673 = vsel %vm1431, %v2671, %v2596
      %v2674 = vsel %vm1434, %v2672, %v2175
      %v2675 = vsel %vm1434, %v2673, %v2177
      %v2676 = vld [vmem:[%s2 + $0x4b] sm:$0x1]
      %v2677 = vlaneseq
      %v2678 = vshrl.u32 %v2677, 7
      %v2679 = vsub.s32 0, %v2678
      %v2680 = vrot.slane %v2676, %v2679
      %v2681 = vmul.f32 %v2680, %v2674
      %v2682 = vadd.f32 %v2659, %v2681
      %v2683 = vld [vmem:[%s2 + $0x4e] sm:$0x1]
      %v2684 = vlaneseq
      %v2685 = vshrl.u32 %v2684, 7
      %v2686 = vsub.s32 0, %v2685
      %v2687 = vrot.slane %v2683, %v2686
      %v2688 = vmul.f32 %v2687, %v2674
      %v2690 = vrot.slane %v2688, 3
      %v2692 = vadd.f32 %v2682, %v2690
      %v2693 = vld [vmem:[%s2 + $0x51] sm:$0x1]
      %v2694 = vlaneseq
      %v2695 = vshrl.u32 %v2694, 7
      %v2696 = vsub.s32 0, %v2695
      %v2697 = vrot.slane %v2693, %v2696
      %v2698 = vmul.f32 %v2697, %v2674
      %v2699 = vmul.f32 %v2697, %v2675
      %v2702 = vrot.slane %v2698, 6
      %v2703 = vrot.slane %v2699, 6
      %v2704 = vsel %vm1462, %v2702, %v2703
      %v2706 = vadd.f32 %v2692, %v2704
      %v2707 = vld [vmem:[%s2 + $0x54] sm:$0x1]
      %v2708 = vlaneseq
      %v2709 = vshrl.u32 %v2708, 7
      %v2710 = vsub.s32 0, %v2709
      %v2711 = vrot.slane %v2707, %v2710
      %v2712 = vmul.f32 %v2711, %v2675
      %v2714 = vrot.slane %v2712, 1
      %v2716 = vadd.f32 %v2706, %v2714
      %v2717 = vld [vmem:[%s2 + $0x57] sm:$0x1]
      %v2718 = vlaneseq
      %v2719 = vshrl.u32 %v2718, 7
      %v2720 = vsub.s32 0, %v2719
      %v2721 = vrot.slane %v2717, %v2720
      %v2722 = vmul.f32 %v2721, %v2675
      %v2724 = vrot.slane %v2722, 4
      %v2726 = vadd.f32 %v2716, %v2724
      %2727 = vrot.lane.b32.xlu0 %v1388, 75
      %v2728 = vpop.permute.xlu0 %2727
      %2729 = vrot.lane.b32.xlu0 %v1389, 75
      %v2730 = vpop.permute.xlu0 %2729
      %2733 = vrot.lane.b32.xlu0 %v1388, 79
      %v2734 = vpop.permute.xlu0 %2733
      %2735 = vrot.lane.b32.xlu0 %v1389, 79
      %v2736 = vpop.permute.xlu0 %2735
      %2739 = vrot.lane.b32.xlu0 %v1388, 83
      %v2740 = vpop.permute.xlu0 %2739
      %2741 = vrot.lane.b32.xlu0 %v1389, 83
      %v2742 = vpop.permute.xlu0 %2741
      %2745 = vrot.lane.b32.xlu0 %v1388, 87
      %v2746 = vpop.permute.xlu0 %2745
      %2747 = vrot.lane.b32.xlu0 %v1389, 87
      %v2748 = vpop.permute.xlu0 %2747
      %2751 = vrot.lane.b32.xlu0 %v1388, 91
      %v2752 = vpop.permute.xlu0 %2751
      %2753 = vrot.lane.b32.xlu0 %v1389, 91
      %v2754 = vpop.permute.xlu0 %2753
      %v2757 = vsel %vm1422, %v2728, %v2734
      %v2758 = vsel %vm1422, %v2730, %v2736
      %v2759 = vsel %vm1425, %v2757, %v2740
      %v2760 = vsel %vm1425, %v2758, %v2742
      %v2761 = vsel %vm1428, %v2759, %v2746
      %v2762 = vsel %vm1428, %v2760, %v2748
      %v2763 = vsel %vm1431, %v2761, %v2752
      %v2764 = vsel %vm1431, %v2762, %v2754
      %v2765 = vsel %vm1434, %v2763, %v2242
      %v2766 = vsel %vm1434, %v2764, %v2244
      %v2767 = vld [vmem:[%s2 + $0x4c] sm:$0x1]
      %v2768 = vlaneseq
      %v2769 = vshrl.u32 %v2768, 7
      %v2770 = vsub.s32 0, %v2769
      %v2771 = vrot.slane %v2767, %v2770
      %v2772 = vmul.f32 %v2771, %v2765
      %v2773 = vadd.f32 %v2726, %v2772
      %v2774 = vld [vmem:[%s2 + $0x4f] sm:$0x1]
      %v2775 = vlaneseq
      %v2776 = vshrl.u32 %v2775, 7
      %v2777 = vsub.s32 0, %v2776
      %v2778 = vrot.slane %v2774, %v2777
      %v2779 = vmul.f32 %v2778, %v2765
      %v2781 = vrot.slane %v2779, 3
      %v2783 = vadd.f32 %v2773, %v2781
      %v2784 = vld [vmem:[%s2 + $0x52] sm:$0x1]
      %v2785 = vlaneseq
      %v2786 = vshrl.u32 %v2785, 7
      %v2787 = vsub.s32 0, %v2786
      %v2788 = vrot.slane %v2784, %v2787
      %v2789 = vmul.f32 %v2788, %v2765
      %v2790 = vmul.f32 %v2788, %v2766
      %v2793 = vrot.slane %v2789, 6
      %v2794 = vrot.slane %v2790, 6
      %v2795 = vsel %vm1462, %v2793, %v2794
      %v2797 = vadd.f32 %v2783, %v2795
      %v2798 = vld [vmem:[%s2 + $0x55] sm:$0x1]
      %v2799 = vlaneseq
      %v2800 = vshrl.u32 %v2799, 7
      %v2801 = vsub.s32 0, %v2800
      %v2802 = vrot.slane %v2798, %v2801
      %v2803 = vmul.f32 %v2802, %v2766
      %v2805 = vrot.slane %v2803, 1
      %v2807 = vadd.f32 %v2797, %v2805
      %v2808 = vld [vmem:[%s2 + $0x58] sm:$0x1]
      %v2809 = vlaneseq
      %v2810 = vshrl.u32 %v2809, 7
      %v2811 = vsub.s32 0, %v2810
      %v2812 = vrot.slane %v2808, %v2811
      %v2813 = vmul.f32 %v2812, %v2766
      %v2815 = vrot.slane %v2813, 4
      %v2817 = vadd.f32 %v2807, %v2815
      %2818 = vrot.lane.b32.xlu0 %v1388, 72
      %v2819 = vpop.permute.xlu0 %2818
      %2820 = vrot.lane.b32.xlu0 %v1389, 72
      %v2821 = vpop.permute.xlu0 %2820
      %2824 = vrot.lane.b32.xlu0 %v1388, 76
      %v2825 = vpop.permute.xlu0 %2824
      %2826 = vrot.lane.b32.xlu0 %v1389, 76
      %v2827 = vpop.permute.xlu0 %2826
      %2830 = vrot.lane.b32.xlu0 %v1388, 80
      %v2831 = vpop.permute.xlu0 %2830
      %2832 = vrot.lane.b32.xlu0 %v1389, 80
      %v2833 = vpop.permute.xlu0 %2832
      %2836 = vrot.lane.b32.xlu0 %v1388, 84
      %v2837 = vpop.permute.xlu0 %2836
      %2838 = vrot.lane.b32.xlu0 %v1389, 84
      %v2839 = vpop.permute.xlu0 %2838
      %v2842 = vsel %vm1422, %v2819, %v2825
      %v2843 = vsel %vm1422, %v2821, %v2827
      %v2844 = vsel %vm1425, %v2842, %v2831
      %v2845 = vsel %vm1425, %v2843, %v2833
      %v2846 = vsel %vm1428, %v2844, %v2837
      %v2847 = vsel %vm1428, %v2845, %v2839
      %v2848 = vsel %vm1431, %v2846, %v2418
      %v2849 = vsel %vm1431, %v2847, %v2420
      %v2850 = vsel %vm1434, %v2848, %v2333
      %v2851 = vsel %vm1434, %v2849, %v2335
      %v2852 = vld [vmem:[%s2 + $0x4d] sm:$0x1]
      %v2853 = vlaneseq
      %v2854 = vshrl.u32 %v2853, 7
      %v2855 = vsub.s32 0, %v2854
      %v2856 = vrot.slane %v2852, %v2855
      %v2857 = vmul.f32 %v2856, %v2850
      %v2858 = vadd.f32 %v2817, %v2857
      %v2859 = vld [vmem:[%s2 + $0x50] sm:$0x1]
      %v2860 = vlaneseq
      %v2861 = vshrl.u32 %v2860, 7
      %v2862 = vsub.s32 0, %v2861
      %v2863 = vrot.slane %v2859, %v2862
      %v2864 = vmul.f32 %v2863, %v2850
      %v2866 = vrot.slane %v2864, 3
      %v2868 = vadd.f32 %v2858, %v2866
      %v2869 = vld [vmem:[%s2 + $0x53] sm:$0x1]
      %v2870 = vlaneseq
      %v2871 = vshrl.u32 %v2870, 7
      %v2872 = vsub.s32 0, %v2871
      %v2873 = vrot.slane %v2869, %v2872
      %v2874 = vmul.f32 %v2873, %v2850
      %v2875 = vmul.f32 %v2873, %v2851
      %v2878 = vrot.slane %v2874, 6
      %v2879 = vrot.slane %v2875, 6
      %v2880 = vsel %vm1462, %v2878, %v2879
      %v2882 = vadd.f32 %v2868, %v2880
      %v2883 = vld [vmem:[%s2 + $0x56] sm:$0x1]
      %v2884 = vlaneseq
      %v2885 = vshrl.u32 %v2884, 7
      %v2886 = vsub.s32 0, %v2885
      %v2887 = vrot.slane %v2883, %v2886
      %v2888 = vmul.f32 %v2887, %v2851
      %v2890 = vrot.slane %v2888, 1
      %v2892 = vadd.f32 %v2882, %v2890
      %v2893 = vld [vmem:[%s2 + $0x59] sm:$0x1]
      %v2894 = vlaneseq
      %v2895 = vshrl.u32 %v2894, 7
      %v2896 = vsub.s32 0, %v2895
      %v2897 = vrot.slane %v2893, %v2896
      %v2898 = vmul.f32 %v2897, %v2851
      %v2900 = vrot.slane %v2898, 4
      %v2902 = vadd.f32 %v2892, %v2900
      %v2903 = vld [vmem:[%s3] sm:$0x1]
      %v2905 = vlaneseq
      %v2906 = vshrl.u32 %v2905, 7
      %v2907 = vsub.s32 0, %v2906
      %v2908 = vrot.slane %v2903, %v2907
      %v2910 = vadd.f32 %v2902, %v2908
      %vm2911 = vcmask 190464
      %2912 = vst.msk [vmem:[%s222] sm:$0x7] %vm2911, %v2910
      %p2913 = scmp.lt.s32.totalorder %s16, 1
      %s2914 = scalar_select %p2913, %s16, 1
      %s2915 = smul.addr %s2914, 4
      %s2916 = scalar_lea.vmem %s5, %s2915
      // Predicated region
      $region41: #{testmodel_forward.1} parent=39 // pred_check
        %p2917 = pneg %p144
      $region42: #{testmodel_forward.1} parent=39 // pred_check_branch
        %2919 = sbr.rel (%p2917) target = $region44
      $region43: #{testmodel_forward.1} parent=39 // pred_region
        _
      $region44: #{testmodel_forward.1} parent=39 // pred_fallthru
        _
    $region40: #{testmodel_forward.1} parent=5 // pred_fallthru
      _
    %p2920 = scmp.le.s32.totalorder 2, %s11
    // Predicated region
    $region45: #{testmodel_forward.1} parent=5 // pred_check
      %p2921 = pneg %p2920
    $region46: #{testmodel_forward.1} parent=5 // pred_check_branch
      %2923 = sbr.rel (%p2921) target = $region48
    $region47: #{testmodel_forward.1} parent=5 // pred_region
      %s2924 = ssub.s32 %s11, 2
      // Predicated region
      $region49: #{testmodel_forward.1} parent=47 // pred_check
        %p2925 = pneg %p150
      $region50: #{testmodel_forward.1} parent=47 // pred_check_branch
        %2927 = sbr.rel (%p2925) target = $region52
      $region51: #{testmodel_forward.1} parent=47 // pred_region
        %p2928 = scmp.lt.s32.totalorder %s17, 1
        %s2929 = scalar_select %p2928, %s17, 1
        %s2930 = smul.addr %s2929, 4
        %s2931 = scalar_lea.vmem %s5, %s2930
      $region52: #{testmodel_forward.1} parent=47 // pred_fallthru
        _
    $region48: #{testmodel_forward.1} parent=5 // pred_fallthru
      _
  $region6: #{testmodel_forward.1} parent=0 // loop_footer
    %s15 = sadd.s32 1, %s11
  $region7: #{testmodel_forward.1} parent=0 // loop_footer_branch
    %10 = sbr.rel target = $region3
  $region8: #{testmodel_forward.1} parent=0 // loop_exit
    _

</llo_original>
